<compile_context>
chip_gen: v7x
topology: tpu7x:2x2x1
jax: 0.10.0
libtpu: 0.0.40
codegen_flags: <defaults>
</compile_context>

<pallas_src>
import functools

import jax
import jax.numpy as jnp
from jax.experimental import pallas as pl
from jax.experimental.pallas import tpu as pltpu


# ----------------------------------------------------------------------------
# Constant-operand construction (runs once per weight set, plain JAX, eager)
# ----------------------------------------------------------------------------
def _band(w_i, wi, wo):
    """Banded conv matrix for one kernel row.

    w_i: (kw, cin, cout).  Returns T of shape (wi*cin, wo*cout) with
    T[w*cin+ci, o*cout+co] = w_i[w-o, ci, co] if 0 <= w-o < kw else 0.
    """
    k, cin, cout = w_i.shape
    win = jnp.arange(wi)
    wout = jnp.arange(wo)
    j = win[:, None] - wout[None, :]                       # (wi, wo)
    valid = (j >= 0) & (j < k)
    g = w_i[jnp.clip(j, 0, k - 1)]                         # (wi, wo, cin, cout)
    g = jnp.where(valid[:, :, None, None], g, 0.0)
    g = jnp.transpose(g, (0, 2, 1, 3))                     # (wi, cin, wo, cout)
    return g.reshape(wi * cin, wo * cout)


def _row_pool(h_out, n):
    """(h_out*n, 2*h_out*n): averages row pairs (2h', 2h'+1) per sample."""
    r = jnp.arange(h_out * n)
    c = jnp.arange(2 * h_out * n)
    rh, rm = r // n, r % n
    ch, cm = c // n, c % n
    m = (cm[None, :] == rm[:, None]) & ((ch[None, :] // 2) == rh[:, None])
    return m.astype(jnp.float32) * 0.5


def _col_pool(w_out, ch):
    """(2*w_out*ch, w_out*ch): averages column pairs (2w', 2w'+1) per channel."""
    r = jnp.arange(2 * w_out * ch)
    c = jnp.arange(w_out * ch)
    rw, rc = r // ch, r % ch
    cw, cc = c // ch, c % ch
    m = (rc[:, None] == cc[None, :]) & ((rw[:, None] // 2) == cw[None, :])
    return m.astype(jnp.float32) * 0.5


def prepare_lenet(params, n_tile):
    """Precompute all VMEM-resident constant operands for the fused kernel.

    n_tile: images per grid step (batch-tile); use a multiple of 8 so that
    in-kernel row-slice starts (i * n_tile) stay sublane-aligned.
    """
    f32, bf16 = jnp.float32, jnp.bfloat16
    n = n_tile

    # torch conv weight layout (Cout, Cin, kh, kw) -> (kh, kw, cin, cout)
    w1 = jnp.transpose(params["w1"].astype(f32), (2, 3, 1, 0))   # (5,5,1,6)
    w2 = jnp.transpose(params["w2"].astype(f32), (2, 3, 1, 0))   # (5,5,6,16)
    w3 = jnp.transpose(params["w3"].astype(f32), (2, 3, 1, 0))   # (5,5,16,120)
    w4t = params["w4"].astype(f32).T                             # (120, 84)  torch (out,in)
    w5t = params["w5"].astype(f32).T                             # (84, 10)

    # conv1: K-stacked band matrices (im2row input built in the wrapper)
    t1s = jnp.concatenate([_band(w1[i], 32, 28) for i in range(5)], axis=0)  # (160,168)

    # conv2: fold column-pool CP1 (28*6 -> 14*6) into each band matrix
    cp1 = _col_pool(14, 6)                                                    # (168, 84)
    t2f = jnp.stack([cp1 @ _band(w2[i], 14, 10) for i in range(5)])           # (5,168,160)

    # conv3 + fc tail fold (no nonlinearity after conv3 or between the Linears):
    #   CP2 (10*16 -> 5*16) @ T3_i (80,120) @ (W4^T @ W5^T) (120,10)
    cp2 = _col_pool(5, 16)                                                    # (160, 80)
    w45 = w4t @ w5t                                                           # (120, 10)
    t3f = jnp.stack([cp2 @ _band(w3[i], 5, 1) @ w45 for i in range(5)])       # (5,160,10)
    t3f = jnp.pad(t3f, ((0, 0), (0, 0), (0, 118)))                            # (5,160,128) lane-dense

    # row-pool matrices (depend on n_tile)
    rp1 = _row_pool(14, n)                                                    # (14n, 28n)
    rp2 = _row_pool(5, n)                                                     # (5n, 10n)

    # biases, packed into ONE padded f32 array (cuts tiny DMAs)
    b1t = jnp.tile(params["b1"].astype(f32), 28)                              # (168,)
    b2t = jnp.tile(params["b2"].astype(f32), 10)                              # (160,)
    bo = (params["b3"].astype(f32) @ w45
          + params["b4"].astype(f32) @ w5t
          + params["b5"].astype(f32))                                         # (10,)
    bias = jnp.zeros((3, 256), f32)
    bias = bias.at[0, :168].set(b1t).at[1, :160].set(b2t).at[2, :10].set(bo)

    return {
        "t1s": t1s.astype(bf16),
        "t2f": t2f.astype(bf16),
        "t3f": t3f.astype(bf16),
        "rp1": rp1.astype(bf16),
        "rp2": rp2.astype(bf16),
        "bias": bias,
    }


# ----------------------------------------------------------------------------
# The fused Pallas kernel: whole forward pass, everything resident in VMEM
# ----------------------------------------------------------------------------
def _lenet_kernel(x_ref, t1_ref, rp1_ref, t2_ref, rp2_ref, t3_ref, b_ref,
                  o_ref, *, n):
    f32, bf16 = jnp.float32, jnp.bfloat16

    def mm(a, b):
        return jnp.dot(a, b, preferred_element_type=f32)   # bf16 MXU, f32 acc

    b_all = b_ref[...]                                      # (3, 256) f32
    b1 = b_all[0:1, 0:168]
    b2 = b_all[1:2, 0:160]
    bo = b_all[2:3, 0:128]

    # ---- conv1 (5x5, pad=2, 1->6) + sigmoid: ONE matmul on im2row input ----
    # x_ref[0]: (28n, 5*32) bf16, t1: (160, 168)  ->  (28n, 28*6) f32
    h1 = jax.nn.sigmoid(mm(x_ref[0], t1_ref[...]) + b1)

    # ---- avgpool row halves (matmul); column pool folded into t2 ----------
    q1 = mm(rp1_ref[...], h1.astype(bf16)).astype(bf16)     # (14n, 168)

    # ---- conv2 (5x5, valid, 6->16) + sigmoid: 5 sliced band matmuls --------
    # kernel-row shift i == static row slice [i*n, i*n + 10n)  (8-aligned)
    acc = mm(q1[0:10 * n, :], t2_ref[0])
    for i in range(1, 5):
        acc = acc + mm(q1[i * n:i * n + 10 * n, :], t2_ref[i])
    h2 = jax.nn.sigmoid(acc + b2)                            # (10n, 160) f32

    # ---- avgpool row halves; col-pool + conv3 + fc1 + fc2 folded into t3 --
    q2 = mm(rp2_ref[...], h2.astype(bf16)).astype(bf16)     # (5n, 160)

    out = mm(q2[0:n, :], t3_ref[0])
    for i in range(1, 5):
        out = out + mm(q2[i * n:(i + 1) * n, :], t3_ref[i])
    o_ref[0] = (out + bo).astype(o_ref.dtype)                # (n, 128) lane-dense


def lenet_forward(ops, x_nchw, n_tile):
    N, C, H, W = x_nchw.shape
    assert (C, H, W) == (1, 28, 28), "LeNet (Linear(120,84)) expects 1x28x28 input"
    assert N % n_tile == 0, "batch must be a multiple of the batch tile"
    n = n_tile
    G = N // n

    # NCHW -> padded im2row layout: rows=(h_out, n), cols=(kernel_row, w_in)
    x = x_nchw.reshape(N, 28, 28).astype(jnp.float32)
    xpad = jnp.pad(x, ((0, 0), (2, 2), (2, 2)))                        # (N, 32, 32)
    shifts = jnp.stack([xpad[:, i:i + 28, :] for i in range(5)], axis=2)  # (N,28,5,32)
    x_im2 = (shifts.reshape(G, n, 28, 5, 32)
             .transpose(0, 2, 1, 3, 4)
             .reshape(G, 28 * n, 5 * 32)
             .astype(jnp.bfloat16))                                    # (G, 28n, 160)

    operands = (x_im2, ops["t1s"], ops["rp1"], ops["t2f"], ops["rp2"],
                ops["t3f"], ops["bias"])

    in_specs = [
        pl.BlockSpec((1, 28 * n, 160), lambda g: (g, 0, 0)),           # per-tile input
        pl.BlockSpec((160, 168), lambda g: (0, 0)),                    # t1s   (shared)
        pl.BlockSpec((14 * n, 28 * n), lambda g: (0, 0)),              # rp1
        pl.BlockSpec((5, 168, 160), lambda g: (0, 0, 0)),              # t2f
        pl.BlockSpec((5 * n, 10 * n), lambda g: (0, 0)),               # rp2
        pl.BlockSpec((5, 160, 128), lambda g: (0, 0, 0)),              # t3f
        pl.BlockSpec((3, 256), lambda g: (0, 0)),                      # packed biases
    ]
    out_spec = pl.BlockSpec((1, n, 128), lambda g: (g, 0, 0))

    # Advisory cost estimate for XLA's scheduler.
    flops = G * (2 * 28 * n * 160 * 168            # conv1
                 + 2 * 14 * n * 28 * n * 168       # row-pool 1
                 + 5 * 2 * 10 * n * 168 * 160      # conv2
                 + 2 * 5 * n * 10 * n * 160        # row-pool 2
                 + 5 * 2 * n * 160 * 128)          # conv3 + fc (folded)
    transcendentals = G * (28 * n * 168 + 10 * n * 160)
    bytes_accessed = (sum(a.size * a.dtype.itemsize for a in operands)
                      + G * n * 128 * 4)

    out = pl.pallas_call(
        functools.partial(_lenet_kernel, n=n),
        out_shape=jax.ShapeDtypeStruct((G, n, 128), jnp.float32),
        grid=(G,),
        in_specs=in_specs,
        out_specs=out_spec,
        compiler_params=pltpu.CompilerParams(
            dimension_semantics=("parallel",)),
        cost_estimate=pl.CostEstimate(flops=int(flops),
                                      transcendentals=int(transcendentals),
                                      bytes_accessed=int(bytes_accessed)),
    )(*operands)

    # (G, n, 128) -> (N, 10) logits (lane-dense kernel store, sliced outside)
    return out.reshape(N, 128)[:, :10]


# ----------------------------------------------------------------------------
# Parameter init (torch layout conventions) and demo
# ----------------------------------------------------------------------------
def init_params(key):
    ks = jax.random.split(key, 10)
    return {
        "w1": jax.random.normal(ks[0], (6, 1, 5, 5), jnp.float32) * 0.1,
        "b1": jax.random.normal(ks[1], (6,), jnp.float32) * 0.1,
        "w2": jax.random.normal(ks[2], (16, 6, 5, 5), jnp.float32) * 0.1,
        "b2": jax.random.normal(ks[3], (16,), jnp.float32) * 0.1,
        "w3": jax.random.normal(ks[4], (120, 16, 5, 5), jnp.float32) * 0.1,
        "b3": jax.random.normal(ks[5], (120,), jnp.float32) * 0.1,
        "w4": jax.random.normal(ks[6], (84, 120), jnp.float32) * 0.1,   # torch Linear (out, in)
        "b4": jax.random.normal(ks[7], (84,), jnp.float32) * 0.1,
        "w5": jax.random.normal(ks[8], (10, 84), jnp.float32) * 0.1,
        "b5": jax.random.normal(ks[9], (10,), jnp.float32) * 0.1,
    }


if __name__ == "__main__":
    key = jax.random.PRNGKey(0)
    pkey, xkey = jax.random.split(key)
    params = init_params(pkey)

    # LeNet's Linear(120, 84) implies 28x28 single-channel input.
    # Batch tile of 8 keeps every in-kernel row slice sublane-aligned and fills
    # the MXU M dim better; 2 tiles -> "parallel" grid axis (2 TCs on v7x).
    N_TILE = 8
    BATCH = 16
    x = jax.random.normal(xkey, (BATCH, 1, 28, 28), jnp.float32)

    ops = prepare_lenet(params, n_tile=N_TILE)        # one-time weight folding
    fwd = jax.jit(functools.partial(lenet_forward, n_tile=N_TILE))
    out = fwd(ops, x)
    out = jax.block_until_ready(out)
    assert out.shape == (BATCH, 10), out.shape
    print("KERNEL_OK")
</pallas_src>

<mosaic_0001>
module attributes {stable_mosaic.version = 11 : i64} {
  func.func @_lenet_kernel(%arg0: i32, %arg1: memref<1x224x160xbf16, #tpu.memory_space<vmem>>, %arg2: memref<160x168xbf16, #tpu.memory_space<vmem>>, %arg3: memref<112x224xbf16, #tpu.memory_space<vmem>>, %arg4: memref<5x168x160xbf16, #tpu.memory_space<vmem>>, %arg5: memref<40x80xbf16, #tpu.memory_space<vmem>>, %arg6: memref<5x160x128xbf16, #tpu.memory_space<vmem>>, %arg7: memref<3x256xf32, #tpu.memory_space<vmem>>, %arg8: memref<1x8x128xf32, #tpu.memory_space<vmem>>) attributes {dimension_semantics = [#tpu.dimension_semantics<parallel>], iteration_bounds = array<i64: 2>, scalar_prefetch = 0 : i64, scratch_operands = 0 : i64, tpu.core_type = #tpu.core_type<tc>, window_params = [{transform_indices = @transform_0, window_bounds = array<i64: 1, 224, 160>}, {pipeline_mode = #tpu.pipeline_mode<synchronous>, transform_indices = @transform_1, window_bounds = array<i64: 160, 168>}, {pipeline_mode = #tpu.pipeline_mode<synchronous>, transform_indices = @transform_2, window_bounds = array<i64: 112, 224>}, {pipeline_mode = #tpu.pipeline_mode<synchronous>, transform_indices = @transform_3, window_bounds = array<i64: 5, 168, 160>}, {pipeline_mode = #tpu.pipeline_mode<synchronous>, transform_indices = @transform_4, window_bounds = array<i64: 40, 80>}, {pipeline_mode = #tpu.pipeline_mode<synchronous>, transform_indices = @transform_5, window_bounds = array<i64: 5, 160, 128>}, {pipeline_mode = #tpu.pipeline_mode<synchronous>, transform_indices = @transform_6, window_bounds = array<i64: 3, 256>}, {transform_indices = @transform_7, window_bounds = array<i64: 1, 8, 128>}]} {
    %c0 = arith.constant 0 : index
    %c0_0 = arith.constant 0 : index
    %0 = vector.load %arg7[%c0, %c0_0] : memref<3x256xf32, #tpu.memory_space<vmem>>, vector<3x256xf32>
    %1 = vector.extract_strided_slice %0 {offsets = [0, 0], sizes = [1, 168], strides = [1, 1]} : vector<3x256xf32> to vector<1x168xf32>
    %2 = vector.extract_strided_slice %0 {offsets = [1, 0], sizes = [1, 160], strides = [1, 1]} : vector<3x256xf32> to vector<1x160xf32>
    %3 = vector.extract_strided_slice %0 {offsets = [2, 0], sizes = [1, 128], strides = [1, 1]} : vector<3x256xf32> to vector<1x128xf32>
    %c0_1 = arith.constant 0 : index
    %c0_2 = arith.constant 0 : index
    %c0_3 = arith.constant 0 : index
    %4 = vector.load %arg1[%c0_1, %c0_2, %c0_3] : memref<1x224x160xbf16, #tpu.memory_space<vmem>>, vector<1x224x160xbf16>
    %5 = vector.shape_cast %4 : vector<1x224x160xbf16> to vector<224x160xbf16>
    %c0_4 = arith.constant 0 : index
    %c0_5 = arith.constant 0 : index
    %6 = vector.load %arg2[%c0_4, %c0_5] : memref<160x168xbf16, #tpu.memory_space<vmem>>, vector<160x168xbf16>
    %cst = arith.constant dense<0.000000e+00> : vector<224x168xf32>
    %7 = tpu.matmul %5, %6, %cst {dimension_numbers = #tpu.dot_dimension_numbers<[1], [0], [0], [1], [0, 0, 1, 1], [], []>} : vector<224x160xbf16>, vector<160x168xbf16>, vector<224x168xf32> -> vector<224x168xf32>
    %8 = vector.broadcast %1 : vector<1x168xf32> to vector<224x168xf32>
    %9 = arith.addf %7, %8 : vector<224x168xf32>
    %10 = arith.negf %9 : vector<224x168xf32>
    %11 = math.exp %10 : vector<224x168xf32>
    %cst_6 = arith.constant 1.000000e+00 : f32
    %12 = vector.broadcast %cst_6 : f32 to vector<224x168xf32>
    %13 = arith.addf %12, %11 : vector<224x168xf32>
    %14 = arith.divf %12, %13 : vector<224x168xf32>
    %c0_7 = arith.constant 0 : index
    %c0_8 = arith.constant 0 : index
    %15 = vector.load %arg3[%c0_7, %c0_8] : memref<112x224xbf16, #tpu.memory_space<vmem>>, vector<112x224xbf16>
    %16 = arith.truncf %14 : vector<224x168xf32> to vector<224x168xbf16>
    %cst_9 = arith.constant dense<0.000000e+00> : vector<112x168xf32>
    %17 = tpu.matmul %15, %16, %cst_9 {dimension_numbers = #tpu.dot_dimension_numbers<[1], [0], [0], [1], [0, 0, 1, 1], [], []>} : vector<112x224xbf16>, vector<224x168xbf16>, vector<112x168xf32> -> vector<112x168xf32>
    %18 = arith.truncf %17 : vector<112x168xf32> to vector<112x168xbf16>
    %19 = vector.extract_strided_slice %18 {offsets = [0, 0], sizes = [80, 168], strides = [1, 1]} : vector<112x168xbf16> to vector<80x168xbf16>
    %c0_10 = arith.constant 0 : index
    %c0_11 = arith.constant 0 : index
    %c0_12 = arith.constant 0 : index
    %20 = vector.load %arg4[%c0_10, %c0_11, %c0_12] : memref<5x168x160xbf16, #tpu.memory_space<vmem>>, vector<1x168x160xbf16>
    %21 = vector.shape_cast %20 : vector<1x168x160xbf16> to vector<168x160xbf16>
    %cst_13 = arith.constant dense<0.000000e+00> : vector<80x160xf32>
    %22 = tpu.matmul %19, %21, %cst_13 {dimension_numbers = #tpu.dot_dimension_numbers<[1], [0], [0], [1], [0, 0, 1, 1], [], []>} : vector<80x168xbf16>, vector<168x160xbf16>, vector<80x160xf32> -> vector<80x160xf32>
    %23 = vector.extract_strided_slice %18 {offsets = [8, 0], sizes = [80, 168], strides = [1, 1]} : vector<112x168xbf16> to vector<80x168xbf16>
    %c1 = arith.constant 1 : index
    %c0_14 = arith.constant 0 : index
    %c0_15 = arith.constant 0 : index
    %24 = vector.load %arg4[%c1, %c0_14, %c0_15] : memref<5x168x160xbf16, #tpu.memory_space<vmem>>, vector<1x168x160xbf16>
    %25 = vector.shape_cast %24 : vector<1x168x160xbf16> to vector<168x160xbf16>
    %cst_16 = arith.constant dense<0.000000e+00> : vector<80x160xf32>
    %26 = tpu.matmul %23, %25, %cst_16 {dimension_numbers = #tpu.dot_dimension_numbers<[1], [0], [0], [1], [0, 0, 1, 1], [], []>} : vector<80x168xbf16>, vector<168x160xbf16>, vector<80x160xf32> -> vector<80x160xf32>
    %27 = arith.addf %22, %26 : vector<80x160xf32>
    %28 = vector.extract_strided_slice %18 {offsets = [16, 0], sizes = [80, 168], strides = [1, 1]} : vector<112x168xbf16> to vector<80x168xbf16>
    %c2 = arith.constant 2 : index
    %c0_17 = arith.constant 0 : index
    %c0_18 = arith.constant 0 : index
    %29 = vector.load %arg4[%c2, %c0_17, %c0_18] : memref<5x168x160xbf16, #tpu.memory_space<vmem>>, vector<1x168x160xbf16>
    %30 = vector.shape_cast %29 : vector<1x168x160xbf16> to vector<168x160xbf16>
    %cst_19 = arith.constant dense<0.000000e+00> : vector<80x160xf32>
    %31 = tpu.matmul %28, %30, %cst_19 {dimension_numbers = #tpu.dot_dimension_numbers<[1], [0], [0], [1], [0, 0, 1, 1], [], []>} : vector<80x168xbf16>, vector<168x160xbf16>, vector<80x160xf32> -> vector<80x160xf32>
    %32 = arith.addf %27, %31 : vector<80x160xf32>
    %33 = vector.extract_strided_slice %18 {offsets = [24, 0], sizes = [80, 168], strides = [1, 1]} : vector<112x168xbf16> to vector<80x168xbf16>
    %c3 = arith.constant 3 : index
    %c0_20 = arith.constant 0 : index
    %c0_21 = arith.constant 0 : index
    %34 = vector.load %arg4[%c3, %c0_20, %c0_21] : memref<5x168x160xbf16, #tpu.memory_space<vmem>>, vector<1x168x160xbf16>
    %35 = vector.shape_cast %34 : vector<1x168x160xbf16> to vector<168x160xbf16>
    %cst_22 = arith.constant dense<0.000000e+00> : vector<80x160xf32>
    %36 = tpu.matmul %33, %35, %cst_22 {dimension_numbers = #tpu.dot_dimension_numbers<[1], [0], [0], [1], [0, 0, 1, 1], [], []>} : vector<80x168xbf16>, vector<168x160xbf16>, vector<80x160xf32> -> vector<80x160xf32>
    %37 = arith.addf %32, %36 : vector<80x160xf32>
    %38 = vector.extract_strided_slice %18 {offsets = [32, 0], sizes = [80, 168], strides = [1, 1]} : vector<112x168xbf16> to vector<80x168xbf16>
    %c4 = arith.constant 4 : index
    %c0_23 = arith.constant 0 : index
    %c0_24 = arith.constant 0 : index
    %39 = vector.load %arg4[%c4, %c0_23, %c0_24] : memref<5x168x160xbf16, #tpu.memory_space<vmem>>, vector<1x168x160xbf16>
    %40 = vector.shape_cast %39 : vector<1x168x160xbf16> to vector<168x160xbf16>
    %cst_25 = arith.constant dense<0.000000e+00> : vector<80x160xf32>
    %41 = tpu.matmul %38, %40, %cst_25 {dimension_numbers = #tpu.dot_dimension_numbers<[1], [0], [0], [1], [0, 0, 1, 1], [], []>} : vector<80x168xbf16>, vector<168x160xbf16>, vector<80x160xf32> -> vector<80x160xf32>
    %42 = arith.addf %37, %41 : vector<80x160xf32>
    %43 = vector.broadcast %2 : vector<1x160xf32> to vector<80x160xf32>
    %44 = arith.addf %42, %43 : vector<80x160xf32>
    %45 = arith.negf %44 : vector<80x160xf32>
    %46 = math.exp %45 : vector<80x160xf32>
    %cst_26 = arith.constant 1.000000e+00 : f32
    %47 = vector.broadcast %cst_26 : f32 to vector<80x160xf32>
    %48 = arith.addf %47, %46 : vector<80x160xf32>
    %49 = arith.divf %47, %48 : vector<80x160xf32>
    %c0_27 = arith.constant 0 : index
    %c0_28 = arith.constant 0 : index
    %50 = vector.load %arg5[%c0_27, %c0_28] : memref<40x80xbf16, #tpu.memory_space<vmem>>, vector<40x80xbf16>
    %51 = arith.truncf %49 : vector<80x160xf32> to vector<80x160xbf16>
    %cst_29 = arith.constant dense<0.000000e+00> : vector<40x160xf32>
    %52 = tpu.matmul %50, %51, %cst_29 {dimension_numbers = #tpu.dot_dimension_numbers<[1], [0], [0], [1], [0, 0, 1, 1], [], []>} : vector<40x80xbf16>, vector<80x160xbf16>, vector<40x160xf32> -> vector<40x160xf32>
    %53 = arith.truncf %52 : vector<40x160xf32> to vector<40x160xbf16>
    %54 = vector.extract_strided_slice %53 {offsets = [0, 0], sizes = [8, 160], strides = [1, 1]} : vector<40x160xbf16> to vector<8x160xbf16>
    %c0_30 = arith.constant 0 : index
    %c0_31 = arith.constant 0 : index
    %c0_32 = arith.constant 0 : index
    %55 = vector.load %arg6[%c0_30, %c0_31, %c0_32] : memref<5x160x128xbf16, #tpu.memory_space<vmem>>, vector<1x160x128xbf16>
    %56 = vector.shape_cast %55 : vector<1x160x128xbf16> to vector<160x128xbf16>
    %cst_33 = arith.constant dense<0.000000e+00> : vector<8x128xf32>
    %57 = tpu.matmul %54, %56, %cst_33 {dimension_numbers = #tpu.dot_dimension_numbers<[1], [0], [0], [1], [0, 0, 1, 1], [], []>} : vector<8x160xbf16>, vector<160x128xbf16>, vector<8x128xf32> -> vector<8x128xf32>
    %58 = vector.extract_strided_slice %53 {offsets = [8, 0], sizes = [8, 160], strides = [1, 1]} : vector<40x160xbf16> to vector<8x160xbf16>
    %c1_34 = arith.constant 1 : index
    %c0_35 = arith.constant 0 : index
    %c0_36 = arith.constant 0 : index
    %59 = vector.load %arg6[%c1_34, %c0_35, %c0_36] : memref<5x160x128xbf16, #tpu.memory_space<vmem>>, vector<1x160x128xbf16>
    %60 = vector.shape_cast %59 : vector<1x160x128xbf16> to vector<160x128xbf16>
    %cst_37 = arith.constant dense<0.000000e+00> : vector<8x128xf32>
    %61 = tpu.matmul %58, %60, %cst_37 {dimension_numbers = #tpu.dot_dimension_numbers<[1], [0], [0], [1], [0, 0, 1, 1], [], []>} : vector<8x160xbf16>, vector<160x128xbf16>, vector<8x128xf32> -> vector<8x128xf32>
    %62 = arith.addf %57, %61 : vector<8x128xf32>
    %63 = vector.extract_strided_slice %53 {offsets = [16, 0], sizes = [8, 160], strides = [1, 1]} : vector<40x160xbf16> to vector<8x160xbf16>
    %c2_38 = arith.constant 2 : index
    %c0_39 = arith.constant 0 : index
    %c0_40 = arith.constant 0 : index
    %64 = vector.load %arg6[%c2_38, %c0_39, %c0_40] : memref<5x160x128xbf16, #tpu.memory_space<vmem>>, vector<1x160x128xbf16>
    %65 = vector.shape_cast %64 : vector<1x160x128xbf16> to vector<160x128xbf16>
    %cst_41 = arith.constant dense<0.000000e+00> : vector<8x128xf32>
    %66 = tpu.matmul %63, %65, %cst_41 {dimension_numbers = #tpu.dot_dimension_numbers<[1], [0], [0], [1], [0, 0, 1, 1], [], []>} : vector<8x160xbf16>, vector<160x128xbf16>, vector<8x128xf32> -> vector<8x128xf32>
    %67 = arith.addf %62, %66 : vector<8x128xf32>
    %68 = vector.extract_strided_slice %53 {offsets = [24, 0], sizes = [8, 160], strides = [1, 1]} : vector<40x160xbf16> to vector<8x160xbf16>
    %c3_42 = arith.constant 3 : index
    %c0_43 = arith.constant 0 : index
    %c0_44 = arith.constant 0 : index
    %69 = vector.load %arg6[%c3_42, %c0_43, %c0_44] : memref<5x160x128xbf16, #tpu.memory_space<vmem>>, vector<1x160x128xbf16>
    %70 = vector.shape_cast %69 : vector<1x160x128xbf16> to vector<160x128xbf16>
    %cst_45 = arith.constant dense<0.000000e+00> : vector<8x128xf32>
    %71 = tpu.matmul %68, %70, %cst_45 {dimension_numbers = #tpu.dot_dimension_numbers<[1], [0], [0], [1], [0, 0, 1, 1], [], []>} : vector<8x160xbf16>, vector<160x128xbf16>, vector<8x128xf32> -> vector<8x128xf32>
    %72 = arith.addf %67, %71 : vector<8x128xf32>
    %73 = vector.extract_strided_slice %53 {offsets = [32, 0], sizes = [8, 160], strides = [1, 1]} : vector<40x160xbf16> to vector<8x160xbf16>
    %c4_46 = arith.constant 4 : index
    %c0_47 = arith.constant 0 : index
    %c0_48 = arith.constant 0 : index
    %74 = vector.load %arg6[%c4_46, %c0_47, %c0_48] : memref<5x160x128xbf16, #tpu.memory_space<vmem>>, vector<1x160x128xbf16>
    %75 = vector.shape_cast %74 : vector<1x160x128xbf16> to vector<160x128xbf16>
    %cst_49 = arith.constant dense<0.000000e+00> : vector<8x128xf32>
    %76 = tpu.matmul %73, %75, %cst_49 {dimension_numbers = #tpu.dot_dimension_numbers<[1], [0], [0], [1], [0, 0, 1, 1], [], []>} : vector<8x160xbf16>, vector<160x128xbf16>, vector<8x128xf32> -> vector<8x128xf32>
    %77 = arith.addf %72, %76 : vector<8x128xf32>
    %78 = vector.broadcast %3 : vector<1x128xf32> to vector<8x128xf32>
    %79 = arith.addf %77, %78 : vector<8x128xf32>
    %c0_50 = arith.constant 0 : index
    %c0_51 = arith.constant 0 : index
    %c0_52 = arith.constant 0 : index
    %80 = vector.load %arg8[%c0_50, %c0_51, %c0_52] : memref<1x8x128xf32, #tpu.memory_space<vmem>>, vector<1x8x128xf32>
    %81 = vector.shape_cast %80 : vector<1x8x128xf32> to vector<8x128xf32>
    %82 = vector.shape_cast %79 : vector<8x128xf32> to vector<1x8x128xf32>
    tpu.vector_store %arg8[%c0_50, %c0_51, %c0_52], %82 {strides = array<i32>} : memref<1x8x128xf32, #tpu.memory_space<vmem>>, vector<1x8x128xf32>,
    return
  }
  func.func @transform_0(%arg0: i32) -> (i32, i32, i32) {
    %c0_i32 = arith.constant 0 : i32
    %c0_i32_0 = arith.constant 0 : i32
    %c0_i32_1 = arith.constant 0 : i32
    return %arg0, %c0_i32, %c0_i32_0 : i32, i32, i32
  }
  func.func @transform_1(%arg0: i32) -> (i32, i32) {
    %c0_i32 = arith.constant 0 : i32
    %c0_i32_0 = arith.constant 0 : i32
    %c0_i32_1 = arith.constant 0 : i32
    return %c0_i32, %c0_i32_0 : i32, i32
  }
  func.func @transform_2(%arg0: i32) -> (i32, i32) {
    %c0_i32 = arith.constant 0 : i32
    %c0_i32_0 = arith.constant 0 : i32
    %c0_i32_1 = arith.constant 0 : i32
    return %c0_i32, %c0_i32_0 : i32, i32
  }
  func.func @transform_3(%arg0: i32) -> (i32, i32, i32) {
    %c0_i32 = arith.constant 0 : i32
    %c0_i32_0 = arith.constant 0 : i32
    %c0_i32_1 = arith.constant 0 : i32
    %c0_i32_2 = arith.constant 0 : i32
    return %c0_i32, %c0_i32_0, %c0_i32_1 : i32, i32, i32
  }
  func.func @transform_4(%arg0: i32) -> (i32, i32) {
    %c0_i32 = arith.constant 0 : i32
    %c0_i32_0 = arith.constant 0 : i32
    %c0_i32_1 = arith.constant 0 : i32
    return %c0_i32, %c0_i32_0 : i32, i32
  }
  func.func @transform_5(%arg0: i32) -> (i32, i32, i32) {
    %c0_i32 = arith.constant 0 : i32
    %c0_i32_0 = arith.constant 0 : i32
    %c0_i32_1 = arith.constant 0 : i32
    %c0_i32_2 = arith.constant 0 : i32
    return %c0_i32, %c0_i32_0, %c0_i32_1 : i32, i32, i32
  }
  func.func @transform_6(%arg0: i32) -> (i32, i32) {
    %c0_i32 = arith.constant 0 : i32
    %c0_i32_0 = arith.constant 0 : i32
    %c0_i32_1 = arith.constant 0 : i32
    return %c0_i32, %c0_i32_0 : i32, i32
  }
  func.func @transform_7(%arg0: i32) -> (i32, i32, i32) {
    %c0_i32 = arith.constant 0 : i32
    %c0_i32_0 = arith.constant 0 : i32
    %c0_i32_1 = arith.constant 0 : i32
    return %arg0, %c0_i32, %c0_i32_0 : i32, i32, i32
  }
}

</mosaic_0001>

<llo_original>
// kernel: lenet_forward.1
$region0: #{lenet_forward.1}
  #allocation0 [shape = 'u32[]', space=smem, size = 0x4, offset = 0x4, fixed_abs, tag = 'smem constant byte address 0x4 - core index']
  #allocation1 [shape = 'u32[144,128]{1,0:T(1,128)}', space=vmem, size = 0x12000, scoped, tag = 'internal scratch']
  %s0 = inlined_call_operand.vmem [shape: bf16[2,224,160], index: 0, kind: input, shape index: {}]
  %s1 = inlined_call_operand.vmem [shape: bf16[160,168], index: 1, kind: input, shape index: {}]
  %s2 = inlined_call_operand.vmem [shape: bf16[112,224], index: 2, kind: input, shape index: {}]
  %s3 = inlined_call_operand.vmem [shape: bf16[5,168,160], index: 3, kind: input, shape index: {}]
  %s4 = inlined_call_operand.vmem [shape: bf16[40,80], index: 4, kind: input, shape index: {}]
  %s5 = inlined_call_operand.vmem [shape: bf16[5,160,128], index: 5, kind: input, shape index: {}]
  %s6 = inlined_call_operand.vmem [shape: f32[3,256], index: 6, kind: input, shape index: {}]
  %s7 = inlined_call_operand.hbm [shape: f32[2,8,128], index: 7, kind: output, shape index: {}]
  %s8 = sld [smem:[#allocation0]]
  $region61: #{lenet_forward.1} parent=0
    _
  %s10 = ssub.s32 1, %s8
  %s11 = scalar_select 0, %s10, %s8
  $region1: #{lenet_forward.1} parent=0
    #allocation2 [shape = 'u8[8192]{0}', space=vmem, size = 0x2000, scoped, tag = 'output window, operand 0']
    #allocation3 [shape = 's32[2]{0}', space=sflag, size = 0x8, scoped, tag = 'scoped memory for lenet_forward.1']
    %12 = vsyncpa [#allocation3], 0
    %s13 = scalar_lea.sflag [#allocation3], 1
    %14 = vsyncpa %s13, 0
    loop: start=0, step=1, limit=4
    $region2: #{lenet_forward.1} parent=1 // loop_pre_header
      _
    $region3: #{lenet_forward.1} parent=1 // loop_header
      %s16 = sphi 0, %s20
      %p17 = scmp.ge.s32.totalorder %s16, 4
      %s26 = sphi 0, %s28
      %s29 = sphi 0, %s26
      %s30 = sphi 0, %s29
      %s46 = sphi 0, %s30
      %s50 = sphi 0, %s50
      %s52 = sphi 0, %s50
      %s53 = sphi 0, %s52
      %s67 = sphi 0, %s53
      %s71 = sphi 0, %s71
      %s73 = sphi 0, %s71
      %s74 = sphi 0, %s73
      %s88 = sphi 0, %s74
      %s92 = sphi 0, %s92
      %s94 = sphi 0, %s92
      %s95 = sphi 0, %s94
      %s109 = sphi 0, %s95
      %s113 = sphi 0, %s113
      %s115 = sphi 0, %s113
      %s116 = sphi 0, %s115
      %s130 = sphi 0, %s116
      %s134 = sphi 0, %s134
      %s136 = sphi 0, %s134
      %s137 = sphi 0, %s136
      %s151 = sphi 0, %s137
      %s155 = sphi 0, %s155
      %s157 = sphi 0, %s155
      %s158 = sphi 0, %s157
      %s172 = sphi 0, %s158
      %s178 = sphi 0, %s180
      %s181 = sphi 0, %s178
      %s182 = sphi 0, %s181
      %s198 = sphi 0, %s182
    $region4: #{lenet_forward.1} parent=1 // loop_header_branch
      %19 = sbr.rel (%p17) target = $region8
    $region5: #{lenet_forward.1} parent=1 // loop_body
      %s21 = ssub.s32 %s16, 1
      %s22 = ssub.s32 %s16, 2
      %s23 = sadd.s32 %s16, 1
      %s24 = ssub.s32 %s16, %s23
      %p25 = scmp.eq.s32.totalorder %s24, 0
      %s27 = sadd.s32 %s26, 1
      %s28 = scalar_select %p25, %s26, %s27
      %p31 = pneg %p25
      %p32 = scmp.eq.s32.totalorder %s16, 1
      %p33 = por %p31, %p32
      %p34 = scmp.ne.s32.totalorder %s26, %s29
      %p35 = scmp.eq.s32.totalorder %s16, 0
      %p36 = por %p34, %p35
      %p37 = scmp.ne.s32.totalorder %s26, %s29
      %p38 = scmp.eq.s32.totalorder %s21, 1
      %p39 = por %p37, %p38
      %p40 = scmp.ne.s32.totalorder %s29, %s30
      %p41 = scmp.eq.s32.totalorder %s21, 0
      %p42 = por %p40, %p41
      %p43 = scmp.ne.s32.totalorder %s29, %s30
      %p44 = scmp.eq.s32.totalorder %s22, 1
      %p45 = por %p43, %p44
      %p47 = scmp.ne.s32.totalorder %s30, %s46
      %p48 = scmp.eq.s32.totalorder %s22, 0
      %p49 = por %p47, %p48
      %s51 = sadd.s32 %s50, 1
      %p54 = scmp.eq.s32.totalorder %s16, 1
      %p55 = scmp.ne.s32.totalorder %s50, %s52
      %p56 = scmp.eq.s32.totalorder %s16, 0
      %p57 = por %p55, %p56
      %p58 = scmp.ne.s32.totalorder %s50, %s52
      %p59 = scmp.eq.s32.totalorder %s21, 1
      %p60 = por %p58, %p59
      %p61 = scmp.ne.s32.totalorder %s52, %s53
      %p62 = scmp.eq.s32.totalorder %s21, 0
      %p63 = por %p61, %p62
      %p64 = scmp.ne.s32.totalorder %s52, %s53
      %p65 = scmp.eq.s32.totalorder %s22, 1
      %p66 = por %p64, %p65
      %p68 = scmp.ne.s32.totalorder %s53, %s67
      %p69 = scmp.eq.s32.totalorder %s22, 0
      %p70 = por %p68, %p69
      %s72 = sadd.s32 %s71, 1
      %p75 = scmp.eq.s32.totalorder %s16, 1
      %p76 = scmp.ne.s32.totalorder %s71, %s73
      %p77 = scmp.eq.s32.totalorder %s16, 0
      %p78 = por %p76, %p77
      %p79 = scmp.ne.s32.totalorder %s71, %s73
      %p80 = scmp.eq.s32.totalorder %s21, 1
      %p81 = por %p79, %p80
      %p82 = scmp.ne.s32.totalorder %s73, %s74
      %p83 = scmp.eq.s32.totalorder %s21, 0
      %p84 = por %p82, %p83
      %p85 = scmp.ne.s32.totalorder %s73, %s74
      %p86 = scmp.eq.s32.totalorder %s22, 1
      %p87 = por %p85, %p86
      %p89 = scmp.ne.s32.totalorder %s74, %s88
      %p90 = scmp.eq.s32.totalorder %s22, 0
      %p91 = por %p89, %p90
      %s93 = sadd.s32 %s92, 1
      %p96 = scmp.eq.s32.totalorder %s16, 1
      %p97 = scmp.ne.s32.totalorder %s92, %s94
      %p98 = scmp.eq.s32.totalorder %s16, 0
      %p99 = por %p97, %p98
      %p100 = scmp.ne.s32.totalorder %s92, %s94
      %p101 = scmp.eq.s32.totalorder %s21, 1
      %p102 = por %p100, %p101
      %p103 = scmp.ne.s32.totalorder %s94, %s95
      %p104 = scmp.eq.s32.totalorder %s21, 0
      %p105 = por %p103, %p104
      %p106 = scmp.ne.s32.totalorder %s94, %s95
      %p107 = scmp.eq.s32.totalorder %s22, 1
      %p108 = por %p106, %p107
      %p110 = scmp.ne.s32.totalorder %s95, %s109
      %p111 = scmp.eq.s32.totalorder %s22, 0
      %p112 = por %p110, %p111
      %s114 = sadd.s32 %s113, 1
      %p117 = scmp.eq.s32.totalorder %s16, 1
      %p118 = scmp.ne.s32.totalorder %s113, %s115
      %p119 = scmp.eq.s32.totalorder %s16, 0
      %p120 = por %p118, %p119
      %p121 = scmp.ne.s32.totalorder %s113, %s115
      %p122 = scmp.eq.s32.totalorder %s21, 1
      %p123 = por %p121, %p122
      %p124 = scmp.ne.s32.totalorder %s115, %s116
      %p125 = scmp.eq.s32.totalorder %s21, 0
      %p126 = por %p124, %p125
      %p127 = scmp.ne.s32.totalorder %s115, %s116
      %p128 = scmp.eq.s32.totalorder %s22, 1
      %p129 = por %p127, %p128
      %p131 = scmp.ne.s32.totalorder %s116, %s130
      %p132 = scmp.eq.s32.totalorder %s22, 0
      %p133 = por %p131, %p132
      %s135 = sadd.s32 %s134, 1
      %p138 = scmp.eq.s32.totalorder %s16, 1
      %p139 = scmp.ne.s32.totalorder %s134, %s136
      %p140 = scmp.eq.s32.totalorder %s16, 0
      %p141 = por %p139, %p140
      %p142 = scmp.ne.s32.totalorder %s134, %s136
      %p143 = scmp.eq.s32.totalorder %s21, 1
      %p144 = por %p142, %p143
      %p145 = scmp.ne.s32.totalorder %s136, %s137
      %p146 = scmp.eq.s32.totalorder %s21, 0
      %p147 = por %p145, %p146
      %p148 = scmp.ne.s32.totalorder %s136, %s137
      %p149 = scmp.eq.s32.totalorder %s22, 1
      %p150 = por %p148, %p149
      %p152 = scmp.ne.s32.totalorder %s137, %s151
      %p153 = scmp.eq.s32.totalorder %s22, 0
      %p154 = por %p152, %p153
      %s156 = sadd.s32 %s155, 1
      %p159 = scmp.eq.s32.totalorder %s16, 1
      %p160 = scmp.ne.s32.totalorder %s155, %s157
      %p161 = scmp.eq.s32.totalorder %s16, 0
      %p162 = por %p160, %p161
      %p163 = scmp.ne.s32.totalorder %s155, %s157
      %p164 = scmp.eq.s32.totalorder %s21, 1
      %p165 = por %p163, %p164
      %p166 = scmp.ne.s32.totalorder %s157, %s158
      %p167 = scmp.eq.s32.totalorder %s21, 0
      %p168 = por %p166, %p167
      %p169 = scmp.ne.s32.totalorder %s157, %s158
      %p170 = scmp.eq.s32.totalorder %s22, 1
      %p171 = por %p169, %p170
      %p173 = scmp.ne.s32.totalorder %s158, %s172
      %p174 = scmp.eq.s32.totalorder %s22, 0
      %p175 = por %p173, %p174
      %s176 = ssub.s32 %s16, %s23
      %p177 = scmp.eq.s32.totalorder %s176, 0
      %s179 = sadd.s32 %s178, 1
      %s180 = scalar_select %p177, %s178, %s179
      %p183 = pneg %p177
      %p184 = scmp.eq.s32.totalorder %s16, 1
      %p185 = por %p183, %p184
      %p186 = scmp.ne.s32.totalorder %s178, %s181
      %p187 = scmp.eq.s32.totalorder %s16, 0
      %p188 = por %p186, %p187
      %p189 = scmp.ne.s32.totalorder %s178, %s181
      %p190 = scmp.eq.s32.totalorder %s21, 1
      %p191 = por %p189, %p190
      %p192 = scmp.ne.s32.totalorder %s181, %s182
      %p193 = scmp.eq.s32.totalorder %s21, 0
      %p194 = por %p192, %p193
      %p195 = scmp.ne.s32.totalorder %s181, %s182
      %p196 = scmp.eq.s32.totalorder %s22, 1
      %p197 = por %p195, %p196
      %p199 = scmp.ne.s32.totalorder %s182, %s198
      %p200 = scmp.eq.s32.totalorder %s22, 0
      %p201 = por %p199, %p200
      %p202 = scmp.le.s32.totalorder 1, %s16
      %p203 = scmp.lt.s32.totalorder %s16, 3
      %p204 = pnand %p202, %p203
      %p205 = pneg %p204
      // Predicated region
      $region9: #{lenet_forward.1} parent=5 // pred_check
        _
      $region10: #{lenet_forward.1} parent=5 // pred_check_branch
        %207 = sbr.rel (%p204) target = $region12
      $region11: #{lenet_forward.1} parent=5 // pred_region
        %s208 = ssub.s32 %s16, 1
        // Predicated region
        $region13: #{lenet_forward.1} parent=11 // pred_check
          %p209 = pneg %p63
        $region14: #{lenet_forward.1} parent=11 // pred_check_branch
          %211 = sbr.rel (%p209) target = $region16
        $region15: #{lenet_forward.1} parent=11 // pred_region
          _
        $region16: #{lenet_forward.1} parent=11 // pred_fallthru
          _
        // Predicated region
        $region17: #{lenet_forward.1} parent=11 // pred_check
          %p212 = pneg %p84
        $region18: #{lenet_forward.1} parent=11 // pred_check_branch
          %214 = sbr.rel (%p212) target = $region20
        $region19: #{lenet_forward.1} parent=11 // pred_region
          _
        $region20: #{lenet_forward.1} parent=11 // pred_fallthru
          _
        // Predicated region
        $region21: #{lenet_forward.1} parent=11 // pred_check
          %p215 = pneg %p105
        $region22: #{lenet_forward.1} parent=11 // pred_check_branch
          %217 = sbr.rel (%p215) target = $region24
        $region23: #{lenet_forward.1} parent=11 // pred_region
          _
        $region24: #{lenet_forward.1} parent=11 // pred_fallthru
          _
        // Predicated region
        $region25: #{lenet_forward.1} parent=11 // pred_check
          %p218 = pneg %p126
        $region26: #{lenet_forward.1} parent=11 // pred_check_branch
          %220 = sbr.rel (%p218) target = $region28
        $region27: #{lenet_forward.1} parent=11 // pred_region
          _
        $region28: #{lenet_forward.1} parent=11 // pred_fallthru
          _
        // Predicated region
        $region29: #{lenet_forward.1} parent=11 // pred_check
          %p221 = pneg %p147
        $region30: #{lenet_forward.1} parent=11 // pred_check_branch
          %223 = sbr.rel (%p221) target = $region32
        $region31: #{lenet_forward.1} parent=11 // pred_region
          _
        $region32: #{lenet_forward.1} parent=11 // pred_fallthru
          _
        // Predicated region
        $region33: #{lenet_forward.1} parent=11 // pred_check
          %p224 = pneg %p168
        $region34: #{lenet_forward.1} parent=11 // pred_check_branch
          %226 = sbr.rel (%p224) target = $region36
        $region35: #{lenet_forward.1} parent=11 // pred_region
          _
        $region36: #{lenet_forward.1} parent=11 // pred_fallthru
          _
      $region12: #{lenet_forward.1} parent=5 // pred_fallthru
        _
      %p227 = scmp.lt.s32.totalorder %s16, 2
      // Predicated region
      $region37: #{lenet_forward.1} parent=5 // pred_check
        %p228 = pneg %p227
      $region38: #{lenet_forward.1} parent=5 // pred_check_branch
        %230 = sbr.rel (%p228) target = $region40
      $region39: #{lenet_forward.1} parent=5 // pred_region
        // Predicated region
        $region41: #{lenet_forward.1} parent=39 // pred_check
          %p231 = pneg %p36
        $region42: #{lenet_forward.1} parent=39 // pred_check_branch
          %233 = sbr.rel (%p231) target = $region44
        $region43: #{lenet_forward.1} parent=39 // pred_region
          %p234 = scmp.lt.s32.totalorder %s16, 1
          %s235 = scalar_select %p234, %s16, 1
          %s236 = smul.addr %s235, 56
          %s237 = smul.addr %s236, 4
          %s238 = scalar_lea.vmem %s0, %s237
        $region44: #{lenet_forward.1} parent=39 // pred_fallthru
          _
      $region40: #{lenet_forward.1} parent=5 // pred_fallthru
        _
      %p239 = scmp.le.s32.totalorder 1, %s16
      %p240 = scmp.lt.s32.totalorder %s16, 3
      %p241 = pnand %p239, %p240
      %p242 = pneg %p241
      // Predicated region
      $region45: #{lenet_forward.1} parent=5 // pred_check
        _
      $region46: #{lenet_forward.1} parent=5 // pred_check_branch
        %244 = sbr.rel (%p241) target = $region48
      $region47: #{lenet_forward.1} parent=5 // pred_region
        %s245 = ssub.s32 %s16, 1
        %p246 = scmp.lt.s32.totalorder %s21, 1
        %s247 = scalar_select %p246, %s21, 1
        %s248 = smul.addr %s247, 56
        %s249 = smul.addr %s248, 4
        %s250 = scalar_lea.vmem %s0, %s249
        %p251 = pneg %p42
        %p252 = pneg %p39
        %p253 = pneg %p63
        %p254 = pneg %p60
        %p255 = pneg %p84
        %p256 = pneg %p81
        %p257 = pneg %p105
        %p258 = pneg %p102
        %p259 = pneg %p126
        %p260 = pneg %p123
        %p261 = pneg %p147
        %p262 = pneg %p144
        %p263 = pneg %p168
        %p264 = pneg %p165
        %p265 = pneg %p194
        %p266 = pneg %p191
        %s267 = sand.u32 %s181, 1
        %s268 = scalar_lea.sflag [#allocation3], %s267
        %s269 = sand.u32 %s181, 1
        %s270 = smul.addr %s269, 8
        %s271 = scalar_lea.vmem [#allocation2], %s270
        %p272 = scmp.lt.s32.totalorder %s21, 1
        %s273 = scalar_select %p272, %s21, 1
        %s274 = smul.addr %s273, 56
        %s275 = smul.addr %s274, 4
        %s276 = scalar_lea.vmem %s0, %s275
        %v278 = vld [vmem:[%s6] sm:$0x77]
        %v279 = vld [vmem:[%s276] sm:$0xff]
        %v280 = vld [vmem:[%s276 + $0x8] sm:$0xff]
        %v281 = vld [vmem:[%s276 + $0x10] sm:$0xff]
        %v282 = vld [vmem:[%s276 + $0x18] sm:$0xff]
        %v283 = vld [vmem:[%s276 + $0x20] sm:$0xff]
        %v284 = vld [vmem:[%s276 + $0x28] sm:$0xff]
        %v285 = vld [vmem:[%s276 + $0x30] sm:$0xff]
        %v286 = vld [vmem:[%s276 + $0x38] sm:$0xff]
        %v287 = vld [vmem:[%s276 + $0x40] sm:$0xff]
        %v288 = vld [vmem:[%s276 + $0x48] sm:$0xff]
        %v289 = vld [vmem:[%s276 + $0x50] sm:$0xff]
        %v290 = vld [vmem:[%s276 + $0x58] sm:$0xff]
        %v291 = vld [vmem:[%s276 + $0x60] sm:$0xff]
        %v292 = vld [vmem:[%s276 + $0x68] sm:$0xff]
        %v293 = vld [vmem:[%s276 + $0x70] sm:$0xff]
        %v294 = vld [vmem:[%s276 + $0x78] sm:$0xff]
        %v295 = vld [vmem:[%s276 + $0x80] sm:$0xff]
        %v296 = vld [vmem:[%s276 + $0x88] sm:$0xff]
        %v297 = vld [vmem:[%s276 + $0x90] sm:$0xff]
        %v298 = vld [vmem:[%s276 + $0x98] sm:$0xff]
        %v299 = vld [vmem:[%s276 + $0xa0] sm:$0xff]
        %v300 = vld [vmem:[%s276 + $0xa8] sm:$0xff]
        %v301 = vld [vmem:[%s276 + $0xb0] sm:$0xff]
        %v302 = vld [vmem:[%s276 + $0xb8] sm:$0xff]
        %v303 = vld [vmem:[%s276 + $0xc0] sm:$0xff]
        %v304 = vld [vmem:[%s276 + $0xc8] sm:$0xff]
        %v305 = vld [vmem:[%s276 + $0xd0] sm:$0xff]
        %v306 = vld [vmem:[%s276 + $0xd8] sm:$0xff]
        %v307 = vld [vmem:[%s1] sm:$0xff]
        %v308 = vld [vmem:[%s1 + $0x8] sm:$0xff]
        %v309 = vld [vmem:[%s1 + $0x10] sm:$0xff]
        %v310 = vld [vmem:[%s1 + $0x18] sm:$0xff]
        %v311 = vld [vmem:[%s1 + $0x20] sm:$0xff]
        %v312 = vld [vmem:[%s1 + $0x28] sm:$0xff]
        %v313 = vld [vmem:[%s1 + $0x30] sm:$0xff]
        %v314 = vld [vmem:[%s1 + $0x38] sm:$0xff]
        %v315 = vld [vmem:[%s1 + $0x40] sm:$0xff]
        %v316 = vld [vmem:[%s1 + $0x48] sm:$0xff]
        %v317 = vld [vmem:[%s1 + $0x50] sm:$0xff]
        %v318 = vld [vmem:[%s1 + $0x58] sm:$0xff]
        %v319 = vld [vmem:[%s1 + $0x60] sm:$0xff]
        %v320 = vld [vmem:[%s1 + $0x68] sm:$0xff]
        %v321 = vld [vmem:[%s1 + $0x70] sm:$0xff]
        %v322 = vld [vmem:[%s1 + $0x78] sm:$0xff]
        %v323 = vld [vmem:[%s1 + $0x80] sm:$0xff]
        %v324 = vld [vmem:[%s1 + $0x88] sm:$0xff]
        %v325 = vld [vmem:[%s1 + $0x90] sm:$0xff]
        %v326 = vld [vmem:[%s1 + $0x98] sm:$0xff]
        %v328 = vlaneseq
        %v329 = vshrl.u32 %v328, 7
        %v330 = vsub.s32 0, %v329
        %v331 = vrot.slane %v278, %v330
        %v332 = vlaneseq
        %v333 = vshrl.u32 %v332, 7
        %v334 = vsub.s32 4, %v333
        %v335 = vrot.slane %v278, %v334
        %v338 = vlaneseq
        %v339 = vshrl.u32 %v338, 7
        %v340 = vsub.s32 0, %v339
        %v341 = vrot.slane %v331, %v340
        %v342 = vlaneseq
        %v343 = vshrl.u32 %v342, 7
        %v344 = vsub.s32 0, %v343
        %v345 = vrot.slane %v335, %v344
        %v374 = vunpack.c.l.b16 %v279
        %v375 = vunpack.c.h.b16 %v279
        %v376 = vunpack.c.l.b16 %v280
        %v377 = vunpack.c.h.b16 %v280
        %v378 = vunpack.c.l.b16 %v281
        %v379 = vunpack.c.h.b16 %v281
        %v380 = vunpack.c.l.b16 %v282
        %v381 = vunpack.c.h.b16 %v282
        %v382 = vunpack.c.l.b16 %v283
        %v383 = vunpack.c.h.b16 %v283
        %v384 = vunpack.c.l.b16 %v284
        %v385 = vunpack.c.h.b16 %v284
        %v386 = vunpack.c.l.b16 %v285
        %v387 = vunpack.c.h.b16 %v285
        %v388 = vunpack.c.l.b16 %v286
        %v389 = vunpack.c.h.b16 %v286
        %v390 = vunpack.c.l.b16 %v287
        %v391 = vunpack.c.h.b16 %v287
        %v392 = vunpack.c.l.b16 %v288
        %v393 = vunpack.c.h.b16 %v288
        %v394 = vunpack.c.l.b16 %v289
        %v395 = vunpack.c.h.b16 %v289
        %v396 = vunpack.c.l.b16 %v290
        %v397 = vunpack.c.h.b16 %v290
        %v398 = vunpack.c.l.b16 %v291
        %v399 = vunpack.c.h.b16 %v291
        %v400 = vunpack.c.l.b16 %v292
        %v401 = vunpack.c.h.b16 %v292
        %v402 = vunpack.c.l.b16 %v293
        %v403 = vunpack.c.h.b16 %v293
        %v404 = vunpack.c.l.b16 %v294
        %v405 = vunpack.c.h.b16 %v294
        %v406 = vunpack.c.l.b16 %v295
        %v407 = vunpack.c.h.b16 %v295
        %v408 = vunpack.c.l.b16 %v296
        %v409 = vunpack.c.h.b16 %v296
        %v410 = vunpack.c.l.b16 %v297
        %v411 = vunpack.c.h.b16 %v297
        %v412 = vunpack.c.l.b16 %v298
        %v413 = vunpack.c.h.b16 %v298
        %v414 = vunpack.c.l.b16 %v299
        %v415 = vunpack.c.h.b16 %v299
        %v416 = vunpack.c.l.b16 %v300
        %v417 = vunpack.c.h.b16 %v300
        %v418 = vunpack.c.l.b16 %v301
        %v419 = vunpack.c.h.b16 %v301
        %v420 = vunpack.c.l.b16 %v302
        %v421 = vunpack.c.h.b16 %v302
        %v422 = vunpack.c.l.b16 %v303
        %v423 = vunpack.c.h.b16 %v303
        %v424 = vunpack.c.l.b16 %v304
        %v425 = vunpack.c.h.b16 %v304
        %v426 = vunpack.c.l.b16 %v305
        %v427 = vunpack.c.h.b16 %v305
        %v428 = vunpack.c.l.b16 %v306
        %v429 = vunpack.c.h.b16 %v306
        %v430 = vpack.c.b16 %v376, %v374
        %v431 = vpack.c.b16 %v377, %v375
        %v432 = vpack.c.b16 %v380, %v378
        %v433 = vpack.c.b16 %v381, %v379
        %v434 = vpack.c.b16 %v384, %v382
        %v435 = vpack.c.b16 %v385, %v383
        %v436 = vpack.c.b16 %v388, %v386
        %v437 = vpack.c.b16 %v389, %v387
        %v438 = vpack.c.b16 %v392, %v390
        %v439 = vpack.c.b16 %v393, %v391
        %v440 = vpack.c.b16 %v396, %v394
        %v441 = vpack.c.b16 %v397, %v395
        %v442 = vpack.c.b16 %v400, %v398
        %v443 = vpack.c.b16 %v401, %v399
        %v444 = vpack.c.b16 %v404, %v402
        %v445 = vpack.c.b16 %v405, %v403
        %v446 = vpack.c.b16 %v408, %v406
        %v447 = vpack.c.b16 %v409, %v407
        %v448 = vpack.c.b16 %v412, %v410
        %v449 = vpack.c.b16 %v413, %v411
        %v450 = vpack.c.b16 %v416, %v414
        %v451 = vpack.c.b16 %v417, %v415
        %v452 = vpack.c.b16 %v420, %v418
        %v453 = vpack.c.b16 %v421, %v419
        %v454 = vpack.c.b16 %v424, %v422
        %v455 = vpack.c.b16 %v425, %v423
        %v456 = vpack.c.b16 %v428, %v426
        %v457 = vpack.c.b16 %v429, %v427
        %v492 = vunpack.c.l.b16 %v307
        %v493 = vunpack.c.h.b16 %v307
        %v494 = vunpack.c.l.b16 %v308
        %v495 = vunpack.c.h.b16 %v308
        %v496 = vunpack.c.l.b16 %v309
        %v497 = vunpack.c.h.b16 %v309
        %v498 = vunpack.c.l.b16 %v310
        %v499 = vunpack.c.h.b16 %v310
        %v500 = vunpack.c.l.b16 %v311
        %v501 = vunpack.c.h.b16 %v311
        %v502 = vunpack.c.l.b16 %v312
        %v503 = vunpack.c.h.b16 %v312
        %v504 = vunpack.c.l.b16 %v313
        %v505 = vunpack.c.h.b16 %v313
        %v506 = vunpack.c.l.b16 %v314
        %v507 = vunpack.c.h.b16 %v314
        %v508 = vunpack.c.l.b16 %v315
        %v509 = vunpack.c.h.b16 %v315
        %v510 = vunpack.c.l.b16 %v316
        %v511 = vunpack.c.h.b16 %v316
        %v512 = vunpack.c.l.b16 %v317
        %v513 = vunpack.c.h.b16 %v317
        %v514 = vunpack.c.l.b16 %v318
        %v515 = vunpack.c.h.b16 %v318
        %v516 = vunpack.c.l.b16 %v319
        %v517 = vunpack.c.h.b16 %v319
        %v518 = vunpack.c.l.b16 %v320
        %v519 = vunpack.c.h.b16 %v320
        %v520 = vunpack.c.l.b16 %v321
        %v521 = vunpack.c.h.b16 %v321
        %v522 = vunpack.c.l.b16 %v322
        %v523 = vunpack.c.h.b16 %v322
        %v524 = vunpack.c.l.b16 %v323
        %v525 = vunpack.c.h.b16 %v323
        %v526 = vunpack.c.l.b16 %v324
        %v527 = vunpack.c.h.b16 %v324
        %v528 = vunpack.c.l.b16 %v325
        %v529 = vunpack.c.h.b16 %v325
        %v530 = vunpack.c.l.b16 %v326
        %v531 = vunpack.c.h.b16 %v326
        %v532 = vpack.c.b16 %v494, %v492
        %v533 = vpack.c.b16 %v495, %v493
        %v534 = vpack.c.b16 %v498, %v496
        %v535 = vpack.c.b16 %v499, %v497
        %v536 = vpack.c.b16 %v502, %v500
        %v537 = vpack.c.b16 %v503, %v501
        %v538 = vpack.c.b16 %v506, %v504
        %v539 = vpack.c.b16 %v507, %v505
        %v540 = vpack.c.b16 %v510, %v508
        %v541 = vpack.c.b16 %v511, %v509
        %v542 = vpack.c.b16 %v514, %v512
        %v543 = vpack.c.b16 %v515, %v513
        %v544 = vpack.c.b16 %v518, %v516
        %v545 = vpack.c.b16 %v519, %v517
        %v546 = vpack.c.b16 %v522, %v520
        %v547 = vpack.c.b16 %v523, %v521
        %v548 = vpack.c.b16 %v526, %v524
        %v549 = vpack.c.b16 %v527, %v525
        %v550 = vpack.c.b16 %v530, %v528
        %v551 = vpack.c.b16 %v531, %v529
        %vm572 = vcmask 261120
        %v574 = vsel %vm572, %v431, 0
        %v577 = vsel %vm572, %v433, 0
        %v580 = vsel %vm572, %v435, 0
        %v583 = vsel %vm572, %v437, 0
        %v586 = vsel %vm572, %v439, 0
        %v589 = vsel %vm572, %v441, 0
        %v592 = vsel %vm572, %v443, 0
        %v595 = vsel %vm572, %v445, 0
        %v598 = vsel %vm572, %v447, 0
        %v601 = vsel %vm572, %v449, 0
        %v604 = vsel %vm572, %v451, 0
        %v607 = vsel %vm572, %v453, 0
        %v610 = vsel %vm572, %v455, 0
        %v613 = vsel %vm572, %v457, 0
        %615 = vmatprep.subr.bf16.mxu0 %v533
        %616 = vmatpush1.bf16.msra.mxu0 %v532
        %617 = vmatprep.subr.bf16.mxu0 %v535
        %618 = vmatpush1.bf16.msra.mxu0 %v534
        %619 = vmatprep.subr.bf16.mxu0 %v537
        %620 = vmatpush1.bf16.msra.mxu0 %v536
        %621 = vmatprep.subr.bf16.mxu0 %v539
        %622 = vmatpush1.bf16.msra.mxu0 %v538
        %623 = vmatprep.subr.bf16.mxu0 %v541
        %624 = vmatpush1.bf16.msra.mxu0 %v540
        %625 = vmatprep.subr.bf16.mxu0 %v543
        %626 = vmatpush1.bf16.msra.mxu0 %v542
        %627 = vmatprep.subr.bf16.mxu0 %v545
        %628 = vmatpush1.bf16.msra.mxu0 %v544
        %629 = vmatprep.subr.bf16.mxu0 %v547
        %630 = vmatpush1.bf16.msra.mxu0 %v546
        %631 = vmatprep.subr.bf16.mxu0 %v549
        %632 = vmatpush1.bf16.msra.mxu0 %v548
        %633 = vmatprep.subr.bf16.mxu0 %v551
        %634 = vmatpush1.bf16.msra.mxu0 %v550
        %635 = vmatprep.subr.bf16.mxu0 0
        %636 = vmatpush1.bf16.msra.mxu0 0
        %637 = vmatprep.subr.bf16.mxu0 0
        %638 = vmatpush1.bf16.msra.mxu0 0
        %639 = vmatprep.subr.bf16.mxu0 0
        %640 = vmatpush1.bf16.msra.mxu0 0
        %641 = vmatprep.subr.bf16.mxu0 0
        %642 = vmatpush1.bf16.msra.mxu0 0
        %643 = vmatprep.subr.bf16.mxu0 0
        %644 = vmatpush1.bf16.msra.mxu0 0
        %645 = vmatprep.subr.bf16.mxu0 0
        %646 = vmatpush1.bf16.msra.mxu0 0
        %647 = vmatprep.mubr.bf16.mxu0 %v574
        %648 = vmatmul.mubr.bf16.gmra.mrb[0].mxu0 %v430
        %v649 = vpop.f32.mrb[0].mxu0
        %v650 = vadd.f32 %v341, %v649
        %v651 = vpop.f32.mrb[0].mxu0
        %v652 = vadd.f32 %v345, %v651
        %v653 = vpop.f32.mrb[0].mxu0
        %v654 = vadd.f32 %v341, %v653
        %v655 = vpop.f32.mrb[0].mxu0
        %v656 = vadd.f32 %v345, %v655
        %657 = vmatprep.mubr.bf16.mxu0 %v577
        %658 = vmatmul.mubr.bf16.gmra.mrb[0].mxu0 %v432
        %v659 = vpop.f32.mrb[0].mxu0
        %v660 = vadd.f32 %v341, %v659
        %v661 = vpop.f32.mrb[0].mxu0
        %v662 = vadd.f32 %v345, %v661
        %v663 = vpop.f32.mrb[0].mxu0
        %v664 = vadd.f32 %v341, %v663
        %v665 = vpop.f32.mrb[0].mxu0
        %v666 = vadd.f32 %v345, %v665
        %667 = vmatprep.mubr.bf16.mxu0 %v580
        %668 = vmatmul.mubr.bf16.gmra.mrb[0].mxu0 %v434
        %v669 = vpop.f32.mrb[0].mxu0
        %v670 = vadd.f32 %v341, %v669
        %v671 = vpop.f32.mrb[0].mxu0
        %v672 = vadd.f32 %v345, %v671
        %v673 = vpop.f32.mrb[0].mxu0
        %v674 = vadd.f32 %v341, %v673
        %v675 = vpop.f32.mrb[0].mxu0
        %v676 = vadd.f32 %v345, %v675
        %677 = vmatprep.mubr.bf16.mxu0 %v583
        %678 = vmatmul.mubr.bf16.gmra.mrb[0].mxu0 %v436
        %v679 = vpop.f32.mrb[0].mxu0
        %v680 = vadd.f32 %v341, %v679
        %v681 = vpop.f32.mrb[0].mxu0
        %v682 = vadd.f32 %v345, %v681
        %v683 = vpop.f32.mrb[0].mxu0
        %v684 = vadd.f32 %v341, %v683
        %v685 = vpop.f32.mrb[0].mxu0
        %v686 = vadd.f32 %v345, %v685
        %687 = vmatprep.mubr.bf16.mxu0 %v586
        %688 = vmatmul.mubr.bf16.gmra.mrb[0].mxu0 %v438
        %v689 = vpop.f32.mrb[0].mxu0
        %v690 = vadd.f32 %v341, %v689
        %v691 = vpop.f32.mrb[0].mxu0
        %v692 = vadd.f32 %v345, %v691
        %v693 = vpop.f32.mrb[0].mxu0
        %v694 = vadd.f32 %v341, %v693
        %v695 = vpop.f32.mrb[0].mxu0
        %v696 = vadd.f32 %v345, %v695
        %697 = vmatprep.mubr.bf16.mxu0 %v589
        %698 = vmatmul.mubr.bf16.gmra.mrb[0].mxu0 %v440
        %v699 = vpop.f32.mrb[0].mxu0
        %v700 = vadd.f32 %v341, %v699
        %v701 = vpop.f32.mrb[0].mxu0
        %v702 = vadd.f32 %v345, %v701
        %v703 = vpop.f32.mrb[0].mxu0
        %v704 = vadd.f32 %v341, %v703
        %v705 = vpop.f32.mrb[0].mxu0
        %v706 = vadd.f32 %v345, %v705
        %707 = vmatprep.mubr.bf16.mxu0 %v592
        %708 = vmatmul.mubr.bf16.gmra.mrb[0].mxu0 %v442
        %v709 = vpop.f32.mrb[0].mxu0
        %v710 = vadd.f32 %v341, %v709
        %v711 = vpop.f32.mrb[0].mxu0
        %v712 = vadd.f32 %v345, %v711
        %v713 = vpop.f32.mrb[0].mxu0
        %v714 = vadd.f32 %v341, %v713
        %v715 = vpop.f32.mrb[0].mxu0
        %v716 = vadd.f32 %v345, %v715
        %717 = vmatprep.mubr.bf16.mxu0 %v595
        %718 = vmatmul.mubr.bf16.gmra.mrb[0].mxu0 %v444
        %v719 = vpop.f32.mrb[0].mxu0
        %v720 = vadd.f32 %v341, %v719
        %v721 = vpop.f32.mrb[0].mxu0
        %v722 = vadd.f32 %v345, %v721
        %v723 = vpop.f32.mrb[0].mxu0
        %v724 = vadd.f32 %v341, %v723
        %v725 = vpop.f32.mrb[0].mxu0
        %v726 = vadd.f32 %v345, %v725
        %727 = vmatprep.mubr.bf16.mxu0 %v598
        %728 = vmatmul.mubr.bf16.gmra.mrb[0].mxu0 %v446
        %v729 = vpop.f32.mrb[0].mxu0
        %v730 = vadd.f32 %v341, %v729
        %v731 = vpop.f32.mrb[0].mxu0
        %v732 = vadd.f32 %v345, %v731
        %v733 = vpop.f32.mrb[0].mxu0
        %v734 = vadd.f32 %v341, %v733
        %v735 = vpop.f32.mrb[0].mxu0
        %v736 = vadd.f32 %v345, %v735
        %737 = vmatprep.mubr.bf16.mxu0 %v601
        %738 = vmatmul.mubr.bf16.gmra.mrb[0].mxu0 %v448
        %v739 = vpop.f32.mrb[0].mxu0
        %v740 = vadd.f32 %v341, %v739
        %v741 = vpop.f32.mrb[0].mxu0
        %v742 = vadd.f32 %v345, %v741
        %v743 = vpop.f32.mrb[0].mxu0
        %v744 = vadd.f32 %v341, %v743
        %v745 = vpop.f32.mrb[0].mxu0
        %v746 = vadd.f32 %v345, %v745
        %747 = vmatprep.mubr.bf16.mxu0 %v604
        %748 = vmatmul.mubr.bf16.gmra.mrb[0].mxu0 %v450
        %v749 = vpop.f32.mrb[0].mxu0
        %v750 = vadd.f32 %v341, %v749
        %v751 = vpop.f32.mrb[0].mxu0
        %v752 = vadd.f32 %v345, %v751
        %v753 = vpop.f32.mrb[0].mxu0
        %v754 = vadd.f32 %v341, %v753
        %v755 = vpop.f32.mrb[0].mxu0
        %v756 = vadd.f32 %v345, %v755
        %757 = vmatprep.mubr.bf16.mxu0 %v607
        %758 = vmatmul.mubr.bf16.gmra.mrb[0].mxu0 %v452
        %v759 = vpop.f32.mrb[0].mxu0
        %v760 = vadd.f32 %v341, %v759
        %v761 = vpop.f32.mrb[0].mxu0
        %v762 = vadd.f32 %v345, %v761
        %v763 = vpop.f32.mrb[0].mxu0
        %v764 = vadd.f32 %v341, %v763
        %v765 = vpop.f32.mrb[0].mxu0
        %v766 = vadd.f32 %v345, %v765
        %767 = vmatprep.mubr.bf16.mxu0 %v610
        %768 = vmatmul.mubr.bf16.gmra.mrb[0].mxu0 %v454
        %v769 = vpop.f32.mrb[0].mxu0
        %v770 = vadd.f32 %v341, %v769
        %v771 = vpop.f32.mrb[0].mxu0
        %v772 = vadd.f32 %v345, %v771
        %v773 = vpop.f32.mrb[0].mxu0
        %v774 = vadd.f32 %v341, %v773
        %v775 = vpop.f32.mrb[0].mxu0
        %v776 = vadd.f32 %v345, %v775
        %777 = vmatprep.mubr.bf16.mxu0 %v613
        %778 = vmatmul.mubr.bf16.gmra.mrb[0].mxu0 %v456
        %v779 = vpop.f32.mrb[0].mxu0
        %v780 = vadd.f32 %v341, %v779
        %v781 = vpop.f32.mrb[0].mxu0
        %v782 = vadd.f32 %v345, %v781
        %v783 = vpop.f32.mrb[0].mxu0
        %v784 = vadd.f32 %v341, %v783
        %v785 = vpop.f32.mrb[0].mxu0
        %v786 = vadd.f32 %v345, %v785
        %787 = vdwg.mxu0
        %v788 = vxor.u32 %v650, 2147483648
        %v789 = vxor.u32 %v652, 2147483648
        %v790 = vxor.u32 %v654, 2147483648
        %v791 = vxor.u32 %v656, 2147483648
        %v792 = vxor.u32 %v660, 2147483648
        %v793 = vxor.u32 %v662, 2147483648
        %v794 = vxor.u32 %v664, 2147483648
        %v795 = vxor.u32 %v666, 2147483648
        %v796 = vxor.u32 %v670, 2147483648
        %v797 = vxor.u32 %v672, 2147483648
        %v798 = vxor.u32 %v674, 2147483648
        %v799 = vxor.u32 %v676, 2147483648
        %v800 = vxor.u32 %v680, 2147483648
        %v801 = vxor.u32 %v682, 2147483648
        %v802 = vxor.u32 %v684, 2147483648
        %v803 = vxor.u32 %v686, 2147483648
        %v804 = vxor.u32 %v690, 2147483648
        %v805 = vxor.u32 %v692, 2147483648
        %v806 = vxor.u32 %v694, 2147483648
        %v807 = vxor.u32 %v696, 2147483648
        %v808 = vxor.u32 %v700, 2147483648
        %v809 = vxor.u32 %v702, 2147483648
        %v810 = vxor.u32 %v704, 2147483648
        %v811 = vxor.u32 %v706, 2147483648
        %v812 = vxor.u32 %v710, 2147483648
        %v813 = vxor.u32 %v712, 2147483648
        %v814 = vxor.u32 %v714, 2147483648
        %v815 = vxor.u32 %v716, 2147483648
        %v816 = vxor.u32 %v720, 2147483648
        %v817 = vxor.u32 %v722, 2147483648
        %v818 = vxor.u32 %v724, 2147483648
        %v819 = vxor.u32 %v726, 2147483648
        %v820 = vxor.u32 %v730, 2147483648
        %v821 = vxor.u32 %v732, 2147483648
        %v822 = vxor.u32 %v734, 2147483648
        %v823 = vxor.u32 %v736, 2147483648
        %v824 = vxor.u32 %v740, 2147483648
        %v825 = vxor.u32 %v742, 2147483648
        %v826 = vxor.u32 %v744, 2147483648
        %v827 = vxor.u32 %v746, 2147483648
        %v828 = vxor.u32 %v750, 2147483648
        %v829 = vxor.u32 %v752, 2147483648
        %v830 = vxor.u32 %v754, 2147483648
        %v831 = vxor.u32 %v756, 2147483648
        %v832 = vxor.u32 %v760, 2147483648
        %v833 = vxor.u32 %v762, 2147483648
        %v834 = vxor.u32 %v764, 2147483648
        %v835 = vxor.u32 %v766, 2147483648
        %v836 = vxor.u32 %v770, 2147483648
        %v837 = vxor.u32 %v772, 2147483648
        %v838 = vxor.u32 %v774, 2147483648
        %v839 = vxor.u32 %v776, 2147483648
        %v840 = vxor.u32 %v780, 2147483648
        %v841 = vxor.u32 %v782, 2147483648
        %v842 = vxor.u32 %v784, 2147483648
        %v843 = vxor.u32 %v786, 2147483648
        %v844 = vmul.f32 %v788, 1.442695
        %v845 = vpow.pop %v844
        %v846 = vmul.f32 %v789, 1.442695
        %v847 = vpow.pop %v846
        %v848 = vmul.f32 %v790, 1.442695
        %v849 = vpow.pop %v848
        %v850 = vmul.f32 %v791, 1.442695
        %v851 = vpow.pop %v850
        %v852 = vmul.f32 %v792, 1.442695
        %v853 = vpow.pop %v852
        %v854 = vmul.f32 %v793, 1.442695
        %v855 = vpow.pop %v854
        %v856 = vmul.f32 %v794, 1.442695
        %v857 = vpow.pop %v856
        %v858 = vmul.f32 %v795, 1.442695
        %v859 = vpow.pop %v858
        %v860 = vmul.f32 %v796, 1.442695
        %v861 = vpow.pop %v860
        %v862 = vmul.f32 %v797, 1.442695
        %v863 = vpow.pop %v862
        %v864 = vmul.f32 %v798, 1.442695
        %v865 = vpow.pop %v864
        %v866 = vmul.f32 %v799, 1.442695
        %v867 = vpow.pop %v866
        %v868 = vmul.f32 %v800, 1.442695
        %v869 = vpow.pop %v868
        %v870 = vmul.f32 %v801, 1.442695
        %v871 = vpow.pop %v870
        %v872 = vmul.f32 %v802, 1.442695
        %v873 = vpow.pop %v872
        %v874 = vmul.f32 %v803, 1.442695
        %v875 = vpow.pop %v874
        %v876 = vmul.f32 %v804, 1.442695
        %v877 = vpow.pop %v876
        %v878 = vmul.f32 %v805, 1.442695
        %v879 = vpow.pop %v878
        %v880 = vmul.f32 %v806, 1.442695
        %v881 = vpow.pop %v880
        %v882 = vmul.f32 %v807, 1.442695
        %v883 = vpow.pop %v882
        %v884 = vmul.f32 %v808, 1.442695
        %v885 = vpow.pop %v884
        %v886 = vmul.f32 %v809, 1.442695
        %v887 = vpow.pop %v886
        %v888 = vmul.f32 %v810, 1.442695
        %v889 = vpow.pop %v888
        %v890 = vmul.f32 %v811, 1.442695
        %v891 = vpow.pop %v890
        %v892 = vmul.f32 %v812, 1.442695
        %v893 = vpow.pop %v892
        %v894 = vmul.f32 %v813, 1.442695
        %v895 = vpow.pop %v894
        %v896 = vmul.f32 %v814, 1.442695
        %v897 = vpow.pop %v896
        %v898 = vmul.f32 %v815, 1.442695
        %v899 = vpow.pop %v898
        %v900 = vmul.f32 %v816, 1.442695
        %v901 = vpow.pop %v900
        %v902 = vmul.f32 %v817, 1.442695
        %v903 = vpow.pop %v902
        %v904 = vmul.f32 %v818, 1.442695
        %v905 = vpow.pop %v904
        %v906 = vmul.f32 %v819, 1.442695
        %v907 = vpow.pop %v906
        %v908 = vmul.f32 %v820, 1.442695
        %v909 = vpow.pop %v908
        %v910 = vmul.f32 %v821, 1.442695
        %v911 = vpow.pop %v910
        %v912 = vmul.f32 %v822, 1.442695
        %v913 = vpow.pop %v912
        %v914 = vmul.f32 %v823, 1.442695
        %v915 = vpow.pop %v914
        %v916 = vmul.f32 %v824, 1.442695
        %v917 = vpow.pop %v916
        %v918 = vmul.f32 %v825, 1.442695
        %v919 = vpow.pop %v918
        %v920 = vmul.f32 %v826, 1.442695
        %v921 = vpow.pop %v920
        %v922 = vmul.f32 %v827, 1.442695
        %v923 = vpow.pop %v922
        %v924 = vmul.f32 %v828, 1.442695
        %v925 = vpow.pop %v924
        %v926 = vmul.f32 %v829, 1.442695
        %v927 = vpow.pop %v926
        %v928 = vmul.f32 %v830, 1.442695
        %v929 = vpow.pop %v928
        %v930 = vmul.f32 %v831, 1.442695
        %v931 = vpow.pop %v930
        %v932 = vmul.f32 %v832, 1.442695
        %v933 = vpow.pop %v932
        %v934 = vmul.f32 %v833, 1.442695
        %v935 = vpow.pop %v934
        %v936 = vmul.f32 %v834, 1.442695
        %v937 = vpow.pop %v936
        %v938 = vmul.f32 %v835, 1.442695
        %v939 = vpow.pop %v938
        %v940 = vmul.f32 %v836, 1.442695
        %v941 = vpow.pop %v940
        %v942 = vmul.f32 %v837, 1.442695
        %v943 = vpow.pop %v942
        %v944 = vmul.f32 %v838, 1.442695
        %v945 = vpow.pop %v944
        %v946 = vmul.f32 %v839, 1.442695
        %v947 = vpow.pop %v946
        %v948 = vmul.f32 %v840, 1.442695
        %v949 = vpow.pop %v948
        %v950 = vmul.f32 %v841, 1.442695
        %v951 = vpow.pop %v950
        %v952 = vmul.f32 %v842, 1.442695
        %v953 = vpow.pop %v952
        %v954 = vmul.f32 %v843, 1.442695
        %v955 = vpow.pop %v954
        %v956 = vadd.f32 %v845, 1.0
        %v957 = vadd.f32 %v847, 1.0
        %v958 = vadd.f32 %v849, 1.0
        %v959 = vadd.f32 %v851, 1.0
        %v960 = vadd.f32 %v853, 1.0
        %v961 = vadd.f32 %v855, 1.0
        %v962 = vadd.f32 %v857, 1.0
        %v963 = vadd.f32 %v859, 1.0
        %v964 = vadd.f32 %v861, 1.0
        %v965 = vadd.f32 %v863, 1.0
        %v966 = vadd.f32 %v865, 1.0
        %v967 = vadd.f32 %v867, 1.0
        %v968 = vadd.f32 %v869, 1.0
        %v969 = vadd.f32 %v871, 1.0
        %v970 = vadd.f32 %v873, 1.0
        %v971 = vadd.f32 %v875, 1.0
        %v972 = vadd.f32 %v877, 1.0
        %v973 = vadd.f32 %v879, 1.0
        %v974 = vadd.f32 %v881, 1.0
        %v975 = vadd.f32 %v883, 1.0
        %v976 = vadd.f32 %v885, 1.0
        %v977 = vadd.f32 %v887, 1.0
        %v978 = vadd.f32 %v889, 1.0
        %v979 = vadd.f32 %v891, 1.0
        %v980 = vadd.f32 %v893, 1.0
        %v981 = vadd.f32 %v895, 1.0
        %v982 = vadd.f32 %v897, 1.0
        %v983 = vadd.f32 %v899, 1.0
        %v984 = vadd.f32 %v901, 1.0
        %v985 = vadd.f32 %v903, 1.0
        %v986 = vadd.f32 %v905, 1.0
        %v987 = vadd.f32 %v907, 1.0
        %v988 = vadd.f32 %v909, 1.0
        %v989 = vadd.f32 %v911, 1.0
        %v990 = vadd.f32 %v913, 1.0
        %v991 = vadd.f32 %v915, 1.0
        %v992 = vadd.f32 %v917, 1.0
        %v993 = vadd.f32 %v919, 1.0
        %v994 = vadd.f32 %v921, 1.0
        %v995 = vadd.f32 %v923, 1.0
        %v996 = vadd.f32 %v925, 1.0
        %v997 = vadd.f32 %v927, 1.0
        %v998 = vadd.f32 %v929, 1.0
        %v999 = vadd.f32 %v931, 1.0
        %v1000 = vadd.f32 %v933, 1.0
        %v1001 = vadd.f32 %v935, 1.0
        %v1002 = vadd.f32 %v937, 1.0
        %v1003 = vadd.f32 %v939, 1.0
        %v1004 = vadd.f32 %v941, 1.0
        %v1005 = vadd.f32 %v943, 1.0
        %v1006 = vadd.f32 %v945, 1.0
        %v1007 = vadd.f32 %v947, 1.0
        %v1008 = vadd.f32 %v949, 1.0
        %v1009 = vadd.f32 %v951, 1.0
        %v1010 = vadd.f32 %v953, 1.0
        %v1011 = vadd.f32 %v955, 1.0
        %v1012 = vrcp.pop %v956
        %v1013 = vmul.f32 1.0, %v1012
        %v1014 = vrcp.pop %v957
        %v1015 = vmul.f32 1.0, %v1014
        %v1016 = vrcp.pop %v958
        %v1017 = vmul.f32 1.0, %v1016
        %v1018 = vrcp.pop %v959
        %v1019 = vmul.f32 1.0, %v1018
        %v1020 = vrcp.pop %v960
        %v1021 = vmul.f32 1.0, %v1020
        %v1022 = vrcp.pop %v961
        %v1023 = vmul.f32 1.0, %v1022
        %v1024 = vrcp.pop %v962
        %v1025 = vmul.f32 1.0, %v1024
        %v1026 = vrcp.pop %v963
        %v1027 = vmul.f32 1.0, %v1026
        %v1028 = vrcp.pop %v964
        %v1029 = vmul.f32 1.0, %v1028
        %v1030 = vrcp.pop %v965
        %v1031 = vmul.f32 1.0, %v1030
        %v1032 = vrcp.pop %v966
        %v1033 = vmul.f32 1.0, %v1032
        %v1034 = vrcp.pop %v967
        %v1035 = vmul.f32 1.0, %v1034
        %v1036 = vrcp.pop %v968
        %v1037 = vmul.f32 1.0, %v1036
        %v1038 = vrcp.pop %v969
        %v1039 = vmul.f32 1.0, %v1038
        %v1040 = vrcp.pop %v970
        %v1041 = vmul.f32 1.0, %v1040
        %v1042 = vrcp.pop %v971
        %v1043 = vmul.f32 1.0, %v1042
        %v1044 = vrcp.pop %v972
        %v1045 = vmul.f32 1.0, %v1044
        %v1046 = vrcp.pop %v973
        %v1047 = vmul.f32 1.0, %v1046
        %v1048 = vrcp.pop %v974
        %v1049 = vmul.f32 1.0, %v1048
        %v1050 = vrcp.pop %v975
        %v1051 = vmul.f32 1.0, %v1050
        %v1052 = vrcp.pop %v976
        %v1053 = vmul.f32 1.0, %v1052
        %v1054 = vrcp.pop %v977
        %v1055 = vmul.f32 1.0, %v1054
        %v1056 = vrcp.pop %v978
        %v1057 = vmul.f32 1.0, %v1056
        %v1058 = vrcp.pop %v979
        %v1059 = vmul.f32 1.0, %v1058
        %v1060 = vrcp.pop %v980
        %v1061 = vmul.f32 1.0, %v1060
        %v1062 = vrcp.pop %v981
        %v1063 = vmul.f32 1.0, %v1062
        %v1064 = vrcp.pop %v982
        %v1065 = vmul.f32 1.0, %v1064
        %v1066 = vrcp.pop %v983
        %v1067 = vmul.f32 1.0, %v1066
        %v1068 = vrcp.pop %v984
        %v1069 = vmul.f32 1.0, %v1068
        %v1070 = vrcp.pop %v985
        %v1071 = vmul.f32 1.0, %v1070
        %v1072 = vrcp.pop %v986
        %v1073 = vmul.f32 1.0, %v1072
        %v1074 = vrcp.pop %v987
        %v1075 = vmul.f32 1.0, %v1074
        %v1076 = vrcp.pop %v988
        %v1077 = vmul.f32 1.0, %v1076
        %v1078 = vrcp.pop %v989
        %v1079 = vmul.f32 1.0, %v1078
        %v1080 = vrcp.pop %v990
        %v1081 = vmul.f32 1.0, %v1080
        %v1082 = vrcp.pop %v991
        %v1083 = vmul.f32 1.0, %v1082
        %v1084 = vrcp.pop %v992
        %v1085 = vmul.f32 1.0, %v1084
        %v1086 = vrcp.pop %v993
        %v1087 = vmul.f32 1.0, %v1086
        %v1088 = vrcp.pop %v994
        %v1089 = vmul.f32 1.0, %v1088
        %v1090 = vrcp.pop %v995
        %v1091 = vmul.f32 1.0, %v1090
        %v1092 = vrcp.pop %v996
        %v1093 = vmul.f32 1.0, %v1092
        %v1094 = vrcp.pop %v997
        %v1095 = vmul.f32 1.0, %v1094
        %v1096 = vrcp.pop %v998
        %v1097 = vmul.f32 1.0, %v1096
        %v1098 = vrcp.pop %v999
        %v1099 = vmul.f32 1.0, %v1098
        %v1100 = vrcp.pop %v1000
        %v1101 = vmul.f32 1.0, %v1100
        %v1102 = vrcp.pop %v1001
        %v1103 = vmul.f32 1.0, %v1102
        %v1104 = vrcp.pop %v1002
        %v1105 = vmul.f32 1.0, %v1104
        %v1106 = vrcp.pop %v1003
        %v1107 = vmul.f32 1.0, %v1106
        %v1108 = vrcp.pop %v1004
        %v1109 = vmul.f32 1.0, %v1108
        %v1110 = vrcp.pop %v1005
        %v1111 = vmul.f32 1.0, %v1110
        %v1112 = vrcp.pop %v1006
        %v1113 = vmul.f32 1.0, %v1112
        %v1114 = vrcp.pop %v1007
        %v1115 = vmul.f32 1.0, %v1114
        %v1116 = vrcp.pop %v1008
        %v1117 = vmul.f32 1.0, %v1116
        %v1118 = vrcp.pop %v1009
        %v1119 = vmul.f32 1.0, %v1118
        %v1120 = vrcp.pop %v1010
        %v1121 = vmul.f32 1.0, %v1120
        %v1122 = vrcp.pop %v1011
        %v1123 = vmul.f32 1.0, %v1122
        %v1124 = vld [vmem:[%s2] sm:$0xff]
        %v1125 = vld [vmem:[%s2 + $0x8] sm:$0xff]
        %v1126 = vld [vmem:[%s2 + $0x10] sm:$0xff]
        %v1127 = vld [vmem:[%s2 + $0x18] sm:$0xff]
        %v1128 = vld [vmem:[%s2 + $0x20] sm:$0xff]
        %v1129 = vld [vmem:[%s2 + $0x28] sm:$0xff]
        %v1130 = vld [vmem:[%s2 + $0x30] sm:$0xff]
        %v1131 = vld [vmem:[%s2 + $0x38] sm:$0xff]
        %v1132 = vld [vmem:[%s2 + $0x40] sm:$0xff]
        %v1133 = vld [vmem:[%s2 + $0x48] sm:$0xff]
        %v1134 = vld [vmem:[%s2 + $0x50] sm:$0xff]
        %v1135 = vld [vmem:[%s2 + $0x58] sm:$0xff]
        %v1136 = vld [vmem:[%s2 + $0x60] sm:$0xff]
        %v1137 = vld [vmem:[%s2 + $0x68] sm:$0xff]
        %v1138 = vpack.c.bf16 %v1017, %v1013
        %v1139 = vpack.c.bf16 %v1019, %v1015
        %v1140 = vpack.c.bf16 %v1025, %v1021
        %v1141 = vpack.c.bf16 %v1027, %v1023
        %v1142 = vpack.c.bf16 %v1033, %v1029
        %v1143 = vpack.c.bf16 %v1035, %v1031
        %v1144 = vpack.c.bf16 %v1041, %v1037
        %v1145 = vpack.c.bf16 %v1043, %v1039
        %v1146 = vpack.c.bf16 %v1049, %v1045
        %v1147 = vpack.c.bf16 %v1051, %v1047
        %v1148 = vpack.c.bf16 %v1057, %v1053
        %v1149 = vpack.c.bf16 %v1059, %v1055
        %v1150 = vpack.c.bf16 %v1065, %v1061
        %v1151 = vpack.c.bf16 %v1067, %v1063
        %v1152 = vpack.c.bf16 %v1073, %v1069
        %v1153 = vpack.c.bf16 %v1075, %v1071
        %v1154 = vpack.c.bf16 %v1081, %v1077
        %v1155 = vpack.c.bf16 %v1083, %v1079
        %v1156 = vpack.c.bf16 %v1089, %v1085
        %v1157 = vpack.c.bf16 %v1091, %v1087
        %v1158 = vpack.c.bf16 %v1097, %v1093
        %v1159 = vpack.c.bf16 %v1099, %v1095
        %v1160 = vpack.c.bf16 %v1105, %v1101
        %v1161 = vpack.c.bf16 %v1107, %v1103
        %v1162 = vpack.c.bf16 %v1113, %v1109
        %v1163 = vpack.c.bf16 %v1115, %v1111
        %v1164 = vpack.c.bf16 %v1121, %v1117
        %v1165 = vpack.c.bf16 %v1123, %v1119
        %v1180 = vunpack.c.l.b16 %v1124
        %v1181 = vunpack.c.h.b16 %v1124
        %v1182 = vunpack.c.l.b16 %v1125
        %v1183 = vunpack.c.h.b16 %v1125
        %v1184 = vunpack.c.l.b16 %v1126
        %v1185 = vunpack.c.h.b16 %v1126
        %v1186 = vunpack.c.l.b16 %v1127
        %v1187 = vunpack.c.h.b16 %v1127
        %v1188 = vunpack.c.l.b16 %v1128
        %v1189 = vunpack.c.h.b16 %v1128
        %v1190 = vunpack.c.l.b16 %v1129
        %v1191 = vunpack.c.h.b16 %v1129
        %v1192 = vunpack.c.l.b16 %v1130
        %v1193 = vunpack.c.h.b16 %v1130
        %v1194 = vunpack.c.l.b16 %v1131
        %v1195 = vunpack.c.h.b16 %v1131
        %v1196 = vunpack.c.l.b16 %v1132
        %v1197 = vunpack.c.h.b16 %v1132
        %v1198 = vunpack.c.l.b16 %v1133
        %v1199 = vunpack.c.h.b16 %v1133
        %v1200 = vunpack.c.l.b16 %v1134
        %v1201 = vunpack.c.h.b16 %v1134
        %v1202 = vunpack.c.l.b16 %v1135
        %v1203 = vunpack.c.h.b16 %v1135
        %v1204 = vunpack.c.l.b16 %v1136
        %v1205 = vunpack.c.h.b16 %v1136
        %v1206 = vunpack.c.l.b16 %v1137
        %v1207 = vunpack.c.h.b16 %v1137
        %v1208 = vpack.c.b16 %v1182, %v1180
        %v1209 = vpack.c.b16 %v1183, %v1181
        %v1210 = vpack.c.b16 %v1186, %v1184
        %v1211 = vpack.c.b16 %v1187, %v1185
        %v1212 = vpack.c.b16 %v1190, %v1188
        %v1213 = vpack.c.b16 %v1191, %v1189
        %v1214 = vpack.c.b16 %v1194, %v1192
        %v1215 = vpack.c.b16 %v1195, %v1193
        %v1216 = vpack.c.b16 %v1198, %v1196
        %v1217 = vpack.c.b16 %v1199, %v1197
        %v1218 = vpack.c.b16 %v1202, %v1200
        %v1219 = vpack.c.b16 %v1203, %v1201
        %v1220 = vpack.c.b16 %v1206, %v1204
        %v1221 = vpack.c.b16 %v1207, %v1205
        %vm1229 = vcmask 785408
        %v1231 = vsel %vm1229, %v1209, 0
        %v1234 = vsel %vm1229, %v1211, 0
        %v1237 = vsel %vm1229, %v1213, 0
        %v1240 = vsel %vm1229, %v1215, 0
        %v1243 = vsel %vm1229, %v1217, 0
        %v1246 = vsel %vm1229, %v1219, 0
        %v1249 = vsel %vm1229, %v1221, 0
        %1251 = vmatprep.subr.bf16.mxu0 %v1139
        %1252 = vmatpush1.bf16.msra.mxu0 %v1138
        %1253 = vmatprep.subr.bf16.mxu0 %v1141
        %1254 = vmatpush1.bf16.msra.mxu0 %v1140
        %1255 = vmatprep.subr.bf16.mxu0 %v1143
        %1256 = vmatpush1.bf16.msra.mxu0 %v1142
        %1257 = vmatprep.subr.bf16.mxu0 %v1145
        %1258 = vmatpush1.bf16.msra.mxu0 %v1144
        %1259 = vmatprep.subr.bf16.mxu0 %v1147
        %1260 = vmatpush1.bf16.msra.mxu0 %v1146
        %1261 = vmatprep.subr.bf16.mxu0 %v1149
        %1262 = vmatpush1.bf16.msra.mxu0 %v1148
        %1263 = vmatprep.subr.bf16.mxu0 %v1151
        %1264 = vmatpush1.bf16.msra.mxu0 %v1150
        %1265 = vmatprep.subr.bf16.mxu0 %v1153
        %1266 = vmatpush1.bf16.msra.mxu0 %v1152
        %1267 = vmatprep.subr.bf16.mxu0 %v1155
        %1268 = vmatpush1.bf16.msra.mxu0 %v1154
        %1269 = vmatprep.subr.bf16.mxu0 %v1157
        %1270 = vmatpush1.bf16.msra.mxu0 %v1156
        %1271 = vmatprep.subr.bf16.mxu0 %v1159
        %1272 = vmatpush1.bf16.msra.mxu0 %v1158
        %1273 = vmatprep.subr.bf16.mxu0 %v1161
        %1274 = vmatpush1.bf16.msra.mxu0 %v1160
        %1275 = vmatprep.subr.bf16.mxu0 %v1163
        %1276 = vmatpush1.bf16.msra.mxu0 %v1162
        %1277 = vmatprep.subr.bf16.mxu0 %v1165
        %1278 = vmatpush1.bf16.msra.mxu0 %v1164
        %1279 = vmatprep.subr.bf16.mxu0 0
        %1280 = vmatpush1.bf16.msra.mxu0 0
        %1281 = vmatprep.subr.bf16.mxu0 0
        %1282 = vmatpush1.bf16.msra.mxu0 0
        %1283 = vmatprep.mubr.bf16.mxu0 %v1231
        %1284 = vmatmul.mubr.bf16.gmra.mrb[0].mxu0 %v1208
        %v1285 = vpop.f32.mrb[0].mxu0
        %v1286 = vadd.f32 0.0, %v1285
        %v1287 = vpop.f32.mrb[0].mxu0
        %v1288 = vadd.f32 0.0, %v1287
        %v1289 = vpop.f32.mrb[0].mxu0
        %v1290 = vadd.f32 0.0, %v1289
        %v1291 = vpop.f32.mrb[0].mxu0
        %v1292 = vadd.f32 0.0, %v1291
        %1293 = vmatprep.mubr.bf16.mxu0 %v1234
        %1294 = vmatmul.mubr.bf16.gmra.mrb[0].mxu0 %v1210
        %v1295 = vpop.f32.mrb[0].mxu0
        %v1296 = vadd.f32 0.0, %v1295
        %v1297 = vpop.f32.mrb[0].mxu0
        %v1298 = vadd.f32 0.0, %v1297
        %v1299 = vpop.f32.mrb[0].mxu0
        %v1300 = vadd.f32 0.0, %v1299
        %v1301 = vpop.f32.mrb[0].mxu0
        %v1302 = vadd.f32 0.0, %v1301
        %1303 = vmatprep.mubr.bf16.mxu0 %v1237
        %1304 = vmatmul.mubr.bf16.gmra.mrb[0].mxu0 %v1212
        %v1305 = vpop.f32.mrb[0].mxu0
        %v1306 = vadd.f32 0.0, %v1305
        %v1307 = vpop.f32.mrb[0].mxu0
        %v1308 = vadd.f32 0.0, %v1307
        %v1309 = vpop.f32.mrb[0].mxu0
        %v1310 = vadd.f32 0.0, %v1309
        %v1311 = vpop.f32.mrb[0].mxu0
        %v1312 = vadd.f32 0.0, %v1311
        %1313 = vmatprep.mubr.bf16.mxu0 %v1240
        %1314 = vmatmul.mubr.bf16.gmra.mrb[0].mxu0 %v1214
        %v1315 = vpop.f32.mrb[0].mxu0
        %v1316 = vadd.f32 0.0, %v1315
        %v1317 = vpop.f32.mrb[0].mxu0
        %v1318 = vadd.f32 0.0, %v1317
        %v1319 = vpop.f32.mrb[0].mxu0
        %v1320 = vadd.f32 0.0, %v1319
        %v1321 = vpop.f32.mrb[0].mxu0
        %v1322 = vadd.f32 0.0, %v1321
        %1323 = vmatprep.mubr.bf16.mxu0 %v1243
        %1324 = vmatmul.mubr.bf16.gmra.mrb[0].mxu0 %v1216
        %v1325 = vpop.f32.mrb[0].mxu0
        %v1326 = vadd.f32 0.0, %v1325
        %v1327 = vpop.f32.mrb[0].mxu0
        %v1328 = vadd.f32 0.0, %v1327
        %v1329 = vpop.f32.mrb[0].mxu0
        %v1330 = vadd.f32 0.0, %v1329
        %v1331 = vpop.f32.mrb[0].mxu0
        %v1332 = vadd.f32 0.0, %v1331
        %1333 = vmatprep.mubr.bf16.mxu0 %v1246
        %1334 = vmatmul.mubr.bf16.gmra.mrb[0].mxu0 %v1218
        %v1335 = vpop.f32.mrb[0].mxu0
        %v1336 = vadd.f32 0.0, %v1335
        %v1337 = vpop.f32.mrb[0].mxu0
        %v1338 = vadd.f32 0.0, %v1337
        %v1339 = vpop.f32.mrb[0].mxu0
        %v1340 = vadd.f32 0.0, %v1339
        %v1341 = vpop.f32.mrb[0].mxu0
        %v1342 = vadd.f32 0.0, %v1341
        %1343 = vmatprep.mubr.bf16.mxu0 %v1249
        %1344 = vmatmul.mubr.bf16.gmra.mrb[0].mxu0 %v1220
        %v1345 = vpop.f32.mrb[0].mxu0
        %v1346 = vadd.f32 0.0, %v1345
        %v1347 = vpop.f32.mrb[0].mxu0
        %v1348 = vadd.f32 0.0, %v1347
        %v1349 = vpop.f32.mrb[0].mxu0
        %v1350 = vadd.f32 0.0, %v1349
        %v1351 = vpop.f32.mrb[0].mxu0
        %v1352 = vadd.f32 0.0, %v1351
        %1353 = vdwg.mxu0
        %v1354 = vpack.c.bf16 %v1290, %v1286
        %v1355 = vpack.c.bf16 %v1292, %v1288
        %v1356 = vpack.c.bf16 %v1300, %v1296
        %v1357 = vpack.c.bf16 %v1302, %v1298
        %v1358 = vpack.c.bf16 %v1310, %v1306
        %v1359 = vpack.c.bf16 %v1312, %v1308
        %v1360 = vpack.c.bf16 %v1320, %v1316
        %v1361 = vpack.c.bf16 %v1322, %v1318
        %v1362 = vpack.c.bf16 %v1330, %v1326
        %v1363 = vpack.c.bf16 %v1332, %v1328
        %v1364 = vpack.c.bf16 %v1340, %v1336
        %v1365 = vpack.c.bf16 %v1342, %v1338
        %v1366 = vpack.c.bf16 %v1350, %v1346
        %v1367 = vpack.c.bf16 %v1352, %v1348
        %v1368 = vld [vmem:[%s3] sm:$0xff]
        %v1369 = vld [vmem:[%s3 + $0x8] sm:$0xff]
        %v1370 = vld [vmem:[%s3 + $0x10] sm:$0xff]
        %v1371 = vld [vmem:[%s3 + $0x18] sm:$0xff]
        %v1372 = vld [vmem:[%s3 + $0x20] sm:$0xff]
        %v1373 = vld [vmem:[%s3 + $0x28] sm:$0xff]
        %v1374 = vld [vmem:[%s3 + $0x30] sm:$0xff]
        %v1375 = vld [vmem:[%s3 + $0x38] sm:$0xff]
        %v1376 = vld [vmem:[%s3 + $0x40] sm:$0xff]
        %v1377 = vld [vmem:[%s3 + $0x48] sm:$0xff]
        %v1378 = vld [vmem:[%s3 + $0x50] sm:$0xff]
        %v1379 = vld [vmem:[%s3 + $0x58] sm:$0xff]
        %v1380 = vld [vmem:[%s3 + $0x60] sm:$0xff]
        %v1381 = vld [vmem:[%s3 + $0x68] sm:$0xff]
        %v1382 = vld [vmem:[%s3 + $0x70] sm:$0xff]
        %v1383 = vld [vmem:[%s3 + $0x78] sm:$0xff]
        %v1384 = vld [vmem:[%s3 + $0x80] sm:$0xff]
        %v1385 = vld [vmem:[%s3 + $0x88] sm:$0xff]
        %v1386 = vld [vmem:[%s3 + $0x90] sm:$0xff]
        %v1387 = vld [vmem:[%s3 + $0x98] sm:$0xff]
        %v1388 = vld [vmem:[%s3 + $0xa0] sm:$0xff]
        %s1389 = scalar_lea.vmem %s3, 168
        %v1390 = vld [vmem:[%s1389] sm:$0xff]
        %v1391 = vld [vmem:[%s1389 + $0x8] sm:$0xff]
        %v1392 = vld [vmem:[%s1389 + $0x10] sm:$0xff]
        %v1393 = vld [vmem:[%s1389 + $0x18] sm:$0xff]
        %v1394 = vld [vmem:[%s1389 + $0x20] sm:$0xff]
        %v1395 = vld [vmem:[%s1389 + $0x28] sm:$0xff]
        %v1396 = vld [vmem:[%s1389 + $0x30] sm:$0xff]
        %v1397 = vld [vmem:[%s1389 + $0x38] sm:$0xff]
        %v1398 = vld [vmem:[%s1389 + $0x40] sm:$0xff]
        %v1399 = vld [vmem:[%s1389 + $0x48] sm:$0xff]
        %v1400 = vld [vmem:[%s1389 + $0x50] sm:$0xff]
        %v1401 = vld [vmem:[%s1389 + $0x58] sm:$0xff]
        %v1402 = vld [vmem:[%s1389 + $0x60] sm:$0xff]
        %v1403 = vld [vmem:[%s1389 + $0x68] sm:$0xff]
        %v1404 = vld [vmem:[%s1389 + $0x70] sm:$0xff]
        %v1405 = vld [vmem:[%s1389 + $0x78] sm:$0xff]
        %v1406 = vld [vmem:[%s1389 + $0x80] sm:$0xff]
        %v1407 = vld [vmem:[%s1389 + $0x88] sm:$0xff]
        %v1408 = vld [vmem:[%s1389 + $0x90] sm:$0xff]
        %v1409 = vld [vmem:[%s1389 + $0x98] sm:$0xff]
        %v1410 = vld [vmem:[%s1389 + $0xa0] sm:$0xff]
        %vm1423 = vcmask 1043456
        %v1424 = vrot.slane %v1354, 4
        %v1425 = vrot.slane %v1356, 4
        %v1426 = vsel %vm1423, %v1424, %v1425
        %v1427 = vrot.slane %v1355, 4
        %v1428 = vrot.slane %v1357, 4
        %v1429 = vsel %vm1423, %v1427, %v1428
        %v1430 = vrot.slane %v1358, 4
        %v1431 = vsel %vm1423, %v1425, %v1430
        %v1432 = vrot.slane %v1359, 4
        %v1433 = vsel %vm1423, %v1428, %v1432
        %v1434 = vrot.slane %v1360, 4
        %v1435 = vsel %vm1423, %v1430, %v1434
        %v1436 = vrot.slane %v1361, 4
        %v1437 = vsel %vm1423, %v1432, %v1436
        %v1438 = vrot.slane %v1362, 4
        %v1439 = vsel %vm1423, %v1434, %v1438
        %v1440 = vrot.slane %v1363, 4
        %v1441 = vsel %vm1423, %v1436, %v1440
        %v1442 = vrot.slane %v1364, 4
        %v1443 = vsel %vm1423, %v1438, %v1442
        %v1444 = vrot.slane %v1365, 4
        %v1445 = vsel %vm1423, %v1440, %v1444
        %v1472 = vunpack.c.l.b16 %v1390
        %v1473 = vunpack.c.h.b16 %v1390
        %v1474 = vunpack.c.l.b16 %v1391
        %v1475 = vunpack.c.h.b16 %v1391
        %v1476 = vunpack.c.l.b16 %v1392
        %v1477 = vunpack.c.h.b16 %v1392
        %v1478 = vunpack.c.l.b16 %v1393
        %v1479 = vunpack.c.h.b16 %v1393
        %v1480 = vunpack.c.l.b16 %v1394
        %v1481 = vunpack.c.h.b16 %v1394
        %v1482 = vunpack.c.l.b16 %v1395
        %v1483 = vunpack.c.h.b16 %v1395
        %v1484 = vunpack.c.l.b16 %v1396
        %v1485 = vunpack.c.h.b16 %v1396
        %v1486 = vunpack.c.l.b16 %v1397
        %v1487 = vunpack.c.h.b16 %v1397
        %v1488 = vunpack.c.l.b16 %v1398
        %v1489 = vunpack.c.h.b16 %v1398
        %v1490 = vunpack.c.l.b16 %v1399
        %v1491 = vunpack.c.h.b16 %v1399
        %v1492 = vunpack.c.l.b16 %v1400
        %v1493 = vunpack.c.h.b16 %v1400
        %v1494 = vunpack.c.l.b16 %v1401
        %v1495 = vunpack.c.h.b16 %v1401
        %v1496 = vunpack.c.l.b16 %v1402
        %v1497 = vunpack.c.h.b16 %v1402
        %v1498 = vunpack.c.l.b16 %v1403
        %v1499 = vunpack.c.h.b16 %v1403
        %v1500 = vunpack.c.l.b16 %v1404
        %v1501 = vunpack.c.h.b16 %v1404
        %v1502 = vunpack.c.l.b16 %v1405
        %v1503 = vunpack.c.h.b16 %v1405
        %v1504 = vunpack.c.l.b16 %v1406
        %v1505 = vunpack.c.h.b16 %v1406
        %v1506 = vunpack.c.l.b16 %v1407
        %v1507 = vunpack.c.h.b16 %v1407
        %v1508 = vunpack.c.l.b16 %v1408
        %v1509 = vunpack.c.h.b16 %v1408
        %v1510 = vunpack.c.l.b16 %v1409
        %v1511 = vunpack.c.h.b16 %v1409
        %v1512 = vunpack.c.l.b16 %v1410
        %v1513 = vunpack.c.h.b16 %v1410
        %v1514 = vpack.c.b16 %v1474, %v1472
        %v1515 = vpack.c.b16 %v1475, %v1473
        %v1516 = vpack.c.b16 %v1478, %v1476
        %v1517 = vpack.c.b16 %v1479, %v1477
        %v1518 = vpack.c.b16 %v1482, %v1480
        %v1519 = vpack.c.b16 %v1483, %v1481
        %v1520 = vpack.c.b16 %v1486, %v1484
        %v1521 = vpack.c.b16 %v1487, %v1485
        %v1522 = vpack.c.b16 %v1490, %v1488
        %v1523 = vpack.c.b16 %v1491, %v1489
        %v1524 = vpack.c.b16 %v1494, %v1492
        %v1525 = vpack.c.b16 %v1495, %v1493
        %v1526 = vpack.c.b16 %v1498, %v1496
        %v1527 = vpack.c.b16 %v1499, %v1497
        %v1528 = vpack.c.b16 %v1502, %v1500
        %v1529 = vpack.c.b16 %v1503, %v1501
        %v1530 = vpack.c.b16 %v1506, %v1504
        %v1531 = vpack.c.b16 %v1507, %v1505
        %v1532 = vpack.c.b16 %v1510, %v1508
        %v1533 = vpack.c.b16 %v1511, %v1509
        %v1534 = vpack.c.b16 %v1512, %v1512
        %v1535 = vpack.c.b16 %v1513, %v1513
        %vm1556 = vcmask 326656
        %v1558 = vsel %vm1556, %v1429, 0
        %v1561 = vsel %vm1556, %v1433, 0
        %v1564 = vsel %vm1556, %v1437, 0
        %v1567 = vsel %vm1556, %v1441, 0
        %v1570 = vsel %vm1556, %v1445, 0
        %vm1572 = vcmask 1043456
        %v1574 = vsel %vm1572, %v1534, 0
        %v1577 = vsel %vm1572, %v1535, 0
        %1579 = vmatprep.subr.bf16.mxu0 %v1515
        %1580 = vmatpush1.bf16.msra.mxu0 %v1514
        %1581 = vmatprep.subr.bf16.mxu0 %v1517
        %1582 = vmatpush1.bf16.msra.mxu0 %v1516
        %1583 = vmatprep.subr.bf16.mxu0 %v1519
        %1584 = vmatpush1.bf16.msra.mxu0 %v1518
        %1585 = vmatprep.subr.bf16.mxu0 %v1521
        %1586 = vmatpush1.bf16.msra.mxu0 %v1520
        %1587 = vmatprep.subr.bf16.mxu0 %v1523
        %1588 = vmatpush1.bf16.msra.mxu0 %v1522
        %1589 = vmatprep.subr.bf16.mxu0 %v1525
        %1590 = vmatpush1.bf16.msra.mxu0 %v1524
        %1591 = vmatprep.subr.bf16.mxu0 %v1527
        %1592 = vmatpush1.bf16.msra.mxu0 %v1526
        %1593 = vmatprep.subr.bf16.mxu0 %v1529
        %1594 = vmatpush1.bf16.msra.mxu0 %v1528
        %1595 = vmatprep.subr.bf16.mxu0 %v1531
        %1596 = vmatpush1.bf16.msra.mxu0 %v1530
        %1597 = vmatprep.subr.bf16.mxu0 %v1533
        %1598 = vmatpush1.bf16.msra.mxu0 %v1532
        %1599 = vmatprep.subr.bf16.mxu0 %v1577
        %1600 = vmatpush1.bf16.msra.mxu0 %v1574
        %1601 = vmatprep.subr.bf16.mxu0 0
        %1602 = vmatpush1.bf16.msra.mxu0 0
        %1603 = vmatprep.subr.bf16.mxu0 0
        %1604 = vmatpush1.bf16.msra.mxu0 0
        %1605 = vmatprep.subr.bf16.mxu0 0
        %1606 = vmatpush1.bf16.msra.mxu0 0
        %1607 = vmatprep.subr.bf16.mxu0 0
        %1608 = vmatpush1.bf16.msra.mxu0 0
        %1609 = vmatprep.subr.bf16.mxu0 0
        %1610 = vmatpush1.bf16.msra.mxu0 0
        %1611 = vmatprep.mubr.bf16.mxu0 %v1558
        %1612 = vmatmul.mubr.bf16.gmra.mrb[0].mxu0 %v1426
        %v1613 = vpop.f32.mrb[0].mxu0
        %v1614 = vadd.f32 0.0, %v1613
        %v1615 = vpop.f32.mrb[0].mxu0
        %v1616 = vadd.f32 0.0, %v1615
        %v1617 = vpop.f32.mrb[0].mxu0
        %v1618 = vadd.f32 0.0, %v1617
        %v1619 = vpop.f32.mrb[0].mxu0
        %v1620 = vadd.f32 0.0, %v1619
        %1621 = vmatprep.mubr.bf16.mxu0 %v1561
        %1622 = vmatmul.mubr.bf16.gmra.mrb[0].mxu0 %v1431
        %v1623 = vpop.f32.mrb[0].mxu0
        %v1624 = vadd.f32 0.0, %v1623
        %v1625 = vpop.f32.mrb[0].mxu0
        %v1626 = vadd.f32 0.0, %v1625
        %v1627 = vpop.f32.mrb[0].mxu0
        %v1628 = vadd.f32 0.0, %v1627
        %v1629 = vpop.f32.mrb[0].mxu0
        %v1630 = vadd.f32 0.0, %v1629
        %1631 = vmatprep.mubr.bf16.mxu0 %v1564
        %1632 = vmatmul.mubr.bf16.gmra.mrb[0].mxu0 %v1435
        %v1633 = vpop.f32.mrb[0].mxu0
        %v1634 = vadd.f32 0.0, %v1633
        %v1635 = vpop.f32.mrb[0].mxu0
        %v1636 = vadd.f32 0.0, %v1635
        %v1637 = vpop.f32.mrb[0].mxu0
        %v1638 = vadd.f32 0.0, %v1637
        %v1639 = vpop.f32.mrb[0].mxu0
        %v1640 = vadd.f32 0.0, %v1639
        %1641 = vmatprep.mubr.bf16.mxu0 %v1567
        %1642 = vmatmul.mubr.bf16.gmra.mrb[0].mxu0 %v1439
        %v1643 = vpop.f32.mrb[0].mxu0
        %v1644 = vadd.f32 0.0, %v1643
        %v1645 = vpop.f32.mrb[0].mxu0
        %v1646 = vadd.f32 0.0, %v1645
        %v1647 = vpop.f32.mrb[0].mxu0
        %v1648 = vadd.f32 0.0, %v1647
        %v1649 = vpop.f32.mrb[0].mxu0
        %v1650 = vadd.f32 0.0, %v1649
        %1651 = vmatprep.mubr.bf16.mxu0 %v1570
        %1652 = vmatmul.mubr.bf16.gmra.mrb[0].mxu0 %v1443
        %v1653 = vpop.f32.mrb[0].mxu0
        %v1654 = vadd.f32 0.0, %v1653
        %v1655 = vpop.f32.mrb[0].mxu0
        %v1656 = vadd.f32 0.0, %v1655
        %v1657 = vpop.f32.mrb[0].mxu0
        %v1658 = vadd.f32 0.0, %v1657
        %v1659 = vpop.f32.mrb[0].mxu0
        %v1660 = vadd.f32 0.0, %v1659
        %1661 = vdwg.mxu0
        %v1683 = vunpack.c.l.b16 %v1368
        %v1684 = vunpack.c.h.b16 %v1368
        %v1685 = vunpack.c.l.b16 %v1369
        %v1686 = vunpack.c.h.b16 %v1369
        %v1687 = vunpack.c.l.b16 %v1370
        %v1688 = vunpack.c.h.b16 %v1370
        %v1689 = vunpack.c.l.b16 %v1371
        %v1690 = vunpack.c.h.b16 %v1371
        %v1691 = vunpack.c.l.b16 %v1372
        %v1692 = vunpack.c.h.b16 %v1372
        %v1693 = vunpack.c.l.b16 %v1373
        %v1694 = vunpack.c.h.b16 %v1373
        %v1695 = vunpack.c.l.b16 %v1374
        %v1696 = vunpack.c.h.b16 %v1374
        %v1697 = vunpack.c.l.b16 %v1375
        %v1698 = vunpack.c.h.b16 %v1375
        %v1699 = vunpack.c.l.b16 %v1376
        %v1700 = vunpack.c.h.b16 %v1376
        %v1701 = vunpack.c.l.b16 %v1377
        %v1702 = vunpack.c.h.b16 %v1377
        %v1703 = vunpack.c.l.b16 %v1378
        %v1704 = vunpack.c.h.b16 %v1378
        %v1705 = vunpack.c.l.b16 %v1379
        %v1706 = vunpack.c.h.b16 %v1379
        %v1707 = vunpack.c.l.b16 %v1380
        %v1708 = vunpack.c.h.b16 %v1380
        %v1709 = vunpack.c.l.b16 %v1381
        %v1710 = vunpack.c.h.b16 %v1381
        %v1711 = vunpack.c.l.b16 %v1382
        %v1712 = vunpack.c.h.b16 %v1382
        %v1713 = vunpack.c.l.b16 %v1383
        %v1714 = vunpack.c.h.b16 %v1383
        %v1715 = vunpack.c.l.b16 %v1384
        %v1716 = vunpack.c.h.b16 %v1384
        %v1717 = vunpack.c.l.b16 %v1385
        %v1718 = vunpack.c.h.b16 %v1385
        %v1719 = vunpack.c.l.b16 %v1386
        %v1720 = vunpack.c.h.b16 %v1386
        %v1721 = vunpack.c.l.b16 %v1387
        %v1722 = vunpack.c.h.b16 %v1387
        %v1723 = vunpack.c.l.b16 %v1388
        %v1724 = vunpack.c.h.b16 %v1388
        %v1725 = vpack.c.b16 %v1685, %v1683
        %v1726 = vpack.c.b16 %v1686, %v1684
        %v1727 = vpack.c.b16 %v1689, %v1687
        %v1728 = vpack.c.b16 %v1690, %v1688
        %v1729 = vpack.c.b16 %v1693, %v1691
        %v1730 = vpack.c.b16 %v1694, %v1692
        %v1731 = vpack.c.b16 %v1697, %v1695
        %v1732 = vpack.c.b16 %v1698, %v1696
        %v1733 = vpack.c.b16 %v1701, %v1699
        %v1734 = vpack.c.b16 %v1702, %v1700
        %v1735 = vpack.c.b16 %v1705, %v1703
        %v1736 = vpack.c.b16 %v1706, %v1704
        %v1737 = vpack.c.b16 %v1709, %v1707
        %v1738 = vpack.c.b16 %v1710, %v1708
        %v1739 = vpack.c.b16 %v1713, %v1711
        %v1740 = vpack.c.b16 %v1714, %v1712
        %v1741 = vpack.c.b16 %v1717, %v1715
        %v1742 = vpack.c.b16 %v1718, %v1716
        %v1743 = vpack.c.b16 %v1721, %v1719
        %v1744 = vpack.c.b16 %v1722, %v1720
        %v1745 = vpack.c.b16 %v1723, %v1723
        %v1746 = vpack.c.b16 %v1724, %v1724
        %v1768 = vsel %vm1556, %v1355, 0
        %v1771 = vsel %vm1556, %v1357, 0
        %v1774 = vsel %vm1556, %v1359, 0
        %v1777 = vsel %vm1556, %v1361, 0
        %v1780 = vsel %vm1556, %v1363, 0
        %v1783 = vsel %vm1572, %v1745, 0
        %v1786 = vsel %vm1572, %v1746, 0
        %1788 = vmatprep.subr.bf16.mxu0 %v1726
        %1789 = vmatpush1.bf16.msra.mxu0 %v1725
        %1790 = vmatprep.subr.bf16.mxu0 %v1728
        %1791 = vmatpush1.bf16.msra.mxu0 %v1727
        %1792 = vmatprep.subr.bf16.mxu0 %v1730
        %1793 = vmatpush1.bf16.msra.mxu0 %v1729
        %1794 = vmatprep.subr.bf16.mxu0 %v1732
        %1795 = vmatpush1.bf16.msra.mxu0 %v1731
        %1796 = vmatprep.subr.bf16.mxu0 %v1734
        %1797 = vmatpush1.bf16.msra.mxu0 %v1733
        %1798 = vmatprep.subr.bf16.mxu0 %v1736
        %1799 = vmatpush1.bf16.msra.mxu0 %v1735
        %1800 = vmatprep.subr.bf16.mxu0 %v1738
        %1801 = vmatpush1.bf16.msra.mxu0 %v1737
        %1802 = vmatprep.subr.bf16.mxu0 %v1740
        %1803 = vmatpush1.bf16.msra.mxu0 %v1739
        %1804 = vmatprep.subr.bf16.mxu0 %v1742
        %1805 = vmatpush1.bf16.msra.mxu0 %v1741
        %1806 = vmatprep.subr.bf16.mxu0 %v1744
        %1807 = vmatpush1.bf16.msra.mxu0 %v1743
        %1808 = vmatprep.subr.bf16.mxu0 %v1786
        %1809 = vmatpush1.bf16.msra.mxu0 %v1783
        %1810 = vmatprep.subr.bf16.mxu0 0
        %1811 = vmatpush1.bf16.msra.mxu0 0
        %1812 = vmatprep.subr.bf16.mxu0 0
        %1813 = vmatpush1.bf16.msra.mxu0 0
        %1814 = vmatprep.subr.bf16.mxu0 0
        %1815 = vmatpush1.bf16.msra.mxu0 0
        %1816 = vmatprep.subr.bf16.mxu0 0
        %1817 = vmatpush1.bf16.msra.mxu0 0
        %1818 = vmatprep.subr.bf16.mxu0 0
        %1819 = vmatpush1.bf16.msra.mxu0 0
        %1820 = vmatprep.mubr.bf16.mxu0 %v1768
        %1821 = vmatmul.mubr.bf16.gmra.mrb[0].mxu0 %v1354
        %v1822 = vpop.f32.mrb[0].mxu0
        %v1823 = vadd.f32 %v1614, %v1822
        %v1824 = vpop.f32.mrb[0].mxu0
        %v1825 = vadd.f32 %v1616, %v1824
        %v1826 = vpop.f32.mrb[0].mxu0
        %v1827 = vadd.f32 %v1618, %v1826
        %v1828 = vpop.f32.mrb[0].mxu0
        %v1829 = vadd.f32 %v1620, %v1828
        %1830 = vmatprep.mubr.bf16.mxu0 %v1771
        %1831 = vmatmul.mubr.bf16.gmra.mrb[0].mxu0 %v1356
        %v1832 = vpop.f32.mrb[0].mxu0
        %v1833 = vadd.f32 %v1624, %v1832
        %v1834 = vpop.f32.mrb[0].mxu0
        %v1835 = vadd.f32 %v1626, %v1834
        %v1836 = vpop.f32.mrb[0].mxu0
        %v1837 = vadd.f32 %v1628, %v1836
        %v1838 = vpop.f32.mrb[0].mxu0
        %v1839 = vadd.f32 %v1630, %v1838
        %1840 = vmatprep.mubr.bf16.mxu0 %v1774
        %1841 = vmatmul.mubr.bf16.gmra.mrb[0].mxu0 %v1358
        %v1842 = vpop.f32.mrb[0].mxu0
        %v1843 = vadd.f32 %v1634, %v1842
        %v1844 = vpop.f32.mrb[0].mxu0
        %v1845 = vadd.f32 %v1636, %v1844
        %v1846 = vpop.f32.mrb[0].mxu0
        %v1847 = vadd.f32 %v1638, %v1846
        %v1848 = vpop.f32.mrb[0].mxu0
        %v1849 = vadd.f32 %v1640, %v1848
        %1850 = vmatprep.mubr.bf16.mxu0 %v1777
        %1851 = vmatmul.mubr.bf16.gmra.mrb[0].mxu0 %v1360
        %v1852 = vpop.f32.mrb[0].mxu0
        %v1853 = vadd.f32 %v1644, %v1852
        %v1854 = vpop.f32.mrb[0].mxu0
        %v1855 = vadd.f32 %v1646, %v1854
        %v1856 = vpop.f32.mrb[0].mxu0
        %v1857 = vadd.f32 %v1648, %v1856
        %v1858 = vpop.f32.mrb[0].mxu0
        %v1859 = vadd.f32 %v1650, %v1858
        %1860 = vmatprep.mubr.bf16.mxu0 %v1780
        %1861 = vmatmul.mubr.bf16.gmra.mrb[0].mxu0 %v1362
        %v1862 = vpop.f32.mrb[0].mxu0
        %v1863 = vadd.f32 %v1654, %v1862
        %v1864 = vpop.f32.mrb[0].mxu0
        %v1865 = vadd.f32 %v1656, %v1864
        %v1866 = vpop.f32.mrb[0].mxu0
        %v1867 = vadd.f32 %v1658, %v1866
        %v1868 = vpop.f32.mrb[0].mxu0
        %v1869 = vadd.f32 %v1660, %v1868
        %1870 = vdwg.mxu0
        %s1871 = scalar_lea.vmem %s3, 336
        %v1872 = vld [vmem:[%s1871] sm:$0xff]
        %v1873 = vld [vmem:[%s1871 + $0x8] sm:$0xff]
        %v1874 = vld [vmem:[%s1871 + $0x10] sm:$0xff]
        %v1875 = vld [vmem:[%s1871 + $0x18] sm:$0xff]
        %v1876 = vld [vmem:[%s1871 + $0x20] sm:$0xff]
        %v1877 = vld [vmem:[%s1871 + $0x28] sm:$0xff]
        %v1878 = vld [vmem:[%s1871 + $0x30] sm:$0xff]
        %v1879 = vld [vmem:[%s1871 + $0x38] sm:$0xff]
        %v1880 = vld [vmem:[%s1871 + $0x40] sm:$0xff]
        %v1881 = vld [vmem:[%s1871 + $0x48] sm:$0xff]
        %v1882 = vld [vmem:[%s1871 + $0x50] sm:$0xff]
        %v1883 = vld [vmem:[%s1871 + $0x58] sm:$0xff]
        %v1884 = vld [vmem:[%s1871 + $0x60] sm:$0xff]
        %v1885 = vld [vmem:[%s1871 + $0x68] sm:$0xff]
        %v1886 = vld [vmem:[%s1871 + $0x70] sm:$0xff]
        %v1887 = vld [vmem:[%s1871 + $0x78] sm:$0xff]
        %v1888 = vld [vmem:[%s1871 + $0x80] sm:$0xff]
        %v1889 = vld [vmem:[%s1871 + $0x88] sm:$0xff]
        %v1890 = vld [vmem:[%s1871 + $0x90] sm:$0xff]
        %v1891 = vld [vmem:[%s1871 + $0x98] sm:$0xff]
        %v1892 = vld [vmem:[%s1871 + $0xa0] sm:$0xff]
        %v1914 = vunpack.c.l.b16 %v1872
        %v1915 = vunpack.c.h.b16 %v1872
        %v1916 = vunpack.c.l.b16 %v1873
        %v1917 = vunpack.c.h.b16 %v1873
        %v1918 = vunpack.c.l.b16 %v1874
        %v1919 = vunpack.c.h.b16 %v1874
        %v1920 = vunpack.c.l.b16 %v1875
        %v1921 = vunpack.c.h.b16 %v1875
        %v1922 = vunpack.c.l.b16 %v1876
        %v1923 = vunpack.c.h.b16 %v1876
        %v1924 = vunpack.c.l.b16 %v1877
        %v1925 = vunpack.c.h.b16 %v1877
        %v1926 = vunpack.c.l.b16 %v1878
        %v1927 = vunpack.c.h.b16 %v1878
        %v1928 = vunpack.c.l.b16 %v1879
        %v1929 = vunpack.c.h.b16 %v1879
        %v1930 = vunpack.c.l.b16 %v1880
        %v1931 = vunpack.c.h.b16 %v1880
        %v1932 = vunpack.c.l.b16 %v1881
        %v1933 = vunpack.c.h.b16 %v1881
        %v1934 = vunpack.c.l.b16 %v1882
        %v1935 = vunpack.c.h.b16 %v1882
        %v1936 = vunpack.c.l.b16 %v1883
        %v1937 = vunpack.c.h.b16 %v1883
        %v1938 = vunpack.c.l.b16 %v1884
        %v1939 = vunpack.c.h.b16 %v1884
        %v1940 = vunpack.c.l.b16 %v1885
        %v1941 = vunpack.c.h.b16 %v1885
        %v1942 = vunpack.c.l.b16 %v1886
        %v1943 = vunpack.c.h.b16 %v1886
        %v1944 = vunpack.c.l.b16 %v1887
        %v1945 = vunpack.c.h.b16 %v1887
        %v1946 = vunpack.c.l.b16 %v1888
        %v1947 = vunpack.c.h.b16 %v1888
        %v1948 = vunpack.c.l.b16 %v1889
        %v1949 = vunpack.c.h.b16 %v1889
        %v1950 = vunpack.c.l.b16 %v1890
        %v1951 = vunpack.c.h.b16 %v1890
        %v1952 = vunpack.c.l.b16 %v1891
        %v1953 = vunpack.c.h.b16 %v1891
        %v1954 = vunpack.c.l.b16 %v1892
        %v1955 = vunpack.c.h.b16 %v1892
        %v1956 = vpack.c.b16 %v1916, %v1914
        %v1957 = vpack.c.b16 %v1917, %v1915
        %v1958 = vpack.c.b16 %v1920, %v1918
        %v1959 = vpack.c.b16 %v1921, %v1919
        %v1960 = vpack.c.b16 %v1924, %v1922
        %v1961 = vpack.c.b16 %v1925, %v1923
        %v1962 = vpack.c.b16 %v1928, %v1926
        %v1963 = vpack.c.b16 %v1929, %v1927
        %v1964 = vpack.c.b16 %v1932, %v1930
        %v1965 = vpack.c.b16 %v1933, %v1931
        %v1966 = vpack.c.b16 %v1936, %v1934
        %v1967 = vpack.c.b16 %v1937, %v1935
        %v1968 = vpack.c.b16 %v1940, %v1938
        %v1969 = vpack.c.b16 %v1941, %v1939
        %v1970 = vpack.c.b16 %v1944, %v1942
        %v1971 = vpack.c.b16 %v1945, %v1943
        %v1972 = vpack.c.b16 %v1948, %v1946
        %v1973 = vpack.c.b16 %v1949, %v1947
        %v1974 = vpack.c.b16 %v1952, %v1950
        %v1975 = vpack.c.b16 %v1953, %v1951
        %v1976 = vpack.c.b16 %v1954, %v1954
        %v1977 = vpack.c.b16 %v1955, %v1955
        %v1999 = vsel %vm1556, %v1365, 0
        %v2002 = vsel %vm1572, %v1976, 0
        %v2005 = vsel %vm1572, %v1977, 0
        %2007 = vmatprep.subr.bf16.mxu0 %v1957
        %2008 = vmatpush1.bf16.msra.mxu0 %v1956
        %2009 = vmatprep.subr.bf16.mxu0 %v1959
        %2010 = vmatpush1.bf16.msra.mxu0 %v1958
        %2011 = vmatprep.subr.bf16.mxu0 %v1961
        %2012 = vmatpush1.bf16.msra.mxu0 %v1960
        %2013 = vmatprep.subr.bf16.mxu0 %v1963
        %2014 = vmatpush1.bf16.msra.mxu0 %v1962
        %2015 = vmatprep.subr.bf16.mxu0 %v1965
        %2016 = vmatpush1.bf16.msra.mxu0 %v1964
        %2017 = vmatprep.subr.bf16.mxu0 %v1967
        %2018 = vmatpush1.bf16.msra.mxu0 %v1966
        %2019 = vmatprep.subr.bf16.mxu0 %v1969
        %2020 = vmatpush1.bf16.msra.mxu0 %v1968
        %2021 = vmatprep.subr.bf16.mxu0 %v1971
        %2022 = vmatpush1.bf16.msra.mxu0 %v1970
        %2023 = vmatprep.subr.bf16.mxu0 %v1973
        %2024 = vmatpush1.bf16.msra.mxu0 %v1972
        %2025 = vmatprep.subr.bf16.mxu0 %v1975
        %2026 = vmatpush1.bf16.msra.mxu0 %v1974
        %2027 = vmatprep.subr.bf16.mxu0 %v2005
        %2028 = vmatpush1.bf16.msra.mxu0 %v2002
        %2029 = vmatprep.subr.bf16.mxu0 0
        %2030 = vmatpush1.bf16.msra.mxu0 0
        %2031 = vmatprep.subr.bf16.mxu0 0
        %2032 = vmatpush1.bf16.msra.mxu0 0
        %2033 = vmatprep.subr.bf16.mxu0 0
        %2034 = vmatpush1.bf16.msra.mxu0 0
        %2035 = vmatprep.subr.bf16.mxu0 0
        %2036 = vmatpush1.bf16.msra.mxu0 0
        %2037 = vmatprep.subr.bf16.mxu0 0
        %2038 = vmatpush1.bf16.msra.mxu0 0
        %2039 = vmatprep.mubr.bf16.mxu0 %v1771
        %2040 = vmatmul.mubr.bf16.gmra.mrb[0].mxu0 %v1356
        %v2041 = vpop.f32.mrb[0].mxu0
        %v2042 = vadd.f32 0.0, %v2041
        %v2043 = vpop.f32.mrb[0].mxu0
        %v2044 = vadd.f32 0.0, %v2043
        %v2045 = vpop.f32.mrb[0].mxu0
        %v2046 = vadd.f32 0.0, %v2045
        %v2047 = vpop.f32.mrb[0].mxu0
        %v2048 = vadd.f32 0.0, %v2047
        %2049 = vmatprep.mubr.bf16.mxu0 %v1774
        %2050 = vmatmul.mubr.bf16.gmra.mrb[0].mxu0 %v1358
        %v2051 = vpop.f32.mrb[0].mxu0
        %v2052 = vadd.f32 0.0, %v2051
        %v2053 = vpop.f32.mrb[0].mxu0
        %v2054 = vadd.f32 0.0, %v2053
        %v2055 = vpop.f32.mrb[0].mxu0
        %v2056 = vadd.f32 0.0, %v2055
        %v2057 = vpop.f32.mrb[0].mxu0
        %v2058 = vadd.f32 0.0, %v2057
        %2059 = vmatprep.mubr.bf16.mxu0 %v1777
        %2060 = vmatmul.mubr.bf16.gmra.mrb[0].mxu0 %v1360
        %v2061 = vpop.f32.mrb[0].mxu0
        %v2062 = vadd.f32 0.0, %v2061
        %v2063 = vpop.f32.mrb[0].mxu0
        %v2064 = vadd.f32 0.0, %v2063
        %v2065 = vpop.f32.mrb[0].mxu0
        %v2066 = vadd.f32 0.0, %v2065
        %v2067 = vpop.f32.mrb[0].mxu0
        %v2068 = vadd.f32 0.0, %v2067
        %2069 = vmatprep.mubr.bf16.mxu0 %v1780
        %2070 = vmatmul.mubr.bf16.gmra.mrb[0].mxu0 %v1362
        %v2071 = vpop.f32.mrb[0].mxu0
        %v2072 = vadd.f32 0.0, %v2071
        %v2073 = vpop.f32.mrb[0].mxu0
        %v2074 = vadd.f32 0.0, %v2073
        %v2075 = vpop.f32.mrb[0].mxu0
        %v2076 = vadd.f32 0.0, %v2075
        %v2077 = vpop.f32.mrb[0].mxu0
        %v2078 = vadd.f32 0.0, %v2077
        %2079 = vmatprep.mubr.bf16.mxu0 %v1999
        %2080 = vmatmul.mubr.bf16.gmra.mrb[0].mxu0 %v1364
        %v2081 = vpop.f32.mrb[0].mxu0
        %v2082 = vadd.f32 0.0, %v2081
        %v2083 = vpop.f32.mrb[0].mxu0
        %v2084 = vadd.f32 0.0, %v2083
        %v2085 = vpop.f32.mrb[0].mxu0
        %v2086 = vadd.f32 0.0, %v2085
        %v2087 = vpop.f32.mrb[0].mxu0
        %v2088 = vadd.f32 0.0, %v2087
        %2089 = vdwg.mxu0
        %v2090 = vadd.f32 %v1823, %v2042
        %v2091 = vadd.f32 %v1825, %v2044
        %v2092 = vadd.f32 %v1827, %v2046
        %v2093 = vadd.f32 %v1829, %v2048
        %v2094 = vadd.f32 %v1833, %v2052
        %v2095 = vadd.f32 %v1835, %v2054
        %v2096 = vadd.f32 %v1837, %v2056
        %v2097 = vadd.f32 %v1839, %v2058
        %v2098 = vadd.f32 %v1843, %v2062
        %v2099 = vadd.f32 %v1845, %v2064
        %v2100 = vadd.f32 %v1847, %v2066
        %v2101 = vadd.f32 %v1849, %v2068
        %v2102 = vadd.f32 %v1853, %v2072
        %v2103 = vadd.f32 %v1855, %v2074
        %v2104 = vadd.f32 %v1857, %v2076
        %v2105 = vadd.f32 %v1859, %v2078
        %v2106 = vadd.f32 %v1863, %v2082
        %v2107 = vadd.f32 %v1865, %v2084
        %v2108 = vadd.f32 %v1867, %v2086
        %v2109 = vadd.f32 %v1869, %v2088
        %s2110 = scalar_lea.vmem %s3, 504
        %v2111 = vld [vmem:[%s2110] sm:$0xff]
        %v2112 = vld [vmem:[%s2110 + $0x8] sm:$0xff]
        %v2113 = vld [vmem:[%s2110 + $0x10] sm:$0xff]
        %v2114 = vld [vmem:[%s2110 + $0x18] sm:$0xff]
        %v2115 = vld [vmem:[%s2110 + $0x20] sm:$0xff]
        %v2116 = vld [vmem:[%s2110 + $0x28] sm:$0xff]
        %v2117 = vld [vmem:[%s2110 + $0x30] sm:$0xff]
        %v2118 = vld [vmem:[%s2110 + $0x38] sm:$0xff]
        %v2119 = vld [vmem:[%s2110 + $0x40] sm:$0xff]
        %v2120 = vld [vmem:[%s2110 + $0x48] sm:$0xff]
        %v2121 = vld [vmem:[%s2110 + $0x50] sm:$0xff]
        %v2122 = vld [vmem:[%s2110 + $0x58] sm:$0xff]
        %v2123 = vld [vmem:[%s2110 + $0x60] sm:$0xff]
        %v2124 = vld [vmem:[%s2110 + $0x68] sm:$0xff]
        %v2125 = vld [vmem:[%s2110 + $0x70] sm:$0xff]
        %v2126 = vld [vmem:[%s2110 + $0x78] sm:$0xff]
        %v2127 = vld [vmem:[%s2110 + $0x80] sm:$0xff]
        %v2128 = vld [vmem:[%s2110 + $0x88] sm:$0xff]
        %v2129 = vld [vmem:[%s2110 + $0x90] sm:$0xff]
        %v2130 = vld [vmem:[%s2110 + $0x98] sm:$0xff]
        %v2131 = vld [vmem:[%s2110 + $0xa0] sm:$0xff]
        %v2134 = vrot.slane %v1366, 4
        %v2135 = vsel %vm1423, %v1442, %v2134
        %v2136 = vrot.slane %v1367, 4
        %v2137 = vsel %vm1423, %v1444, %v2136
        %v2160 = vunpack.c.l.b16 %v2111
        %v2161 = vunpack.c.h.b16 %v2111
        %v2162 = vunpack.c.l.b16 %v2112
        %v2163 = vunpack.c.h.b16 %v2112
        %v2164 = vunpack.c.l.b16 %v2113
        %v2165 = vunpack.c.h.b16 %v2113
        %v2166 = vunpack.c.l.b16 %v2114
        %v2167 = vunpack.c.h.b16 %v2114
        %v2168 = vunpack.c.l.b16 %v2115
        %v2169 = vunpack.c.h.b16 %v2115
        %v2170 = vunpack.c.l.b16 %v2116
        %v2171 = vunpack.c.h.b16 %v2116
        %v2172 = vunpack.c.l.b16 %v2117
        %v2173 = vunpack.c.h.b16 %v2117
        %v2174 = vunpack.c.l.b16 %v2118
        %v2175 = vunpack.c.h.b16 %v2118
        %v2176 = vunpack.c.l.b16 %v2119
        %v2177 = vunpack.c.h.b16 %v2119
        %v2178 = vunpack.c.l.b16 %v2120
        %v2179 = vunpack.c.h.b16 %v2120
        %v2180 = vunpack.c.l.b16 %v2121
        %v2181 = vunpack.c.h.b16 %v2121
        %v2182 = vunpack.c.l.b16 %v2122
        %v2183 = vunpack.c.h.b16 %v2122
        %v2184 = vunpack.c.l.b16 %v2123
        %v2185 = vunpack.c.h.b16 %v2123
        %v2186 = vunpack.c.l.b16 %v2124
        %v2187 = vunpack.c.h.b16 %v2124
        %v2188 = vunpack.c.l.b16 %v2125
        %v2189 = vunpack.c.h.b16 %v2125
        %v2190 = vunpack.c.l.b16 %v2126
        %v2191 = vunpack.c.h.b16 %v2126
        %v2192 = vunpack.c.l.b16 %v2127
        %v2193 = vunpack.c.h.b16 %v2127
        %v2194 = vunpack.c.l.b16 %v2128
        %v2195 = vunpack.c.h.b16 %v2128
        %v2196 = vunpack.c.l.b16 %v2129
        %v2197 = vunpack.c.h.b16 %v2129
        %v2198 = vunpack.c.l.b16 %v2130
        %v2199 = vunpack.c.h.b16 %v2130
        %v2200 = vunpack.c.l.b16 %v2131
        %v2201 = vunpack.c.h.b16 %v2131
        %v2202 = vpack.c.b16 %v2162, %v2160
        %v2203 = vpack.c.b16 %v2163, %v2161
        %v2204 = vpack.c.b16 %v2166, %v2164
        %v2205 = vpack.c.b16 %v2167, %v2165
        %v2206 = vpack.c.b16 %v2170, %v2168
        %v2207 = vpack.c.b16 %v2171, %v2169
        %v2208 = vpack.c.b16 %v2174, %v2172
        %v2209 = vpack.c.b16 %v2175, %v2173
        %v2210 = vpack.c.b16 %v2178, %v2176
        %v2211 = vpack.c.b16 %v2179, %v2177
        %v2212 = vpack.c.b16 %v2182, %v2180
        %v2213 = vpack.c.b16 %v2183, %v2181
        %v2214 = vpack.c.b16 %v2186, %v2184
        %v2215 = vpack.c.b16 %v2187, %v2185
        %v2216 = vpack.c.b16 %v2190, %v2188
        %v2217 = vpack.c.b16 %v2191, %v2189
        %v2218 = vpack.c.b16 %v2194, %v2192
        %v2219 = vpack.c.b16 %v2195, %v2193
        %v2220 = vpack.c.b16 %v2198, %v2196
        %v2221 = vpack.c.b16 %v2199, %v2197
        %v2222 = vpack.c.b16 %v2200, %v2200
        %v2223 = vpack.c.b16 %v2201, %v2201
        %v2245 = vsel %vm1556, %v2137, 0
        %v2248 = vsel %vm1572, %v2222, 0
        %v2251 = vsel %vm1572, %v2223, 0
        %2253 = vmatprep.subr.bf16.mxu0 %v2203
        %2254 = vmatpush1.bf16.msra.mxu0 %v2202
        %2255 = vmatprep.subr.bf16.mxu0 %v2205
        %2256 = vmatpush1.bf16.msra.mxu0 %v2204
        %2257 = vmatprep.subr.bf16.mxu0 %v2207
        %2258 = vmatpush1.bf16.msra.mxu0 %v2206
        %2259 = vmatprep.subr.bf16.mxu0 %v2209
        %2260 = vmatpush1.bf16.msra.mxu0 %v2208
        %2261 = vmatprep.subr.bf16.mxu0 %v2211
        %2262 = vmatpush1.bf16.msra.mxu0 %v2210
        %2263 = vmatprep.subr.bf16.mxu0 %v2213
        %2264 = vmatpush1.bf16.msra.mxu0 %v2212
        %2265 = vmatprep.subr.bf16.mxu0 %v2215
        %2266 = vmatpush1.bf16.msra.mxu0 %v2214
        %2267 = vmatprep.subr.bf16.mxu0 %v2217
        %2268 = vmatpush1.bf16.msra.mxu0 %v2216
        %2269 = vmatprep.subr.bf16.mxu0 %v2219
        %2270 = vmatpush1.bf16.msra.mxu0 %v2218
        %2271 = vmatprep.subr.bf16.mxu0 %v2221
        %2272 = vmatpush1.bf16.msra.mxu0 %v2220
        %2273 = vmatprep.subr.bf16.mxu0 %v2251
        %2274 = vmatpush1.bf16.msra.mxu0 %v2248
        %2275 = vmatprep.subr.bf16.mxu0 0
        %2276 = vmatpush1.bf16.msra.mxu0 0
        %2277 = vmatprep.subr.bf16.mxu0 0
        %2278 = vmatpush1.bf16.msra.mxu0 0
        %2279 = vmatprep.subr.bf16.mxu0 0
        %2280 = vmatpush1.bf16.msra.mxu0 0
        %2281 = vmatprep.subr.bf16.mxu0 0
        %2282 = vmatpush1.bf16.msra.mxu0 0
        %2283 = vmatprep.subr.bf16.mxu0 0
        %2284 = vmatpush1.bf16.msra.mxu0 0
        %2285 = vmatprep.mubr.bf16.mxu0 %v1561
        %2286 = vmatmul.mubr.bf16.gmra.mrb[0].mxu0 %v1431
        %v2287 = vpop.f32.mrb[0].mxu0
        %v2288 = vadd.f32 0.0, %v2287
        %v2289 = vpop.f32.mrb[0].mxu0
        %v2290 = vadd.f32 0.0, %v2289
        %v2291 = vpop.f32.mrb[0].mxu0
        %v2292 = vadd.f32 0.0, %v2291
        %v2293 = vpop.f32.mrb[0].mxu0
        %v2294 = vadd.f32 0.0, %v2293
        %2295 = vmatprep.mubr.bf16.mxu0 %v1564
        %2296 = vmatmul.mubr.bf16.gmra.mrb[0].mxu0 %v1435
        %v2297 = vpop.f32.mrb[0].mxu0
        %v2298 = vadd.f32 0.0, %v2297
        %v2299 = vpop.f32.mrb[0].mxu0
        %v2300 = vadd.f32 0.0, %v2299
        %v2301 = vpop.f32.mrb[0].mxu0
        %v2302 = vadd.f32 0.0, %v2301
        %v2303 = vpop.f32.mrb[0].mxu0
        %v2304 = vadd.f32 0.0, %v2303
        %2305 = vmatprep.mubr.bf16.mxu0 %v1567
        %2306 = vmatmul.mubr.bf16.gmra.mrb[0].mxu0 %v1439
        %v2307 = vpop.f32.mrb[0].mxu0
        %v2308 = vadd.f32 0.0, %v2307
        %v2309 = vpop.f32.mrb[0].mxu0
        %v2310 = vadd.f32 0.0, %v2309
        %v2311 = vpop.f32.mrb[0].mxu0
        %v2312 = vadd.f32 0.0, %v2311
        %v2313 = vpop.f32.mrb[0].mxu0
        %v2314 = vadd.f32 0.0, %v2313
        %2315 = vmatprep.mubr.bf16.mxu0 %v1570
        %2316 = vmatmul.mubr.bf16.gmra.mrb[0].mxu0 %v1443
        %v2317 = vpop.f32.mrb[0].mxu0
        %v2318 = vadd.f32 0.0, %v2317
        %v2319 = vpop.f32.mrb[0].mxu0
        %v2320 = vadd.f32 0.0, %v2319
        %v2321 = vpop.f32.mrb[0].mxu0
        %v2322 = vadd.f32 0.0, %v2321
        %v2323 = vpop.f32.mrb[0].mxu0
        %v2324 = vadd.f32 0.0, %v2323
        %2325 = vmatprep.mubr.bf16.mxu0 %v2245
        %2326 = vmatmul.mubr.bf16.gmra.mrb[0].mxu0 %v2135
        %v2327 = vpop.f32.mrb[0].mxu0
        %v2328 = vadd.f32 0.0, %v2327
        %v2329 = vpop.f32.mrb[0].mxu0
        %v2330 = vadd.f32 0.0, %v2329
        %v2331 = vpop.f32.mrb[0].mxu0
        %v2332 = vadd.f32 0.0, %v2331
        %v2333 = vpop.f32.mrb[0].mxu0
        %v2334 = vadd.f32 0.0, %v2333
        %2335 = vdwg.mxu0
        %v2336 = vadd.f32 %v2090, %v2288
        %v2337 = vadd.f32 %v2091, %v2290
        %v2338 = vadd.f32 %v2092, %v2292
        %v2339 = vadd.f32 %v2093, %v2294
        %v2340 = vadd.f32 %v2094, %v2298
        %v2341 = vadd.f32 %v2095, %v2300
        %v2342 = vadd.f32 %v2096, %v2302
        %v2343 = vadd.f32 %v2097, %v2304
        %v2344 = vadd.f32 %v2098, %v2308
        %v2345 = vadd.f32 %v2099, %v2310
        %v2346 = vadd.f32 %v2100, %v2312
        %v2347 = vadd.f32 %v2101, %v2314
        %v2348 = vadd.f32 %v2102, %v2318
        %v2349 = vadd.f32 %v2103, %v2320
        %v2350 = vadd.f32 %v2104, %v2322
        %v2351 = vadd.f32 %v2105, %v2324
        %v2352 = vadd.f32 %v2106, %v2328
        %v2353 = vadd.f32 %v2107, %v2330
        %v2354 = vadd.f32 %v2108, %v2332
        %v2355 = vadd.f32 %v2109, %v2334
        %s2356 = scalar_lea.vmem %s3, 672
        %v2357 = vld [vmem:[%s2356] sm:$0xff]
        %v2358 = vld [vmem:[%s2356 + $0x8] sm:$0xff]
        %v2359 = vld [vmem:[%s2356 + $0x10] sm:$0xff]
        %v2360 = vld [vmem:[%s2356 + $0x18] sm:$0xff]
        %v2361 = vld [vmem:[%s2356 + $0x20] sm:$0xff]
        %v2362 = vld [vmem:[%s2356 + $0x28] sm:$0xff]
        %v2363 = vld [vmem:[%s2356 + $0x30] sm:$0xff]
        %v2364 = vld [vmem:[%s2356 + $0x38] sm:$0xff]
        %v2365 = vld [vmem:[%s2356 + $0x40] sm:$0xff]
        %v2366 = vld [vmem:[%s2356 + $0x48] sm:$0xff]
        %v2367 = vld [vmem:[%s2356 + $0x50] sm:$0xff]
        %v2368 = vld [vmem:[%s2356 + $0x58] sm:$0xff]
        %v2369 = vld [vmem:[%s2356 + $0x60] sm:$0xff]
        %v2370 = vld [vmem:[%s2356 + $0x68] sm:$0xff]
        %v2371 = vld [vmem:[%s2356 + $0x70] sm:$0xff]
        %v2372 = vld [vmem:[%s2356 + $0x78] sm:$0xff]
        %v2373 = vld [vmem:[%s2356 + $0x80] sm:$0xff]
        %v2374 = vld [vmem:[%s2356 + $0x88] sm:$0xff]
        %v2375 = vld [vmem:[%s2356 + $0x90] sm:$0xff]
        %v2376 = vld [vmem:[%s2356 + $0x98] sm:$0xff]
        %v2377 = vld [vmem:[%s2356 + $0xa0] sm:$0xff]
        %v2399 = vunpack.c.l.b16 %v2357
        %v2400 = vunpack.c.h.b16 %v2357
        %v2401 = vunpack.c.l.b16 %v2358
        %v2402 = vunpack.c.h.b16 %v2358
        %v2403 = vunpack.c.l.b16 %v2359
        %v2404 = vunpack.c.h.b16 %v2359
        %v2405 = vunpack.c.l.b16 %v2360
        %v2406 = vunpack.c.h.b16 %v2360
        %v2407 = vunpack.c.l.b16 %v2361
        %v2408 = vunpack.c.h.b16 %v2361
        %v2409 = vunpack.c.l.b16 %v2362
        %v2410 = vunpack.c.h.b16 %v2362
        %v2411 = vunpack.c.l.b16 %v2363
        %v2412 = vunpack.c.h.b16 %v2363
        %v2413 = vunpack.c.l.b16 %v2364
        %v2414 = vunpack.c.h.b16 %v2364
        %v2415 = vunpack.c.l.b16 %v2365
        %v2416 = vunpack.c.h.b16 %v2365
        %v2417 = vunpack.c.l.b16 %v2366
        %v2418 = vunpack.c.h.b16 %v2366
        %v2419 = vunpack.c.l.b16 %v2367
        %v2420 = vunpack.c.h.b16 %v2367
        %v2421 = vunpack.c.l.b16 %v2368
        %v2422 = vunpack.c.h.b16 %v2368
        %v2423 = vunpack.c.l.b16 %v2369
        %v2424 = vunpack.c.h.b16 %v2369
        %v2425 = vunpack.c.l.b16 %v2370
        %v2426 = vunpack.c.h.b16 %v2370
        %v2427 = vunpack.c.l.b16 %v2371
        %v2428 = vunpack.c.h.b16 %v2371
        %v2429 = vunpack.c.l.b16 %v2372
        %v2430 = vunpack.c.h.b16 %v2372
        %v2431 = vunpack.c.l.b16 %v2373
        %v2432 = vunpack.c.h.b16 %v2373
        %v2433 = vunpack.c.l.b16 %v2374
        %v2434 = vunpack.c.h.b16 %v2374
        %v2435 = vunpack.c.l.b16 %v2375
        %v2436 = vunpack.c.h.b16 %v2375
        %v2437 = vunpack.c.l.b16 %v2376
        %v2438 = vunpack.c.h.b16 %v2376
        %v2439 = vunpack.c.l.b16 %v2377
        %v2440 = vunpack.c.h.b16 %v2377
        %v2441 = vpack.c.b16 %v2401, %v2399
        %v2442 = vpack.c.b16 %v2402, %v2400
        %v2443 = vpack.c.b16 %v2405, %v2403
        %v2444 = vpack.c.b16 %v2406, %v2404
        %v2445 = vpack.c.b16 %v2409, %v2407
        %v2446 = vpack.c.b16 %v2410, %v2408
        %v2447 = vpack.c.b16 %v2413, %v2411
        %v2448 = vpack.c.b16 %v2414, %v2412
        %v2449 = vpack.c.b16 %v2417, %v2415
        %v2450 = vpack.c.b16 %v2418, %v2416
        %v2451 = vpack.c.b16 %v2421, %v2419
        %v2452 = vpack.c.b16 %v2422, %v2420
        %v2453 = vpack.c.b16 %v2425, %v2423
        %v2454 = vpack.c.b16 %v2426, %v2424
        %v2455 = vpack.c.b16 %v2429, %v2427
        %v2456 = vpack.c.b16 %v2430, %v2428
        %v2457 = vpack.c.b16 %v2433, %v2431
        %v2458 = vpack.c.b16 %v2434, %v2432
        %v2459 = vpack.c.b16 %v2437, %v2435
        %v2460 = vpack.c.b16 %v2438, %v2436
        %v2461 = vpack.c.b16 %v2439, %v2439
        %v2462 = vpack.c.b16 %v2440, %v2440
        %v2484 = vsel %vm1556, %v1367, 0
        %v2487 = vsel %vm1572, %v2461, 0
        %v2490 = vsel %vm1572, %v2462, 0
        %2492 = vmatprep.subr.bf16.mxu0 %v2442
        %2493 = vmatpush1.bf16.msra.mxu0 %v2441
        %2494 = vmatprep.subr.bf16.mxu0 %v2444
        %2495 = vmatpush1.bf16.msra.mxu0 %v2443
        %2496 = vmatprep.subr.bf16.mxu0 %v2446
        %2497 = vmatpush1.bf16.msra.mxu0 %v2445
        %2498 = vmatprep.subr.bf16.mxu0 %v2448
        %2499 = vmatpush1.bf16.msra.mxu0 %v2447
        %2500 = vmatprep.subr.bf16.mxu0 %v2450
        %2501 = vmatpush1.bf16.msra.mxu0 %v2449
        %2502 = vmatprep.subr.bf16.mxu0 %v2452
        %2503 = vmatpush1.bf16.msra.mxu0 %v2451
        %2504 = vmatprep.subr.bf16.mxu0 %v2454
        %2505 = vmatpush1.bf16.msra.mxu0 %v2453
        %2506 = vmatprep.subr.bf16.mxu0 %v2456
        %2507 = vmatpush1.bf16.msra.mxu0 %v2455
        %2508 = vmatprep.subr.bf16.mxu0 %v2458
        %2509 = vmatpush1.bf16.msra.mxu0 %v2457
        %2510 = vmatprep.subr.bf16.mxu0 %v2460
        %2511 = vmatpush1.bf16.msra.mxu0 %v2459
        %2512 = vmatprep.subr.bf16.mxu0 %v2490
        %2513 = vmatpush1.bf16.msra.mxu0 %v2487
        %2514 = vmatprep.subr.bf16.mxu0 0
        %2515 = vmatpush1.bf16.msra.mxu0 0
        %2516 = vmatprep.subr.bf16.mxu0 0
        %2517 = vmatpush1.bf16.msra.mxu0 0
        %2518 = vmatprep.subr.bf16.mxu0 0
        %2519 = vmatpush1.bf16.msra.mxu0 0
        %2520 = vmatprep.subr.bf16.mxu0 0
        %2521 = vmatpush1.bf16.msra.mxu0 0
        %2522 = vmatprep.subr.bf16.mxu0 0
        %2523 = vmatpush1.bf16.msra.mxu0 0
        %2524 = vmatprep.mubr.bf16.mxu0 %v1774
        %2525 = vmatmul.mubr.bf16.gmra.mrb[0].mxu0 %v1358
        %v2526 = vpop.f32.mrb[0].mxu0
        %v2527 = vadd.f32 0.0, %v2526
        %v2528 = vpop.f32.mrb[0].mxu0
        %v2529 = vadd.f32 0.0, %v2528
        %v2530 = vpop.f32.mrb[0].mxu0
        %v2531 = vadd.f32 0.0, %v2530
        %v2532 = vpop.f32.mrb[0].mxu0
        %v2533 = vadd.f32 0.0, %v2532
        %2534 = vmatprep.mubr.bf16.mxu0 %v1777
        %2535 = vmatmul.mubr.bf16.gmra.mrb[0].mxu0 %v1360
        %v2536 = vpop.f32.mrb[0].mxu0
        %v2537 = vadd.f32 0.0, %v2536
        %v2538 = vpop.f32.mrb[0].mxu0
        %v2539 = vadd.f32 0.0, %v2538
        %v2540 = vpop.f32.mrb[0].mxu0
        %v2541 = vadd.f32 0.0, %v2540
        %v2542 = vpop.f32.mrb[0].mxu0
        %v2543 = vadd.f32 0.0, %v2542
        %2544 = vmatprep.mubr.bf16.mxu0 %v1780
        %2545 = vmatmul.mubr.bf16.gmra.mrb[0].mxu0 %v1362
        %v2546 = vpop.f32.mrb[0].mxu0
        %v2547 = vadd.f32 0.0, %v2546
        %v2548 = vpop.f32.mrb[0].mxu0
        %v2549 = vadd.f32 0.0, %v2548
        %v2550 = vpop.f32.mrb[0].mxu0
        %v2551 = vadd.f32 0.0, %v2550
        %v2552 = vpop.f32.mrb[0].mxu0
        %v2553 = vadd.f32 0.0, %v2552
        %2554 = vmatprep.mubr.bf16.mxu0 %v1999
        %2555 = vmatmul.mubr.bf16.gmra.mrb[0].mxu0 %v1364
        %v2556 = vpop.f32.mrb[0].mxu0
        %v2557 = vadd.f32 0.0, %v2556
        %v2558 = vpop.f32.mrb[0].mxu0
        %v2559 = vadd.f32 0.0, %v2558
        %v2560 = vpop.f32.mrb[0].mxu0
        %v2561 = vadd.f32 0.0, %v2560
        %v2562 = vpop.f32.mrb[0].mxu0
        %v2563 = vadd.f32 0.0, %v2562
        %2564 = vmatprep.mubr.bf16.mxu0 %v2484
        %2565 = vmatmul.mubr.bf16.gmra.mrb[0].mxu0 %v1366
        %v2566 = vpop.f32.mrb[0].mxu0
        %v2567 = vadd.f32 0.0, %v2566
        %v2568 = vpop.f32.mrb[0].mxu0
        %v2569 = vadd.f32 0.0, %v2568
        %v2570 = vpop.f32.mrb[0].mxu0
        %v2571 = vadd.f32 0.0, %v2570
        %v2572 = vpop.f32.mrb[0].mxu0
        %v2573 = vadd.f32 0.0, %v2572
        %2574 = vdwg.mxu0
        %v2575 = vadd.f32 %v2336, %v2527
        %v2576 = vadd.f32 %v2337, %v2529
        %v2577 = vadd.f32 %v2338, %v2531
        %v2578 = vadd.f32 %v2339, %v2533
        %v2579 = vadd.f32 %v2340, %v2537
        %v2580 = vadd.f32 %v2341, %v2539
        %v2581 = vadd.f32 %v2342, %v2541
        %v2582 = vadd.f32 %v2343, %v2543
        %v2583 = vadd.f32 %v2344, %v2547
        %v2584 = vadd.f32 %v2345, %v2549
        %v2585 = vadd.f32 %v2346, %v2551
        %v2586 = vadd.f32 %v2347, %v2553
        %v2587 = vadd.f32 %v2348, %v2557
        %v2588 = vadd.f32 %v2349, %v2559
        %v2589 = vadd.f32 %v2350, %v2561
        %v2590 = vadd.f32 %v2351, %v2563
        %v2591 = vadd.f32 %v2352, %v2567
        %v2592 = vadd.f32 %v2353, %v2569
        %v2593 = vadd.f32 %v2354, %v2571
        %v2594 = vadd.f32 %v2355, %v2573
        %v2595 = vlaneseq
        %v2596 = vshrl.u32 %v2595, 7
        %v2597 = vsub.s32 1, %v2596
        %v2598 = vrot.slane %v278, %v2597
        %v2599 = vlaneseq
        %v2600 = vshrl.u32 %v2599, 7
        %v2601 = vsub.s32 5, %v2600
        %v2602 = vrot.slane %v278, %v2601
        %v2605 = vlaneseq
        %v2606 = vshrl.u32 %v2605, 7
        %v2607 = vsub.s32 1, %v2606
        %v2608 = vrot.slane %v2598, %v2607
        %v2609 = vlaneseq
        %v2610 = vshrl.u32 %v2609, 7
        %v2611 = vsub.s32 1, %v2610
        %v2612 = vrot.slane %v2602, %v2611
        %v2613 = vadd.f32 %v2575, %v2608
        %v2614 = vadd.f32 %v2576, %v2612
        %v2615 = vadd.f32 %v2577, %v2608
        %v2616 = vadd.f32 %v2578, %v2612
        %v2617 = vadd.f32 %v2579, %v2608
        %v2618 = vadd.f32 %v2580, %v2612
        %v2619 = vadd.f32 %v2581, %v2608
        %v2620 = vadd.f32 %v2582, %v2612
        %v2621 = vadd.f32 %v2583, %v2608
        %v2622 = vadd.f32 %v2584, %v2612
        %v2623 = vadd.f32 %v2585, %v2608
        %v2624 = vadd.f32 %v2586, %v2612
        %v2625 = vadd.f32 %v2587, %v2608
        %v2626 = vadd.f32 %v2588, %v2612
        %v2627 = vadd.f32 %v2589, %v2608
        %v2628 = vadd.f32 %v2590, %v2612
        %v2629 = vadd.f32 %v2591, %v2608
        %v2630 = vadd.f32 %v2592, %v2612
        %v2631 = vadd.f32 %v2593, %v2608
        %v2632 = vadd.f32 %v2594, %v2612
        %v2633 = vxor.u32 %v2613, 2147483648
        %v2634 = vxor.u32 %v2614, 2147483648
        %v2635 = vxor.u32 %v2615, 2147483648
        %v2636 = vxor.u32 %v2616, 2147483648
        %v2637 = vxor.u32 %v2617, 2147483648
        %v2638 = vxor.u32 %v2618, 2147483648
        %v2639 = vxor.u32 %v2619, 2147483648
        %v2640 = vxor.u32 %v2620, 2147483648
        %v2641 = vxor.u32 %v2621, 2147483648
        %v2642 = vxor.u32 %v2622, 2147483648
        %v2643 = vxor.u32 %v2623, 2147483648
        %v2644 = vxor.u32 %v2624, 2147483648
        %v2645 = vxor.u32 %v2625, 2147483648
        %v2646 = vxor.u32 %v2626, 2147483648
        %v2647 = vxor.u32 %v2627, 2147483648
        %v2648 = vxor.u32 %v2628, 2147483648
        %v2649 = vxor.u32 %v2629, 2147483648
        %v2650 = vxor.u32 %v2630, 2147483648
        %v2651 = vxor.u32 %v2631, 2147483648
        %v2652 = vxor.u32 %v2632, 2147483648
        %v2653 = vmul.f32 %v2633, 1.442695
        %v2654 = vpow.pop %v2653
        %v2655 = vmul.f32 %v2634, 1.442695
        %v2656 = vpow.pop %v2655
        %v2657 = vmul.f32 %v2635, 1.442695
        %v2658 = vpow.pop %v2657
        %v2659 = vmul.f32 %v2636, 1.442695
        %v2660 = vpow.pop %v2659
        %v2661 = vmul.f32 %v2637, 1.442695
        %v2662 = vpow.pop %v2661
        %v2663 = vmul.f32 %v2638, 1.442695
        %v2664 = vpow.pop %v2663
        %v2665 = vmul.f32 %v2639, 1.442695
        %v2666 = vpow.pop %v2665
        %v2667 = vmul.f32 %v2640, 1.442695
        %v2668 = vpow.pop %v2667
        %v2669 = vmul.f32 %v2641, 1.442695
        %v2670 = vpow.pop %v2669
        %v2671 = vmul.f32 %v2642, 1.442695
        %v2672 = vpow.pop %v2671
        %v2673 = vmul.f32 %v2643, 1.442695
        %v2674 = vpow.pop %v2673
        %v2675 = vmul.f32 %v2644, 1.442695
        %v2676 = vpow.pop %v2675
        %v2677 = vmul.f32 %v2645, 1.442695
        %v2678 = vpow.pop %v2677
        %v2679 = vmul.f32 %v2646, 1.442695
        %v2680 = vpow.pop %v2679
        %v2681 = vmul.f32 %v2647, 1.442695
        %v2682 = vpow.pop %v2681
        %v2683 = vmul.f32 %v2648, 1.442695
        %v2684 = vpow.pop %v2683
        %v2685 = vmul.f32 %v2649, 1.442695
        %v2686 = vpow.pop %v2685
        %v2687 = vmul.f32 %v2650, 1.442695
        %v2688 = vpow.pop %v2687
        %v2689 = vmul.f32 %v2651, 1.442695
        %v2690 = vpow.pop %v2689
        %v2691 = vmul.f32 %v2652, 1.442695
        %v2692 = vpow.pop %v2691
        %v2693 = vadd.f32 %v2654, 1.0
        %v2694 = vadd.f32 %v2656, 1.0
        %v2695 = vadd.f32 %v2658, 1.0
        %v2696 = vadd.f32 %v2660, 1.0
        %v2697 = vadd.f32 %v2662, 1.0
        %v2698 = vadd.f32 %v2664, 1.0
        %v2699 = vadd.f32 %v2666, 1.0
        %v2700 = vadd.f32 %v2668, 1.0
        %v2701 = vadd.f32 %v2670, 1.0
        %v2702 = vadd.f32 %v2672, 1.0
        %v2703 = vadd.f32 %v2674, 1.0
        %v2704 = vadd.f32 %v2676, 1.0
        %v2705 = vadd.f32 %v2678, 1.0
        %v2706 = vadd.f32 %v2680, 1.0
        %v2707 = vadd.f32 %v2682, 1.0
        %v2708 = vadd.f32 %v2684, 1.0
        %v2709 = vadd.f32 %v2686, 1.0
        %v2710 = vadd.f32 %v2688, 1.0
        %v2711 = vadd.f32 %v2690, 1.0
        %v2712 = vadd.f32 %v2692, 1.0
        %v2713 = vrcp.pop %v2693
        %v2714 = vmul.f32 1.0, %v2713
        %v2715 = vrcp.pop %v2694
        %v2716 = vmul.f32 1.0, %v2715
        %v2717 = vrcp.pop %v2695
        %v2718 = vmul.f32 1.0, %v2717
        %v2719 = vrcp.pop %v2696
        %v2720 = vmul.f32 1.0, %v2719
        %v2721 = vrcp.pop %v2697
        %v2722 = vmul.f32 1.0, %v2721
        %v2723 = vrcp.pop %v2698
        %v2724 = vmul.f32 1.0, %v2723
        %v2725 = vrcp.pop %v2699
        %v2726 = vmul.f32 1.0, %v2725
        %v2727 = vrcp.pop %v2700
        %v2728 = vmul.f32 1.0, %v2727
        %v2729 = vrcp.pop %v2701
        %v2730 = vmul.f32 1.0, %v2729
        %v2731 = vrcp.pop %v2702
        %v2732 = vmul.f32 1.0, %v2731
        %v2733 = vrcp.pop %v2703
        %v2734 = vmul.f32 1.0, %v2733
        %v2735 = vrcp.pop %v2704
        %v2736 = vmul.f32 1.0, %v2735
        %v2737 = vrcp.pop %v2705
        %v2738 = vmul.f32 1.0, %v2737
        %v2739 = vrcp.pop %v2706
        %v2740 = vmul.f32 1.0, %v2739
        %v2741 = vrcp.pop %v2707
        %v2742 = vmul.f32 1.0, %v2741
        %v2743 = vrcp.pop %v2708
        %v2744 = vmul.f32 1.0, %v2743
        %v2745 = vrcp.pop %v2709
        %v2746 = vmul.f32 1.0, %v2745
        %v2747 = vrcp.pop %v2710
        %v2748 = vmul.f32 1.0, %v2747
        %v2749 = vrcp.pop %v2711
        %v2750 = vmul.f32 1.0, %v2749
        %v2751 = vrcp.pop %v2712
        %v2752 = vmul.f32 1.0, %v2751
        %v2753 = vld [vmem:[%s4] sm:$0xf]
        %v2754 = vld [vmem:[%s4 + $0x4] sm:$0xf]
        %v2755 = vld [vmem:[%s4 + $0x8] sm:$0xf]
        %v2756 = vld [vmem:[%s4 + $0xc] sm:$0xf]
        %v2757 = vld [vmem:[%s4 + $0x10] sm:$0xf]
        %v2758 = vpack.c.bf16 %v2718, %v2714
        %v2759 = vpack.c.bf16 %v2720, %v2716
        %v2760 = vpack.c.bf16 %v2726, %v2722
        %v2761 = vpack.c.bf16 %v2728, %v2724
        %v2762 = vpack.c.bf16 %v2734, %v2730
        %v2763 = vpack.c.bf16 %v2736, %v2732
        %v2764 = vpack.c.bf16 %v2742, %v2738
        %v2765 = vpack.c.bf16 %v2744, %v2740
        %v2766 = vpack.c.bf16 %v2750, %v2746
        %v2767 = vpack.c.bf16 %v2752, %v2748
        %v2773 = vunpack.c.l.b16 %v2753
        %v2774 = vunpack.c.l.b16 %v2754
        %v2775 = vunpack.c.l.b16 %v2755
        %v2776 = vunpack.c.l.b16 %v2756
        %v2777 = vunpack.c.l.b16 %v2757
        %v2778 = vpack.c.b16 %v2774, %v2773
        %v2779 = vpack.c.b16 %v2776, %v2775
        %v2780 = vpack.c.b16 %v2777, %v2777
        %vm2781 = vcmask 654336
        %v2783 = vsel %vm2781, %v2778, 0
        %v2786 = vsel %vm2781, %v2779, 0
        %v2789 = vsel %vm2781, %v2780, 0
        %2791 = vmatprep.subr.bf16.mxu0 %v2759
        %2792 = vmatpush1.bf16.msra.mxu0 %v2758
        %2793 = vmatprep.subr.bf16.mxu0 %v2761
        %2794 = vmatpush1.bf16.msra.mxu0 %v2760
        %2795 = vmatprep.subr.bf16.mxu0 %v2763
        %2796 = vmatpush1.bf16.msra.mxu0 %v2762
        %2797 = vmatprep.subr.bf16.mxu0 %v2765
        %2798 = vmatpush1.bf16.msra.mxu0 %v2764
        %2799 = vmatprep.subr.bf16.mxu0 %v2767
        %2800 = vmatpush1.bf16.msra.mxu0 %v2766
        %2801 = vmatprep.subr.bf16.mxu0 0
        %2802 = vmatpush1.bf16.msra.mxu0 0
        %2803 = vmatprep.subr.bf16.mxu0 0
        %2804 = vmatpush1.bf16.msra.mxu0 0
        %2805 = vmatprep.subr.bf16.mxu0 0
        %2806 = vmatpush1.bf16.msra.mxu0 0
        %2807 = vmatprep.subr.bf16.mxu0 0
        %2808 = vmatpush1.bf16.msra.mxu0 0
        %2809 = vmatprep.subr.bf16.mxu0 0
        %2810 = vmatpush1.bf16.msra.mxu0 0
        %2811 = vmatprep.subr.bf16.mxu0 0
        %2812 = vmatpush1.bf16.msra.mxu0 0
        %2813 = vmatprep.subr.bf16.mxu0 0
        %2814 = vmatpush1.bf16.msra.mxu0 0
        %2815 = vmatprep.subr.bf16.mxu0 0
        %2816 = vmatpush1.bf16.msra.mxu0 0
        %2817 = vmatprep.subr.bf16.mxu0 0
        %2818 = vmatpush1.bf16.msra.mxu0 0
        %2819 = vmatprep.subr.bf16.mxu0 0
        %2820 = vmatpush1.bf16.msra.mxu0 0
        %2821 = vmatprep.subr.bf16.mxu0 0
        %2822 = vmatpush1.bf16.msra.mxu0 0
        %2823 = vmatprep.mubr.bf16.mxu0 0
        %2824 = vmatmul.mubr.bf16.gmra.mrb[0].mxu0 %v2783
        %v2825 = vpop.f32.mrb[0].mxu0
        %v2826 = vadd.f32 0.0, %v2825
        %v2827 = vpop.f32.mrb[0].mxu0
        %v2828 = vadd.f32 0.0, %v2827
        %v2829 = vpop.f32.mrb[0].mxu0
        %v2830 = vadd.f32 0.0, %v2829
        %v2831 = vpop.f32.mrb[0].mxu0
        %v2832 = vadd.f32 0.0, %v2831
        %2833 = vmatprep.mubr.bf16.mxu0 0
        %2834 = vmatmul.mubr.bf16.gmra.mrb[0].mxu0 %v2786
        %v2835 = vpop.f32.mrb[0].mxu0
        %v2836 = vadd.f32 0.0, %v2835
        %v2837 = vpop.f32.mrb[0].mxu0
        %v2838 = vadd.f32 0.0, %v2837
        %v2839 = vpop.f32.mrb[0].mxu0
        %v2840 = vadd.f32 0.0, %v2839
        %v2841 = vpop.f32.mrb[0].mxu0
        %v2842 = vadd.f32 0.0, %v2841
        %2843 = vmatprep.mubr.bf16.mxu0 0
        %2844 = vmatmul.mubr.bf16.gmra.mrb[0].mxu0 %v2789
        %v2845 = vpop.f32.mrb[0].mxu0
        %v2846 = vadd.f32 0.0, %v2845
        %v2847 = vpop.f32.mrb[0].mxu0
        %v2848 = vadd.f32 0.0, %v2847
        %v2849 = vpop.f32.mrb[0].mxu0
        %v2850 = vpop.f32.mrb[0].mxu0
        %2851 = vdwg.mxu0
        %v2852 = vpack.c.bf16 %v2830, %v2826
        %v2853 = vpack.c.bf16 %v2832, %v2828
        %v2854 = vpack.c.bf16 %v2840, %v2836
        %v2855 = vpack.c.bf16 %v2842, %v2838
        %v2856 = vpack.c.bf16 %v2846, %v2846
        %v2857 = vpack.c.bf16 %v2848, %v2848
        %v2858 = vld [vmem:[%s5] sm:$0xf]
        %v2859 = vld [vmem:[%s5 + $0x4] sm:$0xf]
        %v2860 = vld [vmem:[%s5 + $0x8] sm:$0xf]
        %v2861 = vld [vmem:[%s5 + $0xc] sm:$0xf]
        %v2862 = vld [vmem:[%s5 + $0x10] sm:$0xf]
        %v2863 = vld [vmem:[%s5 + $0x14] sm:$0xf]
        %v2864 = vld [vmem:[%s5 + $0x18] sm:$0xf]
        %v2865 = vld [vmem:[%s5 + $0x1c] sm:$0xf]
        %v2866 = vld [vmem:[%s5 + $0x20] sm:$0xf]
        %v2867 = vld [vmem:[%s5 + $0x24] sm:$0xf]
        %v2868 = vld [vmem:[%s5 + $0x28] sm:$0xf]
        %v2869 = vld [vmem:[%s5 + $0x2c] sm:$0xf]
        %v2870 = vld [vmem:[%s5 + $0x30] sm:$0xf]
        %v2871 = vld [vmem:[%s5 + $0x34] sm:$0xf]
        %v2872 = vld [vmem:[%s5 + $0x38] sm:$0xf]
        %v2873 = vld [vmem:[%s5 + $0x3c] sm:$0xf]
        %v2874 = vld [vmem:[%s5 + $0x40] sm:$0xf]
        %v2875 = vld [vmem:[%s5 + $0x44] sm:$0xf]
        %v2876 = vld [vmem:[%s5 + $0x48] sm:$0xf]
        %v2877 = vld [vmem:[%s5 + $0x4c] sm:$0xf]
        %s2878 = scalar_lea.vmem %s5, 80
        %v2879 = vld [vmem:[%s2878] sm:$0xf]
        %v2880 = vld [vmem:[%s2878 + $0x4] sm:$0xf]
        %v2881 = vld [vmem:[%s2878 + $0x8] sm:$0xf]
        %v2882 = vld [vmem:[%s2878 + $0xc] sm:$0xf]
        %v2883 = vld [vmem:[%s2878 + $0x10] sm:$0xf]
        %v2884 = vld [vmem:[%s2878 + $0x14] sm:$0xf]
        %v2885 = vld [vmem:[%s2878 + $0x18] sm:$0xf]
        %v2886 = vld [vmem:[%s2878 + $0x1c] sm:$0xf]
        %v2887 = vld [vmem:[%s2878 + $0x20] sm:$0xf]
        %v2888 = vld [vmem:[%s2878 + $0x24] sm:$0xf]
        %v2889 = vld [vmem:[%s2878 + $0x28] sm:$0xf]
        %v2890 = vld [vmem:[%s2878 + $0x2c] sm:$0xf]
        %v2891 = vld [vmem:[%s2878 + $0x30] sm:$0xf]
        %v2892 = vld [vmem:[%s2878 + $0x34] sm:$0xf]
        %v2893 = vld [vmem:[%s2878 + $0x38] sm:$0xf]
        %v2894 = vld [vmem:[%s2878 + $0x3c] sm:$0xf]
        %v2895 = vld [vmem:[%s2878 + $0x40] sm:$0xf]
        %v2896 = vld [vmem:[%s2878 + $0x44] sm:$0xf]
        %v2897 = vld [vmem:[%s2878 + $0x48] sm:$0xf]
        %v2898 = vld [vmem:[%s2878 + $0x4c] sm:$0xf]
        %v2901 = vrot.slane %v2852, 4
        %v2902 = vrot.slane %v2853, 4
        %v2924 = vunpack.c.l.b16 %v2879
        %v2925 = vunpack.c.l.b16 %v2880
        %v2926 = vunpack.c.l.b16 %v2881
        %v2927 = vunpack.c.l.b16 %v2882
        %v2928 = vunpack.c.l.b16 %v2883
        %v2929 = vunpack.c.l.b16 %v2884
        %v2930 = vunpack.c.l.b16 %v2885
        %v2931 = vunpack.c.l.b16 %v2886
        %v2932 = vunpack.c.l.b16 %v2887
        %v2933 = vunpack.c.l.b16 %v2888
        %v2934 = vunpack.c.l.b16 %v2889
        %v2935 = vunpack.c.l.b16 %v2890
        %v2936 = vunpack.c.l.b16 %v2891
        %v2937 = vunpack.c.l.b16 %v2892
        %v2938 = vunpack.c.l.b16 %v2893
        %v2939 = vunpack.c.l.b16 %v2894
        %v2940 = vunpack.c.l.b16 %v2895
        %v2941 = vunpack.c.l.b16 %v2896
        %v2942 = vunpack.c.l.b16 %v2897
        %v2943 = vunpack.c.l.b16 %v2898
        %v2944 = vpack.c.b16 %v2925, %v2924
        %v2945 = vpack.c.b16 %v2927, %v2926
        %v2946 = vpack.c.b16 %v2929, %v2928
        %v2947 = vpack.c.b16 %v2931, %v2930
        %v2948 = vpack.c.b16 %v2933, %v2932
        %v2949 = vpack.c.b16 %v2935, %v2934
        %v2950 = vpack.c.b16 %v2937, %v2936
        %v2951 = vpack.c.b16 %v2939, %v2938
        %v2952 = vpack.c.b16 %v2941, %v2940
        %v2953 = vpack.c.b16 %v2943, %v2942
        %v2965 = vsel %vm572, %v2902, 0
        %2967 = vmatprep.subr.bf16.mxu0 0
        %2968 = vmatpush1.bf16.msra.mxu0 %v2944
        %2969 = vmatprep.subr.bf16.mxu0 0
        %2970 = vmatpush1.bf16.msra.mxu0 %v2945
        %2971 = vmatprep.subr.bf16.mxu0 0
        %2972 = vmatpush1.bf16.msra.mxu0 %v2946
        %2973 = vmatprep.subr.bf16.mxu0 0
        %2974 = vmatpush1.bf16.msra.mxu0 %v2947
        %2975 = vmatprep.subr.bf16.mxu0 0
        %2976 = vmatpush1.bf16.msra.mxu0 %v2948
        %2977 = vmatprep.subr.bf16.mxu0 0
        %2978 = vmatpush1.bf16.msra.mxu0 %v2949
        %2979 = vmatprep.subr.bf16.mxu0 0
        %2980 = vmatpush1.bf16.msra.mxu0 %v2950
        %2981 = vmatprep.subr.bf16.mxu0 0
        %2982 = vmatpush1.bf16.msra.mxu0 %v2951
        %2983 = vmatprep.subr.bf16.mxu0 0
        %2984 = vmatpush1.bf16.msra.mxu0 %v2952
        %2985 = vmatprep.subr.bf16.mxu0 0
        %2986 = vmatpush1.bf16.msra.mxu0 %v2953
        %2987 = vmatprep.subr.bf16.mxu0 0
        %2988 = vmatpush1.bf16.msra.mxu0 0
        %2989 = vmatprep.subr.bf16.mxu0 0
        %2990 = vmatpush1.bf16.msra.mxu0 0
        %2991 = vmatprep.subr.bf16.mxu0 0
        %2992 = vmatpush1.bf16.msra.mxu0 0
        %2993 = vmatprep.subr.bf16.mxu0 0
        %2994 = vmatpush1.bf16.msra.mxu0 0
        %2995 = vmatprep.subr.bf16.mxu0 0
        %2996 = vmatpush1.bf16.msra.mxu0 0
        %2997 = vmatprep.subr.bf16.mxu0 0
        %2998 = vmatpush1.bf16.msra.mxu0 0
        %2999 = vmatprep.mubr.bf16.mxu0 %v2965
        %3000 = vmatmul.mubr.bf16.gmra.mrb[0].mxu0 %v2901
        %v3001 = vpop.f32.mrb[0].mxu0
        %v3002 = vadd.f32 0.0, %v3001
        %v3003 = vpop.f32.mrb[0].mxu0
        %v3004 = vpop.f32.mrb[0].mxu0
        %v3005 = vpop.f32.mrb[0].mxu0
        %3006 = vdwg.mxu0
        %v3027 = vunpack.c.l.b16 %v2858
        %v3028 = vunpack.c.l.b16 %v2859
        %v3029 = vunpack.c.l.b16 %v2860
        %v3030 = vunpack.c.l.b16 %v2861
        %v3031 = vunpack.c.l.b16 %v2862
        %v3032 = vunpack.c.l.b16 %v2863
        %v3033 = vunpack.c.l.b16 %v2864
        %v3034 = vunpack.c.l.b16 %v2865
        %v3035 = vunpack.c.l.b16 %v2866
        %v3036 = vunpack.c.l.b16 %v2867
        %v3037 = vunpack.c.l.b16 %v2868
        %v3038 = vunpack.c.l.b16 %v2869
        %v3039 = vunpack.c.l.b16 %v2870
        %v3040 = vunpack.c.l.b16 %v2871
        %v3041 = vunpack.c.l.b16 %v2872
        %v3042 = vunpack.c.l.b16 %v2873
        %v3043 = vunpack.c.l.b16 %v2874
        %v3044 = vunpack.c.l.b16 %v2875
        %v3045 = vunpack.c.l.b16 %v2876
        %v3046 = vunpack.c.l.b16 %v2877
        %v3047 = vpack.c.b16 %v3028, %v3027
        %v3048 = vpack.c.b16 %v3030, %v3029
        %v3049 = vpack.c.b16 %v3032, %v3031
        %v3050 = vpack.c.b16 %v3034, %v3033
        %v3051 = vpack.c.b16 %v3036, %v3035
        %v3052 = vpack.c.b16 %v3038, %v3037
        %v3053 = vpack.c.b16 %v3040, %v3039
        %v3054 = vpack.c.b16 %v3042, %v3041
        %v3055 = vpack.c.b16 %v3044, %v3043
        %v3056 = vpack.c.b16 %v3046, %v3045
        %v3068 = vsel %vm572, %v2853, 0
        %3070 = vmatprep.subr.bf16.mxu0 0
        %3071 = vmatpush1.bf16.msra.mxu0 %v3047
        %3072 = vmatprep.subr.bf16.mxu0 0
        %3073 = vmatpush1.bf16.msra.mxu0 %v3048
        %3074 = vmatprep.subr.bf16.mxu0 0
        %3075 = vmatpush1.bf16.msra.mxu0 %v3049
        %3076 = vmatprep.subr.bf16.mxu0 0
        %3077 = vmatpush1.bf16.msra.mxu0 %v3050
        %3078 = vmatprep.subr.bf16.mxu0 0
        %3079 = vmatpush1.bf16.msra.mxu0 %v3051
        %3080 = vmatprep.subr.bf16.mxu0 0
        %3081 = vmatpush1.bf16.msra.mxu0 %v3052
        %3082 = vmatprep.subr.bf16.mxu0 0
        %3083 = vmatpush1.bf16.msra.mxu0 %v3053
        %3084 = vmatprep.subr.bf16.mxu0 0
        %3085 = vmatpush1.bf16.msra.mxu0 %v3054
        %3086 = vmatprep.subr.bf16.mxu0 0
        %3087 = vmatpush1.bf16.msra.mxu0 %v3055
        %3088 = vmatprep.subr.bf16.mxu0 0
        %3089 = vmatpush1.bf16.msra.mxu0 %v3056
        %3090 = vmatprep.subr.bf16.mxu0 0
        %3091 = vmatpush1.bf16.msra.mxu0 0
        %3092 = vmatprep.subr.bf16.mxu0 0
        %3093 = vmatpush1.bf16.msra.mxu0 0
        %3094 = vmatprep.subr.bf16.mxu0 0
        %3095 = vmatpush1.bf16.msra.mxu0 0
        %3096 = vmatprep.subr.bf16.mxu0 0
        %3097 = vmatpush1.bf16.msra.mxu0 0
        %3098 = vmatprep.subr.bf16.mxu0 0
        %3099 = vmatpush1.bf16.msra.mxu0 0
        %3100 = vmatprep.subr.bf16.mxu0 0
        %3101 = vmatpush1.bf16.msra.mxu0 0
        %3102 = vmatprep.mubr.bf16.mxu0 %v3068
        %3103 = vmatmul.mubr.bf16.gmra.mrb[0].mxu0 %v2852
        %v3104 = vpop.f32.mrb[0].mxu0
        %v3105 = vadd.f32 %v3002, %v3104
        %v3106 = vpop.f32.mrb[0].mxu0
        %v3107 = vpop.f32.mrb[0].mxu0
        %v3108 = vpop.f32.mrb[0].mxu0
        %3109 = vdwg.mxu0
        %s3110 = scalar_lea.vmem %s5, 160
        %v3111 = vld [vmem:[%s3110] sm:$0xf]
        %v3112 = vld [vmem:[%s3110 + $0x4] sm:$0xf]
        %v3113 = vld [vmem:[%s3110 + $0x8] sm:$0xf]
        %v3114 = vld [vmem:[%s3110 + $0xc] sm:$0xf]
        %v3115 = vld [vmem:[%s3110 + $0x10] sm:$0xf]
        %v3116 = vld [vmem:[%s3110 + $0x14] sm:$0xf]
        %v3117 = vld [vmem:[%s3110 + $0x18] sm:$0xf]
        %v3118 = vld [vmem:[%s3110 + $0x1c] sm:$0xf]
        %v3119 = vld [vmem:[%s3110 + $0x20] sm:$0xf]
        %v3120 = vld [vmem:[%s3110 + $0x24] sm:$0xf]
        %v3121 = vld [vmem:[%s3110 + $0x28] sm:$0xf]
        %v3122 = vld [vmem:[%s3110 + $0x2c] sm:$0xf]
        %v3123 = vld [vmem:[%s3110 + $0x30] sm:$0xf]
        %v3124 = vld [vmem:[%s3110 + $0x34] sm:$0xf]
        %v3125 = vld [vmem:[%s3110 + $0x38] sm:$0xf]
        %v3126 = vld [vmem:[%s3110 + $0x3c] sm:$0xf]
        %v3127 = vld [vmem:[%s3110 + $0x40] sm:$0xf]
        %v3128 = vld [vmem:[%s3110 + $0x44] sm:$0xf]
        %v3129 = vld [vmem:[%s3110 + $0x48] sm:$0xf]
        %v3130 = vld [vmem:[%s3110 + $0x4c] sm:$0xf]
        %v3151 = vunpack.c.l.b16 %v3111
        %v3152 = vunpack.c.l.b16 %v3112
        %v3153 = vunpack.c.l.b16 %v3113
        %v3154 = vunpack.c.l.b16 %v3114
        %v3155 = vunpack.c.l.b16 %v3115
        %v3156 = vunpack.c.l.b16 %v3116
        %v3157 = vunpack.c.l.b16 %v3117
        %v3158 = vunpack.c.l.b16 %v3118
        %v3159 = vunpack.c.l.b16 %v3119
        %v3160 = vunpack.c.l.b16 %v3120
        %v3161 = vunpack.c.l.b16 %v3121
        %v3162 = vunpack.c.l.b16 %v3122
        %v3163 = vunpack.c.l.b16 %v3123
        %v3164 = vunpack.c.l.b16 %v3124
        %v3165 = vunpack.c.l.b16 %v3125
        %v3166 = vunpack.c.l.b16 %v3126
        %v3167 = vunpack.c.l.b16 %v3127
        %v3168 = vunpack.c.l.b16 %v3128
        %v3169 = vunpack.c.l.b16 %v3129
        %v3170 = vunpack.c.l.b16 %v3130
        %v3171 = vpack.c.b16 %v3152, %v3151
        %v3172 = vpack.c.b16 %v3154, %v3153
        %v3173 = vpack.c.b16 %v3156, %v3155
        %v3174 = vpack.c.b16 %v3158, %v3157
        %v3175 = vpack.c.b16 %v3160, %v3159
        %v3176 = vpack.c.b16 %v3162, %v3161
        %v3177 = vpack.c.b16 %v3164, %v3163
        %v3178 = vpack.c.b16 %v3166, %v3165
        %v3179 = vpack.c.b16 %v3168, %v3167
        %v3180 = vpack.c.b16 %v3170, %v3169
        %v3192 = vsel %vm572, %v2855, 0
        %3194 = vmatprep.subr.bf16.mxu0 0
        %3195 = vmatpush1.bf16.msra.mxu0 %v3171
        %3196 = vmatprep.subr.bf16.mxu0 0
        %3197 = vmatpush1.bf16.msra.mxu0 %v3172
        %3198 = vmatprep.subr.bf16.mxu0 0
        %3199 = vmatpush1.bf16.msra.mxu0 %v3173
        %3200 = vmatprep.subr.bf16.mxu0 0
        %3201 = vmatpush1.bf16.msra.mxu0 %v3174
        %3202 = vmatprep.subr.bf16.mxu0 0
        %3203 = vmatpush1.bf16.msra.mxu0 %v3175
        %3204 = vmatprep.subr.bf16.mxu0 0
        %3205 = vmatpush1.bf16.msra.mxu0 %v3176
        %3206 = vmatprep.subr.bf16.mxu0 0
        %3207 = vmatpush1.bf16.msra.mxu0 %v3177
        %3208 = vmatprep.subr.bf16.mxu0 0
        %3209 = vmatpush1.bf16.msra.mxu0 %v3178
        %3210 = vmatprep.subr.bf16.mxu0 0
        %3211 = vmatpush1.bf16.msra.mxu0 %v3179
        %3212 = vmatprep.subr.bf16.mxu0 0
        %3213 = vmatpush1.bf16.msra.mxu0 %v3180
        %3214 = vmatprep.subr.bf16.mxu0 0
        %3215 = vmatpush1.bf16.msra.mxu0 0
        %3216 = vmatprep.subr.bf16.mxu0 0
        %3217 = vmatpush1.bf16.msra.mxu0 0
        %3218 = vmatprep.subr.bf16.mxu0 0
        %3219 = vmatpush1.bf16.msra.mxu0 0
        %3220 = vmatprep.subr.bf16.mxu0 0
        %3221 = vmatpush1.bf16.msra.mxu0 0
        %3222 = vmatprep.subr.bf16.mxu0 0
        %3223 = vmatpush1.bf16.msra.mxu0 0
        %3224 = vmatprep.subr.bf16.mxu0 0
        %3225 = vmatpush1.bf16.msra.mxu0 0
        %3226 = vmatprep.mubr.bf16.mxu0 %v3192
        %3227 = vmatmul.mubr.bf16.gmra.mrb[0].mxu0 %v2854
        %v3228 = vpop.f32.mrb[0].mxu0
        %v3229 = vadd.f32 0.0, %v3228
        %v3230 = vpop.f32.mrb[0].mxu0
        %v3231 = vpop.f32.mrb[0].mxu0
        %v3232 = vpop.f32.mrb[0].mxu0
        %3233 = vdwg.mxu0
        %v3234 = vadd.f32 %v3105, %v3229
        %s3235 = scalar_lea.vmem %s5, 240
        %v3236 = vld [vmem:[%s3235] sm:$0xf]
        %v3237 = vld [vmem:[%s3235 + $0x4] sm:$0xf]
        %v3238 = vld [vmem:[%s3235 + $0x8] sm:$0xf]
        %v3239 = vld [vmem:[%s3235 + $0xc] sm:$0xf]
        %v3240 = vld [vmem:[%s3235 + $0x10] sm:$0xf]
        %v3241 = vld [vmem:[%s3235 + $0x14] sm:$0xf]
        %v3242 = vld [vmem:[%s3235 + $0x18] sm:$0xf]
        %v3243 = vld [vmem:[%s3235 + $0x1c] sm:$0xf]
        %v3244 = vld [vmem:[%s3235 + $0x20] sm:$0xf]
        %v3245 = vld [vmem:[%s3235 + $0x24] sm:$0xf]
        %v3246 = vld [vmem:[%s3235 + $0x28] sm:$0xf]
        %v3247 = vld [vmem:[%s3235 + $0x2c] sm:$0xf]
        %v3248 = vld [vmem:[%s3235 + $0x30] sm:$0xf]
        %v3249 = vld [vmem:[%s3235 + $0x34] sm:$0xf]
        %v3250 = vld [vmem:[%s3235 + $0x38] sm:$0xf]
        %v3251 = vld [vmem:[%s3235 + $0x3c] sm:$0xf]
        %v3252 = vld [vmem:[%s3235 + $0x40] sm:$0xf]
        %v3253 = vld [vmem:[%s3235 + $0x44] sm:$0xf]
        %v3254 = vld [vmem:[%s3235 + $0x48] sm:$0xf]
        %v3255 = vld [vmem:[%s3235 + $0x4c] sm:$0xf]
        %v3258 = vrot.slane %v2854, 4
        %v3259 = vrot.slane %v2855, 4
        %v3281 = vunpack.c.l.b16 %v3236
        %v3282 = vunpack.c.l.b16 %v3237
        %v3283 = vunpack.c.l.b16 %v3238
        %v3284 = vunpack.c.l.b16 %v3239
        %v3285 = vunpack.c.l.b16 %v3240
        %v3286 = vunpack.c.l.b16 %v3241
        %v3287 = vunpack.c.l.b16 %v3242
        %v3288 = vunpack.c.l.b16 %v3243
        %v3289 = vunpack.c.l.b16 %v3244
        %v3290 = vunpack.c.l.b16 %v3245
        %v3291 = vunpack.c.l.b16 %v3246
        %v3292 = vunpack.c.l.b16 %v3247
        %v3293 = vunpack.c.l.b16 %v3248
        %v3294 = vunpack.c.l.b16 %v3249
        %v3295 = vunpack.c.l.b16 %v3250
        %v3296 = vunpack.c.l.b16 %v3251
        %v3297 = vunpack.c.l.b16 %v3252
        %v3298 = vunpack.c.l.b16 %v3253
        %v3299 = vunpack.c.l.b16 %v3254
        %v3300 = vunpack.c.l.b16 %v3255
        %v3301 = vpack.c.b16 %v3282, %v3281
        %v3302 = vpack.c.b16 %v3284, %v3283
        %v3303 = vpack.c.b16 %v3286, %v3285
        %v3304 = vpack.c.b16 %v3288, %v3287
        %v3305 = vpack.c.b16 %v3290, %v3289
        %v3306 = vpack.c.b16 %v3292, %v3291
        %v3307 = vpack.c.b16 %v3294, %v3293
        %v3308 = vpack.c.b16 %v3296, %v3295
        %v3309 = vpack.c.b16 %v3298, %v3297
        %v3310 = vpack.c.b16 %v3300, %v3299
        %v3322 = vsel %vm572, %v3259, 0
        %3324 = vmatprep.subr.bf16.mxu0 0
        %3325 = vmatpush1.bf16.msra.mxu0 %v3301
        %3326 = vmatprep.subr.bf16.mxu0 0
        %3327 = vmatpush1.bf16.msra.mxu0 %v3302
        %3328 = vmatprep.subr.bf16.mxu0 0
        %3329 = vmatpush1.bf16.msra.mxu0 %v3303
        %3330 = vmatprep.subr.bf16.mxu0 0
        %3331 = vmatpush1.bf16.msra.mxu0 %v3304
        %3332 = vmatprep.subr.bf16.mxu0 0
        %3333 = vmatpush1.bf16.msra.mxu0 %v3305
        %3334 = vmatprep.subr.bf16.mxu0 0
        %3335 = vmatpush1.bf16.msra.mxu0 %v3306
        %3336 = vmatprep.subr.bf16.mxu0 0
        %3337 = vmatpush1.bf16.msra.mxu0 %v3307
        %3338 = vmatprep.subr.bf16.mxu0 0
        %3339 = vmatpush1.bf16.msra.mxu0 %v3308
        %3340 = vmatprep.subr.bf16.mxu0 0
        %3341 = vmatpush1.bf16.msra.mxu0 %v3309
        %3342 = vmatprep.subr.bf16.mxu0 0
        %3343 = vmatpush1.bf16.msra.mxu0 %v3310
        %3344 = vmatprep.subr.bf16.mxu0 0
        %3345 = vmatpush1.bf16.msra.mxu0 0
        %3346 = vmatprep.subr.bf16.mxu0 0
        %3347 = vmatpush1.bf16.msra.mxu0 0
        %3348 = vmatprep.subr.bf16.mxu0 0
        %3349 = vmatpush1.bf16.msra.mxu0 0
        %3350 = vmatprep.subr.bf16.mxu0 0
        %3351 = vmatpush1.bf16.msra.mxu0 0
        %3352 = vmatprep.subr.bf16.mxu0 0
        %3353 = vmatpush1.bf16.msra.mxu0 0
        %3354 = vmatprep.subr.bf16.mxu0 0
        %3355 = vmatpush1.bf16.msra.mxu0 0
        %3356 = vmatprep.mubr.bf16.mxu0 %v3322
        %3357 = vmatmul.mubr.bf16.gmra.mrb[0].mxu0 %v3258
        %v3358 = vpop.f32.mrb[0].mxu0
        %v3359 = vadd.f32 0.0, %v3358
        %v3360 = vpop.f32.mrb[0].mxu0
        %v3361 = vpop.f32.mrb[0].mxu0
        %v3362 = vpop.f32.mrb[0].mxu0
        %3363 = vdwg.mxu0
        %v3364 = vadd.f32 %v3234, %v3359
        %s3365 = scalar_lea.vmem %s5, 320
        %v3366 = vld [vmem:[%s3365] sm:$0xf]
        %v3367 = vld [vmem:[%s3365 + $0x4] sm:$0xf]
        %v3368 = vld [vmem:[%s3365 + $0x8] sm:$0xf]
        %v3369 = vld [vmem:[%s3365 + $0xc] sm:$0xf]
        %v3370 = vld [vmem:[%s3365 + $0x10] sm:$0xf]
        %v3371 = vld [vmem:[%s3365 + $0x14] sm:$0xf]
        %v3372 = vld [vmem:[%s3365 + $0x18] sm:$0xf]
        %v3373 = vld [vmem:[%s3365 + $0x1c] sm:$0xf]
        %v3374 = vld [vmem:[%s3365 + $0x20] sm:$0xf]
        %v3375 = vld [vmem:[%s3365 + $0x24] sm:$0xf]
        %v3376 = vld [vmem:[%s3365 + $0x28] sm:$0xf]
        %v3377 = vld [vmem:[%s3365 + $0x2c] sm:$0xf]
        %v3378 = vld [vmem:[%s3365 + $0x30] sm:$0xf]
        %v3379 = vld [vmem:[%s3365 + $0x34] sm:$0xf]
        %v3380 = vld [vmem:[%s3365 + $0x38] sm:$0xf]
        %v3381 = vld [vmem:[%s3365 + $0x3c] sm:$0xf]
        %v3382 = vld [vmem:[%s3365 + $0x40] sm:$0xf]
        %v3383 = vld [vmem:[%s3365 + $0x44] sm:$0xf]
        %v3384 = vld [vmem:[%s3365 + $0x48] sm:$0xf]
        %v3385 = vld [vmem:[%s3365 + $0x4c] sm:$0xf]
        %v3406 = vunpack.c.l.b16 %v3366
        %v3407 = vunpack.c.l.b16 %v3367
        %v3408 = vunpack.c.l.b16 %v3368
        %v3409 = vunpack.c.l.b16 %v3369
        %v3410 = vunpack.c.l.b16 %v3370
        %v3411 = vunpack.c.l.b16 %v3371
        %v3412 = vunpack.c.l.b16 %v3372
        %v3413 = vunpack.c.l.b16 %v3373
        %v3414 = vunpack.c.l.b16 %v3374
        %v3415 = vunpack.c.l.b16 %v3375
        %v3416 = vunpack.c.l.b16 %v3376
        %v3417 = vunpack.c.l.b16 %v3377
        %v3418 = vunpack.c.l.b16 %v3378
        %v3419 = vunpack.c.l.b16 %v3379
        %v3420 = vunpack.c.l.b16 %v3380
        %v3421 = vunpack.c.l.b16 %v3381
        %v3422 = vunpack.c.l.b16 %v3382
        %v3423 = vunpack.c.l.b16 %v3383
        %v3424 = vunpack.c.l.b16 %v3384
        %v3425 = vunpack.c.l.b16 %v3385
        %v3426 = vpack.c.b16 %v3407, %v3406
        %v3427 = vpack.c.b16 %v3409, %v3408
        %v3428 = vpack.c.b16 %v3411, %v3410
        %v3429 = vpack.c.b16 %v3413, %v3412
        %v3430 = vpack.c.b16 %v3415, %v3414
        %v3431 = vpack.c.b16 %v3417, %v3416
        %v3432 = vpack.c.b16 %v3419, %v3418
        %v3433 = vpack.c.b16 %v3421, %v3420
        %v3434 = vpack.c.b16 %v3423, %v3422
        %v3435 = vpack.c.b16 %v3425, %v3424
        %v3447 = vsel %vm572, %v2857, 0
        %3449 = vmatprep.subr.bf16.mxu0 0
        %3450 = vmatpush1.bf16.msra.mxu0 %v3426
        %3451 = vmatprep.subr.bf16.mxu0 0
        %3452 = vmatpush1.bf16.msra.mxu0 %v3427
        %3453 = vmatprep.subr.bf16.mxu0 0
        %3454 = vmatpush1.bf16.msra.mxu0 %v3428
        %3455 = vmatprep.subr.bf16.mxu0 0
        %3456 = vmatpush1.bf16.msra.mxu0 %v3429
        %3457 = vmatprep.subr.bf16.mxu0 0
        %3458 = vmatpush1.bf16.msra.mxu0 %v3430
        %3459 = vmatprep.subr.bf16.mxu0 0
        %3460 = vmatpush1.bf16.msra.mxu0 %v3431
        %3461 = vmatprep.subr.bf16.mxu0 0
        %3462 = vmatpush1.bf16.msra.mxu0 %v3432
        %3463 = vmatprep.subr.bf16.mxu0 0
        %3464 = vmatpush1.bf16.msra.mxu0 %v3433
        %3465 = vmatprep.subr.bf16.mxu0 0
        %3466 = vmatpush1.bf16.msra.mxu0 %v3434
        %3467 = vmatprep.subr.bf16.mxu0 0
        %3468 = vmatpush1.bf16.msra.mxu0 %v3435
        %3469 = vmatprep.subr.bf16.mxu0 0
        %3470 = vmatpush1.bf16.msra.mxu0 0
        %3471 = vmatprep.subr.bf16.mxu0 0
        %3472 = vmatpush1.bf16.msra.mxu0 0
        %3473 = vmatprep.subr.bf16.mxu0 0
        %3474 = vmatpush1.bf16.msra.mxu0 0
        %3475 = vmatprep.subr.bf16.mxu0 0
        %3476 = vmatpush1.bf16.msra.mxu0 0
        %3477 = vmatprep.subr.bf16.mxu0 0
        %3478 = vmatpush1.bf16.msra.mxu0 0
        %3479 = vmatprep.subr.bf16.mxu0 0
        %3480 = vmatpush1.bf16.msra.mxu0 0
        %3481 = vmatprep.mubr.bf16.mxu0 %v3447
        %3482 = vmatmul.mubr.bf16.gmra.mrb[0].mxu0 %v2856
        %v3483 = vpop.f32.mrb[0].mxu0
        %v3484 = vadd.f32 0.0, %v3483
        %v3485 = vpop.f32.mrb[0].mxu0
        %v3486 = vpop.f32.mrb[0].mxu0
        %v3487 = vpop.f32.mrb[0].mxu0
        %3488 = vdwg.mxu0
        %v3489 = vadd.f32 %v3364, %v3484
        %v3490 = vlaneseq
        %v3491 = vshrl.u32 %v3490, 7
        %v3492 = vsub.s32 2, %v3491
        %v3493 = vrot.slane %v278, %v3492
        %v3494 = vadd.f32 %v3489, %v3493
        %3495 = vst [vmem:[%s271] sm:$0xff] %v3494
        %s3496 = sand.u32 %s181, 1
        %s3497 = scalar_lea.sflag [#allocation3], %s3496
        %s3498 = sand.u32 %s181, 1
        %s3499 = smul.addr %s3498, 8
        %s3500 = scalar_lea.vmem [#allocation2], %s3499
        // Predicated region
        $region49: #{lenet_forward.1} parent=47 // pred_check
          %p3501 = pneg %p191
        $region50: #{lenet_forward.1} parent=47 // pred_check_branch
          %3503 = sbr.rel (%p3501) target = $region52
        $region51: #{lenet_forward.1} parent=47 // pred_region
          %s3505 = ssub.s32 128, 128
          %3506 = vsyncadd %s3497, %s3505
          %s3507 = smul.addr %s21, 128
          %s3508 = scalar_lea.hbm %s7, %s3507
          %s3510 = sshll.u32 %s3500, 4
          %s3511 = int_to_ptr.vmem [resolvable:$true] %s3510
          %3513 = dma.vmem_to_hbm [thread:$0]  %s3511, 128, %s3508, %s3497
        $region52: #{lenet_forward.1} parent=47 // pred_fallthru
          _
      $region48: #{lenet_forward.1} parent=5 // pred_fallthru
        _
      %p3514 = scmp.le.s32.totalorder 2, %s16
      // Predicated region
      $region53: #{lenet_forward.1} parent=5 // pred_check
        %p3515 = pneg %p3514
      $region54: #{lenet_forward.1} parent=5 // pred_check_branch
        %3517 = sbr.rel (%p3515) target = $region56
      $region55: #{lenet_forward.1} parent=5 // pred_region
        %s3518 = ssub.s32 %s16, 2
        // Predicated region
        $region57: #{lenet_forward.1} parent=55 // pred_check
          %p3519 = pneg %p197
        $region58: #{lenet_forward.1} parent=55 // pred_check_branch
          %3521 = sbr.rel (%p3519) target = $region60
        $region59: #{lenet_forward.1} parent=55 // pred_region
          %s3522 = sand.u32 %s182, 1
          %s3523 = scalar_lea.sflag [#allocation3], %s3522
          %s3524 = sand.u32 %s182, 1
          %s3525 = smul.addr %s3524, 8
          %s3526 = scalar_lea.vmem [#allocation2], %s3525
          %3527 = dma.done %s3523, 128
        $region60: #{lenet_forward.1} parent=55 // pred_fallthru
          _
      $region56: #{lenet_forward.1} parent=5 // pred_fallthru
        _
    $region6: #{lenet_forward.1} parent=1 // loop_footer
      %s20 = sadd.s32 1, %s16
    $region7: #{lenet_forward.1} parent=1 // loop_footer_branch
      %15 = sbr.rel target = $region3
    $region8: #{lenet_forward.1} parent=1 // loop_exit
      _
    %3528 = vsyncpa [#allocation3], 1
    %s3529 = scalar_lea.sflag [#allocation3], 1
    %3530 = vsyncpa %s3529, 1

</llo_original>
